<compile_context>
chip_gen: v6e
topology: v6e:2x2x1
jax: 0.10.0
libtpu: 0.0.40
codegen_flags: <defaults>
</compile_context>

<pallas_src>
import functools

import numpy as np
import jax
import jax.numpy as jnp
from jax import lax
from jax.experimental import pallas as pl
from jax.experimental.pallas import tpu as pltpu

CP = 128  # padded channel width (lane dimension) used for all matmuls


# ---------------------------------------------------------------------------
# Fused Pallas kernel
# ---------------------------------------------------------------------------
def _silu(y):
    # y * sigmoid(y); exp and the approximate reciprocal both go to the EUP.
    return y * pl.reciprocal(1.0 + jnp.exp(-y), approx=True)


def _shifted(x, s):
    """tap[m] = x[m + s] along the flattened spatial axis, zero outside [0, M)."""
    if s == 0:
        return x
    z = jnp.zeros((abs(s), x.shape[1]), x.dtype)
    if s > 0:
        return jnp.concatenate([x[s:], z], axis=0)
    return jnp.concatenate([z, x[:s]], axis=0)


def _make_c3_fused_kernel(H, W, c1, c2):
    M = H * W

    def kernel(x_ref, w1_ref, b1_ref, wm1_ref, bm1_ref, wm2_ref, bm2_ref,
               w2_ref, b2_ref, w3_ref, b3_ref, o_ref):
        # ---- load x, zero-pad channels to CP lanes (VMEM/vregs only) --------
        xv = x_ref[...].reshape(M, c1)
        xpad = jnp.concatenate(
            [xv, jnp.zeros((M, CP - c1), jnp.float32)], axis=-1
        ).astype(jnp.bfloat16)

        # ---- cv1 branch: y1 = SiLU(x @ W1 + b1) -----------------------------
        y1 = _silu(jnp.dot(xpad, w1_ref[...],
                           preferred_element_type=jnp.float32) + b1_ref[...])

        # ---- bottleneck 1x1: yb1 = SiLU(y1 @ Wm1 + bm1) ---------------------
        yb1 = _silu(jnp.dot(y1.astype(jnp.bfloat16), wm1_ref[...],
                            preferred_element_type=jnp.float32) + bm1_ref[...])

        # ---- bottleneck 3x3 SAME conv (no halo scratch) ---------------------
        # Taps are zero-filled shifts of the flattened (M, CP) activation.
        # Column shifts (+-1, sublane-misaligned) happen once per dx with a
        # boundary mask; row shifts are multiples of W (tile-aligned).
        w_idx = lax.broadcasted_iota(jnp.int32, (H, W, CP), 1).reshape(M, CP)
        not_first_col = w_idx >= 1
        not_last_col = w_idx <= W - 2

        col_taps = []
        for dx in range(3):
            a = yb1 if dx == 1 else _shifted(yb1, dx - 1)
            if dx == 0:
                a = jnp.where(not_first_col, a, 0.0)
            elif dx == 2:
                a = jnp.where(not_last_col, a, 0.0)
            col_taps.append(a.astype(jnp.bfloat16))

        acc = jnp.zeros((M, CP), jnp.float32)
        for dy in range(3):
            rs = (dy - 1) * W
            for dx in range(3):
                tap = col_taps[dx] if dy == 1 else _shifted(col_taps[dx], rs)
                acc = acc + jnp.dot(tap, wm2_ref[dy, dx],
                                    preferred_element_type=jnp.float32)
        ym = y1 + _silu(acc + bm2_ref[...])          # bottleneck shortcut

        # ---- cv2 branch ------------------------------------------------------
        y2 = _silu(jnp.dot(xpad, w2_ref[...],
                           preferred_element_type=jnp.float32) + b2_ref[...])

        # ---- cv3 on concat([ym, y2]): one K=256 bf16 matmul -------------------
        cat = jnp.concatenate([ym.astype(jnp.bfloat16),
                               y2.astype(jnp.bfloat16)], axis=-1)
        out = _silu(jnp.dot(cat, w3_ref[...],
                            preferred_element_type=jnp.float32) + b3_ref[...])

        # ---- store only the real c2 channels (no padded HBM traffic) ---------
        o_ref[...] = out[:, :c2].reshape(1, H, W, c2)

    return kernel


def c3block_fused_call(x_nhwc, pp, c2):
    """x_nhwc: (N, H, W, c1) f32 (real channels only); pp: padded bf16 params."""
    N, H, W, c1 = x_nhwc.shape
    assert c1 <= CP and c2 <= CP
    M = N * H * W
    kern = _make_c3_fused_kernel(H, W, c1, c2)

    w_bytes = 2 * 14 * CP * CP + 4 * 6 * CP          # bf16 weights + f32 biases
    cost = pl.CostEstimate(
        flops=2 * M * CP * CP * 14,                   # 3 pw + 9 conv taps + K=2*CP cv3
        transcendentals=2 * 5 * M * CP,               # exp + reciprocal per SiLU
        bytes_accessed=M * (c1 + c2) * 4 + w_bytes,
    )

    # VMEM budget: double-buffered image I/O + double-buffered weights + the
    # live (H*W, CP) intermediates of one grid step.
    est = 2 * H * W * (c1 + c2) * 4 + 2 * w_bytes + 16 * H * W * CP * 4
    try:
        vmem_cap = pltpu.get_tpu_info().vmem_capacity_bytes
    except Exception:
        vmem_cap = 64 * 1024 * 1024                   # conservative (v7x per-TC)
    vmem_limit = int(min(max(2 * est, 32 * 1024 * 1024), 0.75 * vmem_cap))

    def const(shape):
        return pl.BlockSpec(shape, lambda n: (0,) * len(shape))

    return pl.pallas_call(
        kern,
        out_shape=jax.ShapeDtypeStruct((N, H, W, c2), jnp.float32),
        grid_spec=pltpu.PrefetchScalarGridSpec(
            num_scalar_prefetch=0,
            grid=(N,),
            in_specs=[
                pl.BlockSpec((1, H, W, c1), lambda n: (n, 0, 0, 0)),   # x
                const((CP, CP)), const((1, CP)),                        # cv1
                const((CP, CP)), const((1, CP)),                        # m.cv1
                const((3, 3, CP, CP)), const((1, CP)),                  # m.cv2
                const((CP, CP)), const((1, CP)),                        # cv2
                const((2 * CP, CP)), const((1, CP)),                    # cv3 (fused)
            ],
            out_specs=pl.BlockSpec((1, H, W, c2), lambda n: (n, 0, 0, 0)),
        ),
        compiler_params=pltpu.CompilerParams(
            dimension_semantics=("parallel",),
            vmem_limit_bytes=vmem_limit,
        ),
        cost_estimate=cost,
    )(x_nhwc, pp["w1"], pp["b1"], pp["wm1"], pp["bm1"], pp["wm2"], pp["bm2"],
      pp["w2"], pp["b2"], pp["w3"], pp["b3"])


# ---------------------------------------------------------------------------
# Parameter construction (deterministic, BN folded into conv)
# ---------------------------------------------------------------------------
def make_conv_bn_params(key, cin, cout, k):
    k1, k2, k3, k4, k5 = jax.random.split(key, 5)
    w = jax.random.normal(k1, (cout, cin, k, k), jnp.float32) / np.sqrt(cin * k * k)
    gamma = jax.random.uniform(k2, (cout,), jnp.float32, 0.5, 1.5)
    beta = jax.random.normal(k3, (cout,), jnp.float32) * 0.1
    mean = jax.random.normal(k4, (cout,), jnp.float32) * 0.1
    var = jax.random.uniform(k5, (cout,), jnp.float32, 0.5, 1.5)
    eps = 1e-5
    scale = gamma / jnp.sqrt(var + eps)
    w_fold = w * scale[:, None, None, None]
    b_fold = beta - mean * scale
    w_hwio = jnp.transpose(w_fold, (2, 3, 1, 0))  # (k, k, cin, cout)
    if k == 1:
        return w_hwio[0, 0], b_fold                # (cin, cout), (cout,)
    return w_hwio, b_fold                          # (k, k, cin, cout), (cout,)


def make_c3block_params(key, c1, c2, e=0.5, k=3):
    c_ = int(c2 * e)
    keys = jax.random.split(key, 5)
    p = {"c_": c_, "c2": c2}
    p["cv1_w"], p["cv1_b"] = make_conv_bn_params(keys[0], c1, c_, 1)
    p["cv2_w"], p["cv2_b"] = make_conv_bn_params(keys[1], c1, c_, 1)
    p["cv3_w"], p["cv3_b"] = make_conv_bn_params(keys[2], 2 * c_, c2, 1)
    p["m_cv1_w"], p["m_cv1_b"] = make_conv_bn_params(keys[3], c_, c_, 1)
    p["m_cv2_w"], p["m_cv2_b"] = make_conv_bn_params(keys[4], c_, c_, k)
    return p


# ---------------------------------------------------------------------------
# Channel padding of parameters (eager, outside jit) — weights cast to bf16
# ---------------------------------------------------------------------------
def pad_w_pw(w, cp=CP):
    ci, co = w.shape
    return jnp.pad(w, ((0, cp - ci), (0, cp - co)))


def pad_w33(w, cp=CP):
    _, _, ci, co = w.shape
    return jnp.pad(w, ((0, 0), (0, 0), (0, cp - ci), (0, cp - co)))


def pad_b(b, cp=CP):
    return jnp.pad(b, (0, cp - b.shape[0])).reshape(1, cp)


def make_padded_params(p):
    c_ = p["c_"]                      # python int (eager) -> static slicing OK
    w3 = p["cv3_w"]                   # (2*c_, c2): rows [0:c_] act on ym, [c_:] on y2
    bf = jnp.bfloat16
    # Fused cv3 weight: (2*CP, CP); rows [0:CP) multiply the ym lanes,
    # rows [CP:2CP) multiply the y2 lanes of the in-kernel lane-concat.
    w3_fused = jnp.concatenate([pad_w_pw(w3[:c_]), pad_w_pw(w3[c_:])], axis=0)
    return {
        "w1": pad_w_pw(p["cv1_w"]).astype(bf), "b1": pad_b(p["cv1_b"]),
        "wm1": pad_w_pw(p["m_cv1_w"]).astype(bf), "bm1": pad_b(p["m_cv1_b"]),
        "wm2": pad_w33(p["m_cv2_w"]).astype(bf), "bm2": pad_b(p["m_cv2_b"]),
        "w2": pad_w_pw(p["cv2_w"]).astype(bf), "b2": pad_b(p["cv2_b"]),
        "w3": w3_fused.astype(bf), "b3": pad_b(p["cv3_b"]),
    }


# ---------------------------------------------------------------------------
# C3Block forward (default variant) built on the fused Pallas kernel
# ---------------------------------------------------------------------------
@functools.partial(jax.jit, static_argnames=("c2",))
def c3block_forward(x_nchw, pp, c2):
    x = jnp.transpose(x_nchw, (0, 2, 3, 1)).astype(jnp.float32)   # NHWC (real chans)
    out = c3block_fused_call(x, pp, c2)                           # (N, H, W, c2)
    return jnp.transpose(out, (0, 3, 1, 2))                       # back to NCHW


# ---------------------------------------------------------------------------
# Pure-JAX reference (for correctness check)
# ---------------------------------------------------------------------------
def ref_forward(x_nchw, p):
    x = jnp.transpose(x_nchw, (0, 2, 3, 1)).astype(jnp.float32)

    def silu(y):
        return y * jax.nn.sigmoid(y)

    def pw(x, w, b):
        return silu(jnp.einsum("nhwc,co->nhwo", x, w,
                               precision=lax.Precision.HIGHEST) + b)

    def c3x3(x, w, b):
        y = lax.conv_general_dilated(x, w, (1, 1), "SAME",
                                     dimension_numbers=("NHWC", "HWIO", "NHWC"),
                                     precision=lax.Precision.HIGHEST)
        return silu(y + b)

    y1 = pw(x, p["cv1_w"], p["cv1_b"])
    b1 = pw(y1, p["m_cv1_w"], p["m_cv1_b"])
    b2 = c3x3(b1, p["m_cv2_w"], p["m_cv2_b"])
    ym = y1 + b2
    y2 = pw(x, p["cv2_w"], p["cv2_b"])
    cat = jnp.concatenate([ym, y2], axis=-1)
    out = pw(cat, p["cv3_w"], p["cv3_b"])
    return jnp.transpose(out, (0, 3, 1, 2))


if __name__ == "__main__":
    key = jax.random.PRNGKey(0)
    kx, kp = jax.random.split(key)

    N, c1, c2, H, W = 2, 8, 8, 16, 16
    x = jax.random.normal(kx, (N, c1, H, W), jnp.float32)
    params = make_c3block_params(kp, c1, c2, e=0.5, k=3)
    pp = make_padded_params(params)

    out = jax.block_until_ready(c3block_forward(x, pp, c2=c2))
    ref = jax.block_until_ready(ref_forward(x, params))

    # Kernel matmuls use bf16 operands on the MXU (f32 accumulation) and an
    # approximate EUP reciprocal in SiLU; the reference runs HIGHEST-precision
    # f32, hence the relaxed tolerance.
    np.testing.assert_allclose(np.asarray(out), np.asarray(ref),
                               rtol=5e-2, atol=5e-2)
    assert out.shape == (N, c2, H, W)
    print("KERNEL_OK")
</pallas_src>

<mosaic_0001>
module attributes {stable_mosaic.version = 11 : i64} {
  func.func @kernel(%arg0: i32, %arg1: memref<1x16x16x8xf32, #tpu.memory_space<vmem>>, %arg2: memref<128x128xbf16, #tpu.memory_space<vmem>>, %arg3: memref<1x128xf32, #tpu.memory_space<vmem>>, %arg4: memref<128x128xbf16, #tpu.memory_space<vmem>>, %arg5: memref<1x128xf32, #tpu.memory_space<vmem>>, %arg6: memref<3x3x128x128xbf16, #tpu.memory_space<vmem>>, %arg7: memref<1x128xf32, #tpu.memory_space<vmem>>, %arg8: memref<128x128xbf16, #tpu.memory_space<vmem>>, %arg9: memref<1x128xf32, #tpu.memory_space<vmem>>, %arg10: memref<256x128xbf16, #tpu.memory_space<vmem>>, %arg11: memref<1x128xf32, #tpu.memory_space<vmem>>, %arg12: memref<1x16x16x8xf32, #tpu.memory_space<vmem>>) attributes {dimension_semantics = [#tpu.dimension_semantics<parallel>], iteration_bounds = array<i64: 2>, scalar_prefetch = 0 : i64, scratch_operands = 0 : i64, tpu.core_type = #tpu.core_type<tc>, window_params = [{transform_indices = @transform_0, window_bounds = array<i64: 1, 16, 16, 8>}, {pipeline_mode = #tpu.pipeline_mode<synchronous>, transform_indices = @transform_1, window_bounds = array<i64: 128, 128>}, {pipeline_mode = #tpu.pipeline_mode<synchronous>, transform_indices = @transform_2, window_bounds = array<i64: 1, 128>}, {pipeline_mode = #tpu.pipeline_mode<synchronous>, transform_indices = @transform_3, window_bounds = array<i64: 128, 128>}, {pipeline_mode = #tpu.pipeline_mode<synchronous>, transform_indices = @transform_4, window_bounds = array<i64: 1, 128>}, {pipeline_mode = #tpu.pipeline_mode<synchronous>, transform_indices = @transform_5, window_bounds = array<i64: 3, 3, 128, 128>}, {pipeline_mode = #tpu.pipeline_mode<synchronous>, transform_indices = @transform_6, window_bounds = array<i64: 1, 128>}, {pipeline_mode = #tpu.pipeline_mode<synchronous>, transform_indices = @transform_7, window_bounds = array<i64: 128, 128>}, {pipeline_mode = #tpu.pipeline_mode<synchronous>, transform_indices = @transform_8, window_bounds = array<i64: 1, 128>}, {pipeline_mode = #tpu.pipeline_mode<synchronous>, transform_indices = @transform_9, window_bounds = array<i64: 256, 128>}, {pipeline_mode = #tpu.pipeline_mode<synchronous>, transform_indices = @transform_10, window_bounds = array<i64: 1, 128>}, {transform_indices = @transform_11, window_bounds = array<i64: 1, 16, 16, 8>}]} {
    %c0 = arith.constant 0 : index
    %c0_0 = arith.constant 0 : index
    %c0_1 = arith.constant 0 : index
    %c0_2 = arith.constant 0 : index
    %0 = vector.load %arg1[%c0, %c0_0, %c0_1, %c0_2] : memref<1x16x16x8xf32, #tpu.memory_space<vmem>>, vector<1x16x16x8xf32>
    %1 = vector.shape_cast %0 : vector<1x16x16x8xf32> to vector<256x8xf32>
    %cst = arith.constant 0.000000e+00 : f32
    %2 = vector.broadcast %cst : f32 to vector<256x120xf32>
    %3 = tpu.concatenate %1, %2 in 1 : vector<256x8xf32>, vector<256x120xf32> -> vector<256x128xf32>
    %4 = arith.truncf %3 : vector<256x128xf32> to vector<256x128xbf16>
    %c0_3 = arith.constant 0 : index
    %c0_4 = arith.constant 0 : index
    %5 = vector.load %arg2[%c0_3, %c0_4] : memref<128x128xbf16, #tpu.memory_space<vmem>>, vector<128x128xbf16>
    %cst_5 = arith.constant dense<0.000000e+00> : vector<256x128xf32>
    %6 = tpu.matmul %4, %5, %cst_5 {dimension_numbers = #tpu.dot_dimension_numbers<[1], [0], [0], [1], [0, 0, 1, 1], [], []>} : vector<256x128xbf16>, vector<128x128xbf16>, vector<256x128xf32> -> vector<256x128xf32>
    %c0_6 = arith.constant 0 : index
    %c0_7 = arith.constant 0 : index
    %7 = vector.load %arg3[%c0_6, %c0_7] : memref<1x128xf32, #tpu.memory_space<vmem>>, vector<1x128xf32>
    %8 = vector.broadcast %7 : vector<1x128xf32> to vector<256x128xf32>
    %9 = arith.addf %6, %8 : vector<256x128xf32>
    %cst_8 = arith.constant 0.000000e+00 : f32
    %10 = vector.broadcast %cst_8 : f32 to vector<256x128xf32>
    %11 = arith.subf %10, %9 : vector<256x128xf32>
    %12 = math.exp %11 : vector<256x128xf32>
    %cst_9 = arith.constant 1.000000e+00 : f32
    %13 = vector.broadcast %cst_9 : f32 to vector<256x128xf32>
    %14 = arith.addf %13, %12 : vector<256x128xf32>
    %15 = tpu.reciprocal %14 {approx = true} : vector<256x128xf32> -> vector<256x128xf32>
    %16 = arith.mulf %9, %15 : vector<256x128xf32>
    %17 = arith.truncf %16 : vector<256x128xf32> to vector<256x128xbf16>
    %c0_10 = arith.constant 0 : index
    %c0_11 = arith.constant 0 : index
    %18 = vector.load %arg4[%c0_10, %c0_11] : memref<128x128xbf16, #tpu.memory_space<vmem>>, vector<128x128xbf16>
    %cst_12 = arith.constant dense<0.000000e+00> : vector<256x128xf32>
    %19 = tpu.matmul %17, %18, %cst_12 {dimension_numbers = #tpu.dot_dimension_numbers<[1], [0], [0], [1], [0, 0, 1, 1], [], []>} : vector<256x128xbf16>, vector<128x128xbf16>, vector<256x128xf32> -> vector<256x128xf32>
    %c0_13 = arith.constant 0 : index
    %c0_14 = arith.constant 0 : index
    %20 = vector.load %arg5[%c0_13, %c0_14] : memref<1x128xf32, #tpu.memory_space<vmem>>, vector<1x128xf32>
    %21 = vector.broadcast %20 : vector<1x128xf32> to vector<256x128xf32>
    %22 = arith.addf %19, %21 : vector<256x128xf32>
    %cst_15 = arith.constant 0.000000e+00 : f32
    %23 = vector.broadcast %cst_15 : f32 to vector<256x128xf32>
    %24 = arith.subf %23, %22 : vector<256x128xf32>
    %25 = math.exp %24 : vector<256x128xf32>
    %cst_16 = arith.constant 1.000000e+00 : f32
    %26 = vector.broadcast %cst_16 : f32 to vector<256x128xf32>
    %27 = arith.addf %26, %25 : vector<256x128xf32>
    %28 = tpu.reciprocal %27 {approx = true} : vector<256x128xf32> -> vector<256x128xf32>
    %29 = arith.mulf %22, %28 : vector<256x128xf32>
    %30 = tpu.iota {dimensions = array<i32: 1>} : vector<16x16x128xi32>
    %31 = vector.shape_cast %30 : vector<16x16x128xi32> to vector<256x128xi32>
    %c1_i32 = arith.constant 1 : i32
    %32 = vector.broadcast %c1_i32 : i32 to vector<256x128xi32>
    %33 = arith.cmpi sge, %31, %32 : vector<256x128xi32>
    %c14_i32 = arith.constant 14 : i32
    %34 = vector.broadcast %c14_i32 : i32 to vector<256x128xi32>
    %35 = arith.cmpi sle, %31, %34 : vector<256x128xi32>
    %cst_17 = arith.constant 0.000000e+00 : f32
    %36 = vector.broadcast %cst_17 : f32 to vector<1x128xf32>
    %37 = vector.extract_strided_slice %29 {offsets = [0, 0], sizes = [255, 128], strides = [1, 1]} : vector<256x128xf32> to vector<255x128xf32>
    %38 = tpu.concatenate %36, %37 in 0 : vector<1x128xf32>, vector<255x128xf32> -> vector<256x128xf32>
    %cst_18 = arith.constant 0.000000e+00 : f32
    %39 = vector.broadcast %cst_18 : f32 to vector<256x128xf32>
    %40 = arith.select %33, %38, %39 : vector<256x128xi1>, vector<256x128xf32>
    %41 = arith.truncf %40 : vector<256x128xf32> to vector<256x128xbf16>
    %42 = arith.truncf %29 : vector<256x128xf32> to vector<256x128xbf16>
    %cst_19 = arith.constant 0.000000e+00 : f32
    %43 = vector.broadcast %cst_19 : f32 to vector<1x128xf32>
    %44 = vector.extract_strided_slice %29 {offsets = [1, 0], sizes = [255, 128], strides = [1, 1]} : vector<256x128xf32> to vector<255x128xf32>
    %45 = tpu.concatenate %44, %43 in 0 : vector<255x128xf32>, vector<1x128xf32> -> vector<256x128xf32>
    %cst_20 = arith.constant 0.000000e+00 : f32
    %46 = vector.broadcast %cst_20 : f32 to vector<256x128xf32>
    %47 = arith.select %35, %45, %46 : vector<256x128xi1>, vector<256x128xf32>
    %48 = arith.truncf %47 : vector<256x128xf32> to vector<256x128xbf16>
    %cst_21 = arith.constant 0.000000e+00 : f32
    %49 = vector.broadcast %cst_21 : f32 to vector<256x128xf32>
    %cst_22 = arith.constant 0.000000e+00 : bf16
    %50 = vector.broadcast %cst_22 : bf16 to vector<16x128xbf16>
    %51 = vector.extract_strided_slice %41 {offsets = [0, 0], sizes = [240, 128], strides = [1, 1]} : vector<256x128xbf16> to vector<240x128xbf16>
    %52 = tpu.concatenate %50, %51 in 0 : vector<16x128xbf16>, vector<240x128xbf16> -> vector<256x128xbf16>
    %c0_23 = arith.constant 0 : index
    %c0_24 = arith.constant 0 : index
    %c0_25 = arith.constant 0 : index
    %c0_26 = arith.constant 0 : index
    %53 = vector.load %arg6[%c0_23, %c0_24, %c0_25, %c0_26] : memref<3x3x128x128xbf16, #tpu.memory_space<vmem>>, vector<1x1x128x128xbf16>
    %54 = vector.shape_cast %53 : vector<1x1x128x128xbf16> to vector<128x128xbf16>
    %cst_27 = arith.constant dense<0.000000e+00> : vector<256x128xf32>
    %55 = tpu.matmul %52, %54, %cst_27 {dimension_numbers = #tpu.dot_dimension_numbers<[1], [0], [0], [1], [0, 0, 1, 1], [], []>} : vector<256x128xbf16>, vector<128x128xbf16>, vector<256x128xf32> -> vector<256x128xf32>
    %56 = arith.addf %49, %55 : vector<256x128xf32>
    %cst_28 = arith.constant 0.000000e+00 : bf16
    %57 = vector.broadcast %cst_28 : bf16 to vector<16x128xbf16>
    %58 = vector.extract_strided_slice %42 {offsets = [0, 0], sizes = [240, 128], strides = [1, 1]} : vector<256x128xbf16> to vector<240x128xbf16>
    %59 = tpu.concatenate %57, %58 in 0 : vector<16x128xbf16>, vector<240x128xbf16> -> vector<256x128xbf16>
    %c0_29 = arith.constant 0 : index
    %c1 = arith.constant 1 : index
    %c0_30 = arith.constant 0 : index
    %c0_31 = arith.constant 0 : index
    %60 = vector.load %arg6[%c0_29, %c1, %c0_30, %c0_31] : memref<3x3x128x128xbf16, #tpu.memory_space<vmem>>, vector<1x1x128x128xbf16>
    %61 = vector.shape_cast %60 : vector<1x1x128x128xbf16> to vector<128x128xbf16>
    %cst_32 = arith.constant dense<0.000000e+00> : vector<256x128xf32>
    %62 = tpu.matmul %59, %61, %cst_32 {dimension_numbers = #tpu.dot_dimension_numbers<[1], [0], [0], [1], [0, 0, 1, 1], [], []>} : vector<256x128xbf16>, vector<128x128xbf16>, vector<256x128xf32> -> vector<256x128xf32>
    %63 = arith.addf %56, %62 : vector<256x128xf32>
    %cst_33 = arith.constant 0.000000e+00 : bf16
    %64 = vector.broadcast %cst_33 : bf16 to vector<16x128xbf16>
    %65 = vector.extract_strided_slice %48 {offsets = [0, 0], sizes = [240, 128], strides = [1, 1]} : vector<256x128xbf16> to vector<240x128xbf16>
    %66 = tpu.concatenate %64, %65 in 0 : vector<16x128xbf16>, vector<240x128xbf16> -> vector<256x128xbf16>
    %c0_34 = arith.constant 0 : index
    %c2 = arith.constant 2 : index
    %c0_35 = arith.constant 0 : index
    %c0_36 = arith.constant 0 : index
    %67 = vector.load %arg6[%c0_34, %c2, %c0_35, %c0_36] : memref<3x3x128x128xbf16, #tpu.memory_space<vmem>>, vector<1x1x128x128xbf16>
    %68 = vector.shape_cast %67 : vector<1x1x128x128xbf16> to vector<128x128xbf16>
    %cst_37 = arith.constant dense<0.000000e+00> : vector<256x128xf32>
    %69 = tpu.matmul %66, %68, %cst_37 {dimension_numbers = #tpu.dot_dimension_numbers<[1], [0], [0], [1], [0, 0, 1, 1], [], []>} : vector<256x128xbf16>, vector<128x128xbf16>, vector<256x128xf32> -> vector<256x128xf32>
    %70 = arith.addf %63, %69 : vector<256x128xf32>
    %c1_38 = arith.constant 1 : index
    %c0_39 = arith.constant 0 : index
    %c0_40 = arith.constant 0 : index
    %c0_41 = arith.constant 0 : index
    %71 = vector.load %arg6[%c1_38, %c0_39, %c0_40, %c0_41] : memref<3x3x128x128xbf16, #tpu.memory_space<vmem>>, vector<1x1x128x128xbf16>
    %72 = vector.shape_cast %71 : vector<1x1x128x128xbf16> to vector<128x128xbf16>
    %cst_42 = arith.constant dense<0.000000e+00> : vector<256x128xf32>
    %73 = tpu.matmul %41, %72, %cst_42 {dimension_numbers = #tpu.dot_dimension_numbers<[1], [0], [0], [1], [0, 0, 1, 1], [], []>} : vector<256x128xbf16>, vector<128x128xbf16>, vector<256x128xf32> -> vector<256x128xf32>
    %74 = arith.addf %70, %73 : vector<256x128xf32>
    %c1_43 = arith.constant 1 : index
    %c1_44 = arith.constant 1 : index
    %c0_45 = arith.constant 0 : index
    %c0_46 = arith.constant 0 : index
    %75 = vector.load %arg6[%c1_43, %c1_44, %c0_45, %c0_46] : memref<3x3x128x128xbf16, #tpu.memory_space<vmem>>, vector<1x1x128x128xbf16>
    %76 = vector.shape_cast %75 : vector<1x1x128x128xbf16> to vector<128x128xbf16>
    %cst_47 = arith.constant dense<0.000000e+00> : vector<256x128xf32>
    %77 = tpu.matmul %42, %76, %cst_47 {dimension_numbers = #tpu.dot_dimension_numbers<[1], [0], [0], [1], [0, 0, 1, 1], [], []>} : vector<256x128xbf16>, vector<128x128xbf16>, vector<256x128xf32> -> vector<256x128xf32>
    %78 = arith.addf %74, %77 : vector<256x128xf32>
    %c1_48 = arith.constant 1 : index
    %c2_49 = arith.constant 2 : index
    %c0_50 = arith.constant 0 : index
    %c0_51 = arith.constant 0 : index
    %79 = vector.load %arg6[%c1_48, %c2_49, %c0_50, %c0_51] : memref<3x3x128x128xbf16, #tpu.memory_space<vmem>>, vector<1x1x128x128xbf16>
    %80 = vector.shape_cast %79 : vector<1x1x128x128xbf16> to vector<128x128xbf16>
    %cst_52 = arith.constant dense<0.000000e+00> : vector<256x128xf32>
    %81 = tpu.matmul %48, %80, %cst_52 {dimension_numbers = #tpu.dot_dimension_numbers<[1], [0], [0], [1], [0, 0, 1, 1], [], []>} : vector<256x128xbf16>, vector<128x128xbf16>, vector<256x128xf32> -> vector<256x128xf32>
    %82 = arith.addf %78, %81 : vector<256x128xf32>
    %cst_53 = arith.constant 0.000000e+00 : bf16
    %83 = vector.broadcast %cst_53 : bf16 to vector<16x128xbf16>
    %84 = vector.extract_strided_slice %41 {offsets = [16, 0], sizes = [240, 128], strides = [1, 1]} : vector<256x128xbf16> to vector<240x128xbf16>
    %85 = tpu.concatenate %84, %83 in 0 : vector<240x128xbf16>, vector<16x128xbf16> -> vector<256x128xbf16>
    %c2_54 = arith.constant 2 : index
    %c0_55 = arith.constant 0 : index
    %c0_56 = arith.constant 0 : index
    %c0_57 = arith.constant 0 : index
    %86 = vector.load %arg6[%c2_54, %c0_55, %c0_56, %c0_57] : memref<3x3x128x128xbf16, #tpu.memory_space<vmem>>, vector<1x1x128x128xbf16>
    %87 = vector.shape_cast %86 : vector<1x1x128x128xbf16> to vector<128x128xbf16>
    %cst_58 = arith.constant dense<0.000000e+00> : vector<256x128xf32>
    %88 = tpu.matmul %85, %87, %cst_58 {dimension_numbers = #tpu.dot_dimension_numbers<[1], [0], [0], [1], [0, 0, 1, 1], [], []>} : vector<256x128xbf16>, vector<128x128xbf16>, vector<256x128xf32> -> vector<256x128xf32>
    %89 = arith.addf %82, %88 : vector<256x128xf32>
    %cst_59 = arith.constant 0.000000e+00 : bf16
    %90 = vector.broadcast %cst_59 : bf16 to vector<16x128xbf16>
    %91 = vector.extract_strided_slice %42 {offsets = [16, 0], sizes = [240, 128], strides = [1, 1]} : vector<256x128xbf16> to vector<240x128xbf16>
    %92 = tpu.concatenate %91, %90 in 0 : vector<240x128xbf16>, vector<16x128xbf16> -> vector<256x128xbf16>
    %c2_60 = arith.constant 2 : index
    %c1_61 = arith.constant 1 : index
    %c0_62 = arith.constant 0 : index
    %c0_63 = arith.constant 0 : index
    %93 = vector.load %arg6[%c2_60, %c1_61, %c0_62, %c0_63] : memref<3x3x128x128xbf16, #tpu.memory_space<vmem>>, vector<1x1x128x128xbf16>
    %94 = vector.shape_cast %93 : vector<1x1x128x128xbf16> to vector<128x128xbf16>
    %cst_64 = arith.constant dense<0.000000e+00> : vector<256x128xf32>
    %95 = tpu.matmul %92, %94, %cst_64 {dimension_numbers = #tpu.dot_dimension_numbers<[1], [0], [0], [1], [0, 0, 1, 1], [], []>} : vector<256x128xbf16>, vector<128x128xbf16>, vector<256x128xf32> -> vector<256x128xf32>
    %96 = arith.addf %89, %95 : vector<256x128xf32>
    %cst_65 = arith.constant 0.000000e+00 : bf16
    %97 = vector.broadcast %cst_65 : bf16 to vector<16x128xbf16>
    %98 = vector.extract_strided_slice %48 {offsets = [16, 0], sizes = [240, 128], strides = [1, 1]} : vector<256x128xbf16> to vector<240x128xbf16>
    %99 = tpu.concatenate %98, %97 in 0 : vector<240x128xbf16>, vector<16x128xbf16> -> vector<256x128xbf16>
    %c2_66 = arith.constant 2 : index
    %c2_67 = arith.constant 2 : index
    %c0_68 = arith.constant 0 : index
    %c0_69 = arith.constant 0 : index
    %100 = vector.load %arg6[%c2_66, %c2_67, %c0_68, %c0_69] : memref<3x3x128x128xbf16, #tpu.memory_space<vmem>>, vector<1x1x128x128xbf16>
    %101 = vector.shape_cast %100 : vector<1x1x128x128xbf16> to vector<128x128xbf16>
    %cst_70 = arith.constant dense<0.000000e+00> : vector<256x128xf32>
    %102 = tpu.matmul %99, %101, %cst_70 {dimension_numbers = #tpu.dot_dimension_numbers<[1], [0], [0], [1], [0, 0, 1, 1], [], []>} : vector<256x128xbf16>, vector<128x128xbf16>, vector<256x128xf32> -> vector<256x128xf32>
    %103 = arith.addf %96, %102 : vector<256x128xf32>
    %c0_71 = arith.constant 0 : index
    %c0_72 = arith.constant 0 : index
    %104 = vector.load %arg7[%c0_71, %c0_72] : memref<1x128xf32, #tpu.memory_space<vmem>>, vector<1x128xf32>
    %105 = vector.broadcast %104 : vector<1x128xf32> to vector<256x128xf32>
    %106 = arith.addf %103, %105 : vector<256x128xf32>
    %cst_73 = arith.constant 0.000000e+00 : f32
    %107 = vector.broadcast %cst_73 : f32 to vector<256x128xf32>
    %108 = arith.subf %107, %106 : vector<256x128xf32>
    %109 = math.exp %108 : vector<256x128xf32>
    %cst_74 = arith.constant 1.000000e+00 : f32
    %110 = vector.broadcast %cst_74 : f32 to vector<256x128xf32>
    %111 = arith.addf %110, %109 : vector<256x128xf32>
    %112 = tpu.reciprocal %111 {approx = true} : vector<256x128xf32> -> vector<256x128xf32>
    %113 = arith.mulf %106, %112 : vector<256x128xf32>
    %114 = arith.addf %16, %113 : vector<256x128xf32>
    %c0_75 = arith.constant 0 : index
    %c0_76 = arith.constant 0 : index
    %115 = vector.load %arg8[%c0_75, %c0_76] : memref<128x128xbf16, #tpu.memory_space<vmem>>, vector<128x128xbf16>
    %cst_77 = arith.constant dense<0.000000e+00> : vector<256x128xf32>
    %116 = tpu.matmul %4, %115, %cst_77 {dimension_numbers = #tpu.dot_dimension_numbers<[1], [0], [0], [1], [0, 0, 1, 1], [], []>} : vector<256x128xbf16>, vector<128x128xbf16>, vector<256x128xf32> -> vector<256x128xf32>
    %c0_78 = arith.constant 0 : index
    %c0_79 = arith.constant 0 : index
    %117 = vector.load %arg9[%c0_78, %c0_79] : memref<1x128xf32, #tpu.memory_space<vmem>>, vector<1x128xf32>
    %118 = vector.broadcast %117 : vector<1x128xf32> to vector<256x128xf32>
    %119 = arith.addf %116, %118 : vector<256x128xf32>
    %cst_80 = arith.constant 0.000000e+00 : f32
    %120 = vector.broadcast %cst_80 : f32 to vector<256x128xf32>
    %121 = arith.subf %120, %119 : vector<256x128xf32>
    %122 = math.exp %121 : vector<256x128xf32>
    %cst_81 = arith.constant 1.000000e+00 : f32
    %123 = vector.broadcast %cst_81 : f32 to vector<256x128xf32>
    %124 = arith.addf %123, %122 : vector<256x128xf32>
    %125 = tpu.reciprocal %124 {approx = true} : vector<256x128xf32> -> vector<256x128xf32>
    %126 = arith.mulf %119, %125 : vector<256x128xf32>
    %127 = arith.truncf %114 : vector<256x128xf32> to vector<256x128xbf16>
    %128 = arith.truncf %126 : vector<256x128xf32> to vector<256x128xbf16>
    %129 = tpu.concatenate %127, %128 in 1 : vector<256x128xbf16>, vector<256x128xbf16> -> vector<256x256xbf16>
    %c0_82 = arith.constant 0 : index
    %c0_83 = arith.constant 0 : index
    %130 = vector.load %arg10[%c0_82, %c0_83] : memref<256x128xbf16, #tpu.memory_space<vmem>>, vector<256x128xbf16>
    %cst_84 = arith.constant dense<0.000000e+00> : vector<256x128xf32>
    %131 = tpu.matmul %129, %130, %cst_84 {dimension_numbers = #tpu.dot_dimension_numbers<[1], [0], [0], [1], [0, 0, 1, 1], [], []>} : vector<256x256xbf16>, vector<256x128xbf16>, vector<256x128xf32> -> vector<256x128xf32>
    %c0_85 = arith.constant 0 : index
    %c0_86 = arith.constant 0 : index
    %132 = vector.load %arg11[%c0_85, %c0_86] : memref<1x128xf32, #tpu.memory_space<vmem>>, vector<1x128xf32>
    %133 = vector.broadcast %132 : vector<1x128xf32> to vector<256x128xf32>
    %134 = arith.addf %131, %133 : vector<256x128xf32>
    %cst_87 = arith.constant 0.000000e+00 : f32
    %135 = vector.broadcast %cst_87 : f32 to vector<256x128xf32>
    %136 = arith.subf %135, %134 : vector<256x128xf32>
    %137 = math.exp %136 : vector<256x128xf32>
    %cst_88 = arith.constant 1.000000e+00 : f32
    %138 = vector.broadcast %cst_88 : f32 to vector<256x128xf32>
    %139 = arith.addf %138, %137 : vector<256x128xf32>
    %140 = tpu.reciprocal %139 {approx = true} : vector<256x128xf32> -> vector<256x128xf32>
    %141 = arith.mulf %134, %140 : vector<256x128xf32>
    %142 = vector.extract_strided_slice %141 {offsets = [0, 0], sizes = [256, 8], strides = [1, 1]} : vector<256x128xf32> to vector<256x8xf32>
    %143 = vector.shape_cast %142 : vector<256x8xf32> to vector<1x16x16x8xf32>
    %c0_89 = arith.constant 0 : index
    %c0_90 = arith.constant 0 : index
    %c0_91 = arith.constant 0 : index
    %c0_92 = arith.constant 0 : index
    %144 = vector.load %arg12[%c0_89, %c0_90, %c0_91, %c0_92] : memref<1x16x16x8xf32, #tpu.memory_space<vmem>>, vector<1x16x16x8xf32>
    tpu.vector_store %arg12[%c0_89, %c0_90, %c0_91, %c0_92], %143 {strides = array<i32>} : memref<1x16x16x8xf32, #tpu.memory_space<vmem>>, vector<1x16x16x8xf32>,
    return
  }
  func.func @transform_0(%arg0: i32) -> (i32, i32, i32, i32) {
    %c0_i32 = arith.constant 0 : i32
    %c0_i32_0 = arith.constant 0 : i32
    %c0_i32_1 = arith.constant 0 : i32
    %c0_i32_2 = arith.constant 0 : i32
    return %arg0, %c0_i32, %c0_i32_0, %c0_i32_1 : i32, i32, i32, i32
  }
  func.func @transform_1(%arg0: i32) -> (i32, i32) {
    %c0_i32 = arith.constant 0 : i32
    %c0_i32_0 = arith.constant 0 : i32
    %c0_i32_1 = arith.constant 0 : i32
    return %c0_i32, %c0_i32_0 : i32, i32
  }
  func.func @transform_2(%arg0: i32) -> (i32, i32) {
    %c0_i32 = arith.constant 0 : i32
    %c0_i32_0 = arith.constant 0 : i32
    %c0_i32_1 = arith.constant 0 : i32
    return %c0_i32, %c0_i32_0 : i32, i32
  }
  func.func @transform_3(%arg0: i32) -> (i32, i32) {
    %c0_i32 = arith.constant 0 : i32
    %c0_i32_0 = arith.constant 0 : i32
    %c0_i32_1 = arith.constant 0 : i32
    return %c0_i32, %c0_i32_0 : i32, i32
  }
  func.func @transform_4(%arg0: i32) -> (i32, i32) {
    %c0_i32 = arith.constant 0 : i32
    %c0_i32_0 = arith.constant 0 : i32
    %c0_i32_1 = arith.constant 0 : i32
    return %c0_i32, %c0_i32_0 : i32, i32
  }
  func.func @transform_5(%arg0: i32) -> (i32, i32, i32, i32) {
    %c0_i32 = arith.constant 0 : i32
    %c0_i32_0 = arith.constant 0 : i32
    %c0_i32_1 = arith.constant 0 : i32
    %c0_i32_2 = arith.constant 0 : i32
    %c0_i32_3 = arith.constant 0 : i32
    return %c0_i32, %c0_i32_0, %c0_i32_1, %c0_i32_2 : i32, i32, i32, i32
  }
  func.func @transform_6(%arg0: i32) -> (i32, i32) {
    %c0_i32 = arith.constant 0 : i32
    %c0_i32_0 = arith.constant 0 : i32
    %c0_i32_1 = arith.constant 0 : i32
    return %c0_i32, %c0_i32_0 : i32, i32
  }
  func.func @transform_7(%arg0: i32) -> (i32, i32) {
    %c0_i32 = arith.constant 0 : i32
    %c0_i32_0 = arith.constant 0 : i32
    %c0_i32_1 = arith.constant 0 : i32
    return %c0_i32, %c0_i32_0 : i32, i32
  }
  func.func @transform_8(%arg0: i32) -> (i32, i32) {
    %c0_i32 = arith.constant 0 : i32
    %c0_i32_0 = arith.constant 0 : i32
    %c0_i32_1 = arith.constant 0 : i32
    return %c0_i32, %c0_i32_0 : i32, i32
  }
  func.func @transform_9(%arg0: i32) -> (i32, i32) {
    %c0_i32 = arith.constant 0 : i32
    %c0_i32_0 = arith.constant 0 : i32
    %c0_i32_1 = arith.constant 0 : i32
    return %c0_i32, %c0_i32_0 : i32, i32
  }
  func.func @transform_10(%arg0: i32) -> (i32, i32) {
    %c0_i32 = arith.constant 0 : i32
    %c0_i32_0 = arith.constant 0 : i32
    %c0_i32_1 = arith.constant 0 : i32
    return %c0_i32, %c0_i32_0 : i32, i32
  }
  func.func @transform_11(%arg0: i32) -> (i32, i32, i32, i32) {
    %c0_i32 = arith.constant 0 : i32
    %c0_i32_0 = arith.constant 0 : i32
    %c0_i32_1 = arith.constant 0 : i32
    %c0_i32_2 = arith.constant 0 : i32
    return %arg0, %c0_i32, %c0_i32_0, %c0_i32_1 : i32, i32, i32, i32
  }
}

</mosaic_0001>

<llo_original>
// kernel: c3block_forward.1
$region0: #{c3block_forward.1}
  #allocation0 [shape = 'u32[]', space=smem, size = 0x4, offset = 0x4, fixed_abs, tag = 'smem constant byte address 0x4 - core index']
  #allocation1 [shape = 'u32[144,128]{1,0:T(1,128)}', space=vmem, size = 0x12000, scoped, tag = 'internal scratch']
  %s0 = inlined_call_operand.vmem [shape: f32[2,16,16,8], index: 0, kind: input, shape index: {}]
  %s1 = inlined_call_operand.vmem [shape: bf16[128,128], index: 1, kind: input, shape index: {}]
  %s2 = inlined_call_operand.vmem [shape: f32[1,128], index: 2, kind: input, shape index: {}]
  %s3 = inlined_call_operand.hbm [shape: bf16[128,128], index: 3, kind: input, shape index: {}]
  %s4 = inlined_call_operand.vmem [shape: f32[1,128], index: 4, kind: input, shape index: {}]
  %s5 = inlined_call_operand.vmem [shape: bf16[3,3,128,128], index: 5, kind: input, shape index: {}]
  %s6 = inlined_call_operand.vmem [shape: f32[1,128], index: 6, kind: input, shape index: {}]
  %s7 = inlined_call_operand.hbm [shape: bf16[128,128], index: 7, kind: input, shape index: {}]
  %s8 = inlined_call_operand.vmem [shape: f32[1,128], index: 8, kind: input, shape index: {}]
  %s9 = inlined_call_operand.vmem [shape: bf16[256,128], index: 9, kind: input, shape index: {}]
  %s10 = inlined_call_operand.vmem [shape: f32[1,128], index: 10, kind: input, shape index: {}]
  %s11 = inlined_call_operand.vmem [shape: f32[2,16,16,8], index: 11, kind: output, shape index: {}]
  %s12 = sld [smem:[#allocation0]]
  $region85: #{c3block_forward.1} parent=0
    _
  %s14 = ssub.s32 1, %s12
  %s15 = scalar_select 0, %s14, %s12
  $region1: #{c3block_forward.1} parent=0
    #allocation2 [shape = 'u8[32768]{0}', space=vmem, size = 0x8000, scoped, tag = 'input window, operand 3, single buffered']
    #allocation3 [shape = 's32[2]{0}', space=sflag, size = 0x8, scoped, tag = 'scoped memory for c3block_forward.1']
    #allocation4 [shape = 'u8[32768]{0}', space=vmem, size = 0x8000, scoped, tag = 'input window, operand 7, single buffered']
    #allocation5 [shape = 's32[1]{0}', space=sflag, size = 0x4, scoped, tag = 'scoped memory for c3block_forward.1']
    %16 = vsyncpa [#allocation3], 0
    %17 = vsyncpa [#allocation5], 0
    loop: start=0, step=1, limit=4
    $region2: #{c3block_forward.1} parent=1 // loop_pre_header
      _
    $region3: #{c3block_forward.1} parent=1 // loop_header
      %s19 = sphi 0, %s23
      %p20 = scmp.ge.s32.totalorder %s19, 4
      %s29 = sphi 0, %s31
      %s32 = sphi 0, %s29
      %s33 = sphi 0, %s32
      %s49 = sphi 0, %s33
      %s53 = sphi 0, %s53
      %s55 = sphi 0, %s53
      %s56 = sphi 0, %s55
      %s70 = sphi 0, %s56
      %s74 = sphi 0, %s74
      %s76 = sphi 0, %s74
      %s77 = sphi 0, %s76
      %s91 = sphi 0, %s77
      %s95 = sphi 0, %s95
      %s97 = sphi 0, %s95
      %s98 = sphi 0, %s97
      %s112 = sphi 0, %s98
      %s116 = sphi 0, %s116
      %s118 = sphi 0, %s116
      %s119 = sphi 0, %s118
      %s133 = sphi 0, %s119
      %s137 = sphi 0, %s137
      %s139 = sphi 0, %s137
      %s140 = sphi 0, %s139
      %s154 = sphi 0, %s140
      %s158 = sphi 0, %s158
      %s160 = sphi 0, %s158
      %s161 = sphi 0, %s160
      %s175 = sphi 0, %s161
      %s179 = sphi 0, %s179
      %s181 = sphi 0, %s179
      %s182 = sphi 0, %s181
      %s196 = sphi 0, %s182
      %s200 = sphi 0, %s200
      %s202 = sphi 0, %s200
      %s203 = sphi 0, %s202
      %s217 = sphi 0, %s203
      %s221 = sphi 0, %s221
      %s223 = sphi 0, %s221
      %s224 = sphi 0, %s223
      %s238 = sphi 0, %s224
      %s242 = sphi 0, %s242
      %s244 = sphi 0, %s242
      %s245 = sphi 0, %s244
      %s259 = sphi 0, %s245
      %s265 = sphi 0, %s267
      %s268 = sphi 0, %s265
      %s269 = sphi 0, %s268
      %s285 = sphi 0, %s269
    $region4: #{c3block_forward.1} parent=1 // loop_header_branch
      %22 = sbr.rel (%p20) target = $region8
    $region5: #{c3block_forward.1} parent=1 // loop_body
      %s24 = ssub.s32 %s19, 1
      %s25 = ssub.s32 %s19, 2
      %s26 = sadd.s32 %s19, 1
      %s27 = ssub.s32 %s19, %s26
      %p28 = scmp.eq.s32.totalorder %s27, 0
      %s30 = sadd.s32 %s29, 1
      %s31 = scalar_select %p28, %s29, %s30
      %p34 = pneg %p28
      %p35 = scmp.eq.s32.totalorder %s19, 1
      %p36 = por %p34, %p35
      %p37 = scmp.ne.s32.totalorder %s29, %s32
      %p38 = scmp.eq.s32.totalorder %s19, 0
      %p39 = por %p37, %p38
      %p40 = scmp.ne.s32.totalorder %s29, %s32
      %p41 = scmp.eq.s32.totalorder %s24, 1
      %p42 = por %p40, %p41
      %p43 = scmp.ne.s32.totalorder %s32, %s33
      %p44 = scmp.eq.s32.totalorder %s24, 0
      %p45 = por %p43, %p44
      %p46 = scmp.ne.s32.totalorder %s32, %s33
      %p47 = scmp.eq.s32.totalorder %s25, 1
      %p48 = por %p46, %p47
      %p50 = scmp.ne.s32.totalorder %s33, %s49
      %p51 = scmp.eq.s32.totalorder %s25, 0
      %p52 = por %p50, %p51
      %s54 = sadd.s32 %s53, 1
      %p57 = scmp.eq.s32.totalorder %s19, 1
      %p58 = scmp.ne.s32.totalorder %s53, %s55
      %p59 = scmp.eq.s32.totalorder %s19, 0
      %p60 = por %p58, %p59
      %p61 = scmp.ne.s32.totalorder %s53, %s55
      %p62 = scmp.eq.s32.totalorder %s24, 1
      %p63 = por %p61, %p62
      %p64 = scmp.ne.s32.totalorder %s55, %s56
      %p65 = scmp.eq.s32.totalorder %s24, 0
      %p66 = por %p64, %p65
      %p67 = scmp.ne.s32.totalorder %s55, %s56
      %p68 = scmp.eq.s32.totalorder %s25, 1
      %p69 = por %p67, %p68
      %p71 = scmp.ne.s32.totalorder %s56, %s70
      %p72 = scmp.eq.s32.totalorder %s25, 0
      %p73 = por %p71, %p72
      %s75 = sadd.s32 %s74, 1
      %p78 = scmp.eq.s32.totalorder %s19, 1
      %p79 = scmp.ne.s32.totalorder %s74, %s76
      %p80 = scmp.eq.s32.totalorder %s19, 0
      %p81 = por %p79, %p80
      %p82 = scmp.ne.s32.totalorder %s74, %s76
      %p83 = scmp.eq.s32.totalorder %s24, 1
      %p84 = por %p82, %p83
      %p85 = scmp.ne.s32.totalorder %s76, %s77
      %p86 = scmp.eq.s32.totalorder %s24, 0
      %p87 = por %p85, %p86
      %p88 = scmp.ne.s32.totalorder %s76, %s77
      %p89 = scmp.eq.s32.totalorder %s25, 1
      %p90 = por %p88, %p89
      %p92 = scmp.ne.s32.totalorder %s77, %s91
      %p93 = scmp.eq.s32.totalorder %s25, 0
      %p94 = por %p92, %p93
      %s96 = sadd.s32 %s95, 1
      %p99 = scmp.eq.s32.totalorder %s19, 1
      %p100 = scmp.ne.s32.totalorder %s95, %s97
      %p101 = scmp.eq.s32.totalorder %s19, 0
      %p102 = por %p100, %p101
      %p103 = scmp.ne.s32.totalorder %s95, %s97
      %p104 = scmp.eq.s32.totalorder %s24, 1
      %p105 = por %p103, %p104
      %p106 = scmp.ne.s32.totalorder %s97, %s98
      %p107 = scmp.eq.s32.totalorder %s24, 0
      %p108 = por %p106, %p107
      %p109 = scmp.ne.s32.totalorder %s97, %s98
      %p110 = scmp.eq.s32.totalorder %s25, 1
      %p111 = por %p109, %p110
      %p113 = scmp.ne.s32.totalorder %s98, %s112
      %p114 = scmp.eq.s32.totalorder %s25, 0
      %p115 = por %p113, %p114
      %s117 = sadd.s32 %s116, 1
      %p120 = scmp.eq.s32.totalorder %s19, 1
      %p121 = scmp.ne.s32.totalorder %s116, %s118
      %p122 = scmp.eq.s32.totalorder %s19, 0
      %p123 = por %p121, %p122
      %p124 = scmp.ne.s32.totalorder %s116, %s118
      %p125 = scmp.eq.s32.totalorder %s24, 1
      %p126 = por %p124, %p125
      %p127 = scmp.ne.s32.totalorder %s118, %s119
      %p128 = scmp.eq.s32.totalorder %s24, 0
      %p129 = por %p127, %p128
      %p130 = scmp.ne.s32.totalorder %s118, %s119
      %p131 = scmp.eq.s32.totalorder %s25, 1
      %p132 = por %p130, %p131
      %p134 = scmp.ne.s32.totalorder %s119, %s133
      %p135 = scmp.eq.s32.totalorder %s25, 0
      %p136 = por %p134, %p135
      %s138 = sadd.s32 %s137, 1
      %p141 = scmp.eq.s32.totalorder %s19, 1
      %p142 = scmp.ne.s32.totalorder %s137, %s139
      %p143 = scmp.eq.s32.totalorder %s19, 0
      %p144 = por %p142, %p143
      %p145 = scmp.ne.s32.totalorder %s137, %s139
      %p146 = scmp.eq.s32.totalorder %s24, 1
      %p147 = por %p145, %p146
      %p148 = scmp.ne.s32.totalorder %s139, %s140
      %p149 = scmp.eq.s32.totalorder %s24, 0
      %p150 = por %p148, %p149
      %p151 = scmp.ne.s32.totalorder %s139, %s140
      %p152 = scmp.eq.s32.totalorder %s25, 1
      %p153 = por %p151, %p152
      %p155 = scmp.ne.s32.totalorder %s140, %s154
      %p156 = scmp.eq.s32.totalorder %s25, 0
      %p157 = por %p155, %p156
      %s159 = sadd.s32 %s158, 1
      %p162 = scmp.eq.s32.totalorder %s19, 1
      %p163 = scmp.ne.s32.totalorder %s158, %s160
      %p164 = scmp.eq.s32.totalorder %s19, 0
      %p165 = por %p163, %p164
      %p166 = scmp.ne.s32.totalorder %s158, %s160
      %p167 = scmp.eq.s32.totalorder %s24, 1
      %p168 = por %p166, %p167
      %p169 = scmp.ne.s32.totalorder %s160, %s161
      %p170 = scmp.eq.s32.totalorder %s24, 0
      %p171 = por %p169, %p170
      %p172 = scmp.ne.s32.totalorder %s160, %s161
      %p173 = scmp.eq.s32.totalorder %s25, 1
      %p174 = por %p172, %p173
      %p176 = scmp.ne.s32.totalorder %s161, %s175
      %p177 = scmp.eq.s32.totalorder %s25, 0
      %p178 = por %p176, %p177
      %s180 = sadd.s32 %s179, 1
      %p183 = scmp.eq.s32.totalorder %s19, 1
      %p184 = scmp.ne.s32.totalorder %s179, %s181
      %p185 = scmp.eq.s32.totalorder %s19, 0
      %p186 = por %p184, %p185
      %p187 = scmp.ne.s32.totalorder %s179, %s181
      %p188 = scmp.eq.s32.totalorder %s24, 1
      %p189 = por %p187, %p188
      %p190 = scmp.ne.s32.totalorder %s181, %s182
      %p191 = scmp.eq.s32.totalorder %s24, 0
      %p192 = por %p190, %p191
      %p193 = scmp.ne.s32.totalorder %s181, %s182
      %p194 = scmp.eq.s32.totalorder %s25, 1
      %p195 = por %p193, %p194
      %p197 = scmp.ne.s32.totalorder %s182, %s196
      %p198 = scmp.eq.s32.totalorder %s25, 0
      %p199 = por %p197, %p198
      %s201 = sadd.s32 %s200, 1
      %p204 = scmp.eq.s32.totalorder %s19, 1
      %p205 = scmp.ne.s32.totalorder %s200, %s202
      %p206 = scmp.eq.s32.totalorder %s19, 0
      %p207 = por %p205, %p206
      %p208 = scmp.ne.s32.totalorder %s200, %s202
      %p209 = scmp.eq.s32.totalorder %s24, 1
      %p210 = por %p208, %p209
      %p211 = scmp.ne.s32.totalorder %s202, %s203
      %p212 = scmp.eq.s32.totalorder %s24, 0
      %p213 = por %p211, %p212
      %p214 = scmp.ne.s32.totalorder %s202, %s203
      %p215 = scmp.eq.s32.totalorder %s25, 1
      %p216 = por %p214, %p215
      %p218 = scmp.ne.s32.totalorder %s203, %s217
      %p219 = scmp.eq.s32.totalorder %s25, 0
      %p220 = por %p218, %p219
      %s222 = sadd.s32 %s221, 1
      %p225 = scmp.eq.s32.totalorder %s19, 1
      %p226 = scmp.ne.s32.totalorder %s221, %s223
      %p227 = scmp.eq.s32.totalorder %s19, 0
      %p228 = por %p226, %p227
      %p229 = scmp.ne.s32.totalorder %s221, %s223
      %p230 = scmp.eq.s32.totalorder %s24, 1
      %p231 = por %p229, %p230
      %p232 = scmp.ne.s32.totalorder %s223, %s224
      %p233 = scmp.eq.s32.totalorder %s24, 0
      %p234 = por %p232, %p233
      %p235 = scmp.ne.s32.totalorder %s223, %s224
      %p236 = scmp.eq.s32.totalorder %s25, 1
      %p237 = por %p235, %p236
      %p239 = scmp.ne.s32.totalorder %s224, %s238
      %p240 = scmp.eq.s32.totalorder %s25, 0
      %p241 = por %p239, %p240
      %s243 = sadd.s32 %s242, 1
      %p246 = scmp.eq.s32.totalorder %s19, 1
      %p247 = scmp.ne.s32.totalorder %s242, %s244
      %p248 = scmp.eq.s32.totalorder %s19, 0
      %p249 = por %p247, %p248
      %p250 = scmp.ne.s32.totalorder %s242, %s244
      %p251 = scmp.eq.s32.totalorder %s24, 1
      %p252 = por %p250, %p251
      %p253 = scmp.ne.s32.totalorder %s244, %s245
      %p254 = scmp.eq.s32.totalorder %s24, 0
      %p255 = por %p253, %p254
      %p256 = scmp.ne.s32.totalorder %s244, %s245
      %p257 = scmp.eq.s32.totalorder %s25, 1
      %p258 = por %p256, %p257
      %p260 = scmp.ne.s32.totalorder %s245, %s259
      %p261 = scmp.eq.s32.totalorder %s25, 0
      %p262 = por %p260, %p261
      %s263 = ssub.s32 %s19, %s26
      %p264 = scmp.eq.s32.totalorder %s263, 0
      %s266 = sadd.s32 %s265, 1
      %s267 = scalar_select %p264, %s265, %s266
      %p270 = pneg %p264
      %p271 = scmp.eq.s32.totalorder %s19, 1
      %p272 = por %p270, %p271
      %p273 = scmp.ne.s32.totalorder %s265, %s268
      %p274 = scmp.eq.s32.totalorder %s19, 0
      %p275 = por %p273, %p274
      %p276 = scmp.ne.s32.totalorder %s265, %s268
      %p277 = scmp.eq.s32.totalorder %s24, 1
      %p278 = por %p276, %p277
      %p279 = scmp.ne.s32.totalorder %s268, %s269
      %p280 = scmp.eq.s32.totalorder %s24, 0
      %p281 = por %p279, %p280
      %p282 = scmp.ne.s32.totalorder %s268, %s269
      %p283 = scmp.eq.s32.totalorder %s25, 1
      %p284 = por %p282, %p283
      %p286 = scmp.ne.s32.totalorder %s269, %s285
      %p287 = scmp.eq.s32.totalorder %s25, 0
      %p288 = por %p286, %p287
      %p289 = scmp.le.s32.totalorder 1, %s19
      %p290 = scmp.lt.s32.totalorder %s19, 3
      %p291 = pnand %p289, %p290
      %p292 = pneg %p291
      // Predicated region
      $region9: #{c3block_forward.1} parent=5 // pred_check
        _
      $region10: #{c3block_forward.1} parent=5 // pred_check_branch
        %294 = sbr.rel (%p291) target = $region12
      $region11: #{c3block_forward.1} parent=5 // pred_region
        %s295 = ssub.s32 %s19, 1
        // Predicated region
        $region13: #{c3block_forward.1} parent=11 // pred_check
          %p296 = pneg %p66
        $region14: #{c3block_forward.1} parent=11 // pred_check_branch
          %298 = sbr.rel (%p296) target = $region16
        $region15: #{c3block_forward.1} parent=11 // pred_region
          _
        $region16: #{c3block_forward.1} parent=11 // pred_fallthru
          _
        // Predicated region
        $region17: #{c3block_forward.1} parent=11 // pred_check
          %p299 = pneg %p87
        $region18: #{c3block_forward.1} parent=11 // pred_check_branch
          %301 = sbr.rel (%p299) target = $region20
        $region19: #{c3block_forward.1} parent=11 // pred_region
          _
        $region20: #{c3block_forward.1} parent=11 // pred_fallthru
          _
        // Predicated region
        $region21: #{c3block_forward.1} parent=11 // pred_check
          %p302 = pneg %p108
        $region22: #{c3block_forward.1} parent=11 // pred_check_branch
          %304 = sbr.rel (%p302) target = $region24
        $region23: #{c3block_forward.1} parent=11 // pred_region
          %s306 = ssub.s32 1024, 1024
          %307 = vsyncadd [#allocation3], %s306
          %s308 = sshll.u32 [#allocation2], 4
          %s309 = int_to_ptr.vmem [resolvable:$true] %s308
          %314 = dma.hbm_to_vmem [thread:$0]  %s3, 1024, %s309, [#allocation3], 64, 64, 4
        $region24: #{c3block_forward.1} parent=11 // pred_fallthru
          _
        // Predicated region
        $region25: #{c3block_forward.1} parent=11 // pred_check
          %p315 = pneg %p129
        $region26: #{c3block_forward.1} parent=11 // pred_check_branch
          %317 = sbr.rel (%p315) target = $region28
        $region27: #{c3block_forward.1} parent=11 // pred_region
          _
        $region28: #{c3block_forward.1} parent=11 // pred_fallthru
          _
        // Predicated region
        $region29: #{c3block_forward.1} parent=11 // pred_check
          %p318 = pneg %p150
        $region30: #{c3block_forward.1} parent=11 // pred_check_branch
          %320 = sbr.rel (%p318) target = $region32
        $region31: #{c3block_forward.1} parent=11 // pred_region
          _
        $region32: #{c3block_forward.1} parent=11 // pred_fallthru
          _
        // Predicated region
        $region33: #{c3block_forward.1} parent=11 // pred_check
          %p321 = pneg %p171
        $region34: #{c3block_forward.1} parent=11 // pred_check_branch
          %323 = sbr.rel (%p321) target = $region36
        $region35: #{c3block_forward.1} parent=11 // pred_region
          _
        $region36: #{c3block_forward.1} parent=11 // pred_fallthru
          _
        // Predicated region
        $region37: #{c3block_forward.1} parent=11 // pred_check
          %p324 = pneg %p192
        $region38: #{c3block_forward.1} parent=11 // pred_check_branch
          %326 = sbr.rel (%p324) target = $region40
        $region39: #{c3block_forward.1} parent=11 // pred_region
          %s328 = ssub.s32 1024, 1024
          %329 = vsyncadd [#allocation5], %s328
          %s330 = sshll.u32 [#allocation4], 4
          %s331 = int_to_ptr.vmem [resolvable:$true] %s330
          %336 = dma.hbm_to_vmem [thread:$0]  %s7, 1024, %s331, [#allocation5], 64, 64, 4
        $region40: #{c3block_forward.1} parent=11 // pred_fallthru
          _
        // Predicated region
        $region41: #{c3block_forward.1} parent=11 // pred_check
          %p337 = pneg %p213
        $region42: #{c3block_forward.1} parent=11 // pred_check_branch
          %339 = sbr.rel (%p337) target = $region44
        $region43: #{c3block_forward.1} parent=11 // pred_region
          _
        $region44: #{c3block_forward.1} parent=11 // pred_fallthru
          _
        // Predicated region
        $region45: #{c3block_forward.1} parent=11 // pred_check
          %p340 = pneg %p234
        $region46: #{c3block_forward.1} parent=11 // pred_check_branch
          %342 = sbr.rel (%p340) target = $region48
        $region47: #{c3block_forward.1} parent=11 // pred_region
          _
        $region48: #{c3block_forward.1} parent=11 // pred_fallthru
          _
        // Predicated region
        $region49: #{c3block_forward.1} parent=11 // pred_check
          %p343 = pneg %p255
        $region50: #{c3block_forward.1} parent=11 // pred_check_branch
          %345 = sbr.rel (%p343) target = $region52
        $region51: #{c3block_forward.1} parent=11 // pred_region
          _
        $region52: #{c3block_forward.1} parent=11 // pred_fallthru
          _
      $region12: #{c3block_forward.1} parent=5 // pred_fallthru
        _
      %p346 = scmp.lt.s32.totalorder %s19, 2
      // Predicated region
      $region53: #{c3block_forward.1} parent=5 // pred_check
        %p347 = pneg %p346
      $region54: #{c3block_forward.1} parent=5 // pred_check_branch
        %349 = sbr.rel (%p347) target = $region56
      $region55: #{c3block_forward.1} parent=5 // pred_region
        // Predicated region
        $region57: #{c3block_forward.1} parent=55 // pred_check
          %p350 = pneg %p39
        $region58: #{c3block_forward.1} parent=55 // pred_check_branch
          %352 = sbr.rel (%p350) target = $region60
        $region59: #{c3block_forward.1} parent=55 // pred_region
          %p353 = scmp.lt.s32.totalorder %s19, 1
          %s354 = scalar_select %p353, %s19, 1
          %s355 = smul.addr %s354, 32
          %s356 = smul.addr %s355, 8
          %s357 = scalar_lea.vmem %s0, %s356
        $region60: #{c3block_forward.1} parent=55 // pred_fallthru
          _
      $region56: #{c3block_forward.1} parent=5 // pred_fallthru
        _
      %p358 = scmp.le.s32.totalorder 1, %s19
      %p359 = scmp.lt.s32.totalorder %s19, 3
      %p360 = pnand %p358, %p359
      %p361 = pneg %p360
      // Predicated region
      $region61: #{c3block_forward.1} parent=5 // pred_check
        _
      $region62: #{c3block_forward.1} parent=5 // pred_check_branch
        %363 = sbr.rel (%p360) target = $region64
      $region63: #{c3block_forward.1} parent=5 // pred_region
        %s364 = ssub.s32 %s19, 1
        // Predicated region
        $region65: #{c3block_forward.1} parent=63 // pred_check
          %p365 = pneg %p108
        $region66: #{c3block_forward.1} parent=63 // pred_check_branch
          %367 = sbr.rel (%p365) target = $region68
        $region67: #{c3block_forward.1} parent=63 // pred_region
          %368 = dma.done [#allocation3], 1024
        $region68: #{c3block_forward.1} parent=63 // pred_fallthru
          _
        // Predicated region
        $region69: #{c3block_forward.1} parent=63 // pred_check
          %p369 = pneg %p192
        $region70: #{c3block_forward.1} parent=63 // pred_check_branch
          %371 = sbr.rel (%p369) target = $region72
        $region71: #{c3block_forward.1} parent=63 // pred_region
          %372 = dma.done [#allocation5], 1024
        $region72: #{c3block_forward.1} parent=63 // pred_fallthru
          _
        %p373 = scmp.lt.s32.totalorder %s24, 1
        %s374 = scalar_select %p373, %s24, 1
        %s375 = smul.addr %s374, 32
        %s376 = smul.addr %s375, 8
        %s377 = scalar_lea.vmem %s0, %s376
        %p378 = pneg %p45
        %p379 = pneg %p42
        %p380 = pneg %p66
        %p381 = pneg %p63
        %p382 = pneg %p87
        %p383 = pneg %p84
        %p384 = pneg %p108
        %p385 = pneg %p105
        %p386 = pneg %p129
        %p387 = pneg %p126
        %p388 = pneg %p150
        %p389 = pneg %p147
        %p390 = pneg %p171
        %p391 = pneg %p168
        %p392 = pneg %p192
        %p393 = pneg %p189
        %p394 = pneg %p213
        %p395 = pneg %p210
        %p396 = pneg %p234
        %p397 = pneg %p231
        %p398 = pneg %p255
        %p399 = pneg %p252
        %p400 = pneg %p281
        %p401 = pneg %p278
        %p402 = scmp.lt.s32.totalorder %s24, 1
        %s403 = scalar_select %p402, %s24, 1
        %s404 = smul.addr %s403, 32
        %s405 = smul.addr %s404, 8
        %s406 = scalar_lea.vmem %s11, %s405
        %p407 = scmp.lt.s32.totalorder %s24, 1
        %s408 = scalar_select %p407, %s24, 1
        %s409 = smul.addr %s408, 32
        %s410 = smul.addr %s409, 8
        %s411 = scalar_lea.vmem %s0, %s410
        %p412 = scmp.lt.s32.totalorder %s24, 1
        %s413 = scalar_select %p412, %s24, 1
        %s414 = smul.addr %s413, 32
        %s415 = smul.addr %s414, 8
        %s416 = scalar_lea.vmem %s11, %s415
        %v418 = vld [vmem:[%s411] sm:$0xff]
        %v419 = vld [vmem:[%s411 + $0x8] sm:$0xff]
        %v420 = vld [vmem:[%s411 + $0x10] sm:$0xff]
        %v421 = vld [vmem:[%s411 + $0x18] sm:$0xff]
        %v422 = vld [vmem:[%s411 + $0x20] sm:$0xff]
        %v423 = vld [vmem:[%s411 + $0x28] sm:$0xff]
        %v424 = vld [vmem:[%s411 + $0x30] sm:$0xff]
        %v425 = vld [vmem:[%s411 + $0x38] sm:$0xff]
        %v426 = vld [vmem:[%s411 + $0x40] sm:$0xff]
        %v427 = vld [vmem:[%s411 + $0x48] sm:$0xff]
        %v428 = vld [vmem:[%s411 + $0x50] sm:$0xff]
        %v429 = vld [vmem:[%s411 + $0x58] sm:$0xff]
        %v430 = vld [vmem:[%s411 + $0x60] sm:$0xff]
        %v431 = vld [vmem:[%s411 + $0x68] sm:$0xff]
        %v432 = vld [vmem:[%s411 + $0x70] sm:$0xff]
        %v433 = vld [vmem:[%s411 + $0x78] sm:$0xff]
        %v434 = vld [vmem:[%s411 + $0x80] sm:$0xff]
        %v435 = vld [vmem:[%s411 + $0x88] sm:$0xff]
        %v436 = vld [vmem:[%s411 + $0x90] sm:$0xff]
        %v437 = vld [vmem:[%s411 + $0x98] sm:$0xff]
        %v438 = vld [vmem:[%s411 + $0xa0] sm:$0xff]
        %v439 = vld [vmem:[%s411 + $0xa8] sm:$0xff]
        %v440 = vld [vmem:[%s411 + $0xb0] sm:$0xff]
        %v441 = vld [vmem:[%s411 + $0xb8] sm:$0xff]
        %v442 = vld [vmem:[%s411 + $0xc0] sm:$0xff]
        %v443 = vld [vmem:[%s411 + $0xc8] sm:$0xff]
        %v444 = vld [vmem:[%s411 + $0xd0] sm:$0xff]
        %v445 = vld [vmem:[%s411 + $0xd8] sm:$0xff]
        %v446 = vld [vmem:[%s411 + $0xe0] sm:$0xff]
        %v447 = vld [vmem:[%s411 + $0xe8] sm:$0xff]
        %v448 = vld [vmem:[%s411 + $0xf0] sm:$0xff]
        %v449 = vld [vmem:[%s411 + $0xf8] sm:$0xff]
        %vm450 = vcmask 64512
        %v451 = vsel %vm450, %v418, 0.0
        %v452 = vsel %vm450, %v419, 0.0
        %v453 = vsel %vm450, %v420, 0.0
        %v454 = vsel %vm450, %v421, 0.0
        %v455 = vsel %vm450, %v422, 0.0
        %v456 = vsel %vm450, %v423, 0.0
        %v457 = vsel %vm450, %v424, 0.0
        %v458 = vsel %vm450, %v425, 0.0
        %v459 = vsel %vm450, %v426, 0.0
        %v460 = vsel %vm450, %v427, 0.0
        %v461 = vsel %vm450, %v428, 0.0
        %v462 = vsel %vm450, %v429, 0.0
        %v463 = vsel %vm450, %v430, 0.0
        %v464 = vsel %vm450, %v431, 0.0
        %v465 = vsel %vm450, %v432, 0.0
        %v466 = vsel %vm450, %v433, 0.0
        %v467 = vsel %vm450, %v434, 0.0
        %v468 = vsel %vm450, %v435, 0.0
        %v469 = vsel %vm450, %v436, 0.0
        %v470 = vsel %vm450, %v437, 0.0
        %v471 = vsel %vm450, %v438, 0.0
        %v472 = vsel %vm450, %v439, 0.0
        %v473 = vsel %vm450, %v440, 0.0
        %v474 = vsel %vm450, %v441, 0.0
        %v475 = vsel %vm450, %v442, 0.0
        %v476 = vsel %vm450, %v443, 0.0
        %v477 = vsel %vm450, %v444, 0.0
        %v478 = vsel %vm450, %v445, 0.0
        %v479 = vsel %vm450, %v446, 0.0
        %v480 = vsel %vm450, %v447, 0.0
        %v481 = vsel %vm450, %v448, 0.0
        %v482 = vsel %vm450, %v449, 0.0
        %v483 = vpack.c.bf16 %v452, %v451
        %v484 = vpack.c.bf16 %v454, %v453
        %v485 = vpack.c.bf16 %v456, %v455
        %v486 = vpack.c.bf16 %v458, %v457
        %v487 = vpack.c.bf16 %v460, %v459
        %v488 = vpack.c.bf16 %v462, %v461
        %v489 = vpack.c.bf16 %v464, %v463
        %v490 = vpack.c.bf16 %v466, %v465
        %v491 = vpack.c.bf16 %v468, %v467
        %v492 = vpack.c.bf16 %v470, %v469
        %v493 = vpack.c.bf16 %v472, %v471
        %v494 = vpack.c.bf16 %v474, %v473
        %v495 = vpack.c.bf16 %v476, %v475
        %v496 = vpack.c.bf16 %v478, %v477
        %v497 = vpack.c.bf16 %v480, %v479
        %v498 = vpack.c.bf16 %v482, %v481
        %v499 = vld [vmem:[%s1] sm:$0xf]
        %v500 = vld [vmem:[%s1 + $0x4] sm:$0xf]
        %v501 = vld [vmem:[%s1 + $0x8] sm:$0xf]
        %v502 = vld [vmem:[%s1 + $0xc] sm:$0xf]
        %v503 = vld [vmem:[%s1 + $0x10] sm:$0xf]
        %v504 = vld [vmem:[%s1 + $0x14] sm:$0xf]
        %v505 = vld [vmem:[%s1 + $0x18] sm:$0xf]
        %v506 = vld [vmem:[%s1 + $0x1c] sm:$0xf]
        %v507 = vld [vmem:[%s1 + $0x20] sm:$0xf]
        %v508 = vld [vmem:[%s1 + $0x24] sm:$0xf]
        %v509 = vld [vmem:[%s1 + $0x28] sm:$0xf]
        %v510 = vld [vmem:[%s1 + $0x2c] sm:$0xf]
        %v511 = vld [vmem:[%s1 + $0x30] sm:$0xf]
        %v512 = vld [vmem:[%s1 + $0x34] sm:$0xf]
        %v513 = vld [vmem:[%s1 + $0x38] sm:$0xf]
        %v514 = vld [vmem:[%s1 + $0x3c] sm:$0xf]
        %v515 = vld [vmem:[%s2] sm:$0x1]
        %v517 = vlaneseq
        %v518 = vshrl.u32 %v517, 7
        %v519 = vsub.s32 0, %v518
        %v520 = vrot.slane %v515, %v519
        %v538 = vunpack.c.l.b16 %v499
        %v539 = vunpack.c.l.b16 %v500
        %v540 = vunpack.c.l.b16 %v501
        %v541 = vunpack.c.l.b16 %v502
        %v542 = vunpack.c.l.b16 %v503
        %v543 = vunpack.c.l.b16 %v504
        %v544 = vunpack.c.l.b16 %v505
        %v545 = vunpack.c.l.b16 %v506
        %v546 = vunpack.c.l.b16 %v507
        %v547 = vunpack.c.l.b16 %v508
        %v548 = vunpack.c.l.b16 %v509
        %v549 = vunpack.c.l.b16 %v510
        %v550 = vunpack.c.l.b16 %v511
        %v551 = vunpack.c.l.b16 %v512
        %v552 = vunpack.c.l.b16 %v513
        %v553 = vunpack.c.l.b16 %v514
        %v554 = vpack.c.b16 %v539, %v538
        %v555 = vpack.c.b16 %v541, %v540
        %v556 = vpack.c.b16 %v543, %v542
        %v557 = vpack.c.b16 %v545, %v544
        %v558 = vpack.c.b16 %v547, %v546
        %v559 = vpack.c.b16 %v549, %v548
        %v560 = vpack.c.b16 %v551, %v550
        %v561 = vpack.c.b16 %v553, %v552
        %570 = vmatprep.subr.bf16.mxu0 0
        %571 = vmatpush1.bf16.msra.mxu0 %v561
        %572 = vmatprep.subr.bf16.mxu0 0
        %573 = vmatpush1.bf16.msra.mxu0 %v560
        %574 = vmatprep.subr.bf16.mxu0 0
        %575 = vmatpush1.bf16.msra.mxu0 %v559
        %576 = vmatprep.subr.bf16.mxu0 0
        %577 = vmatpush1.bf16.msra.mxu0 %v558
        %578 = vmatprep.subr.bf16.mxu0 0
        %579 = vmatpush1.bf16.msra.mxu0 %v557
        %580 = vmatprep.subr.bf16.mxu0 0
        %581 = vmatpush1.bf16.msra.mxu0 %v556
        %582 = vmatprep.subr.bf16.mxu0 0
        %583 = vmatpush1.bf16.msra.mxu0 %v555
        %584 = vmatprep.subr.bf16.mxu0 0
        %585 = vmatpush1.bf16.msra.mxu0 %v554
        %586 = vmatprep.subr.bf16.mxu0 0
        %587 = vmatpush2.bf16.msra.mxu0 0
        %588 = vmatprep.subr.bf16.mxu0 0
        %589 = vmatpush2.bf16.msra.mxu0 0
        %590 = vmatprep.subr.bf16.mxu0 0
        %591 = vmatpush2.bf16.msra.mxu0 0
        %592 = vmatprep.subr.bf16.mxu0 0
        %593 = vmatpush2.bf16.msra.mxu0 0
        %594 = vmatprep.subr.bf16.mxu0 0
        %595 = vmatpush2.bf16.msra.mxu0 0
        %596 = vmatprep.subr.bf16.mxu0 0
        %597 = vmatpush2.bf16.msra.mxu0 0
        %598 = vmatprep.subr.bf16.mxu0 0
        %599 = vmatpush2.bf16.msra.mxu0 0
        %600 = vmatprep.subr.bf16.mxu0 0
        %601 = vmatpush2.bf16.msra.mxu0 0
        %602 = vmatprep.mubr.bf16.mxu0 0
        %603 = vmatmul.mubr.bf16.gmra.mxu0 %v483
        %v604 = vpop.f32.mrf.mxu0
        %v605 = vadd.f32 %v520, %v604
        %v606 = vpop.f32.mrf.mxu0
        %v607 = vpop.f32.mrf.mxu0
        %v608 = vadd.f32 %v520, %v607
        %v609 = vpop.f32.mrf.mxu0
        %610 = vmatprep.mubr.bf16.mxu0 0
        %611 = vmatmul.mubr.bf16.gmra.mxu0 %v484
        %v612 = vpop.f32.mrf.mxu0
        %v613 = vadd.f32 %v520, %v612
        %v614 = vpop.f32.mrf.mxu0
        %v615 = vpop.f32.mrf.mxu0
        %v616 = vadd.f32 %v520, %v615
        %v617 = vpop.f32.mrf.mxu0
        %618 = vmatprep.mubr.bf16.mxu0 0
        %619 = vmatmul.mubr.bf16.gmra.mxu0 %v485
        %v620 = vpop.f32.mrf.mxu0
        %v621 = vadd.f32 %v520, %v620
        %v622 = vpop.f32.mrf.mxu0
        %v623 = vpop.f32.mrf.mxu0
        %v624 = vadd.f32 %v520, %v623
        %v625 = vpop.f32.mrf.mxu0
        %626 = vmatprep.mubr.bf16.mxu0 0
        %627 = vmatmul.mubr.bf16.gmra.mxu0 %v486
        %v628 = vpop.f32.mrf.mxu0
        %v629 = vadd.f32 %v520, %v628
        %v630 = vpop.f32.mrf.mxu0
        %v631 = vpop.f32.mrf.mxu0
        %v632 = vadd.f32 %v520, %v631
        %v633 = vpop.f32.mrf.mxu0
        %634 = vmatprep.mubr.bf16.mxu0 0
        %635 = vmatmul.mubr.bf16.gmra.mxu0 %v487
        %v636 = vpop.f32.mrf.mxu0
        %v637 = vadd.f32 %v520, %v636
        %v638 = vpop.f32.mrf.mxu0
        %v639 = vpop.f32.mrf.mxu0
        %v640 = vadd.f32 %v520, %v639
        %v641 = vpop.f32.mrf.mxu0
        %642 = vmatprep.mubr.bf16.mxu0 0
        %643 = vmatmul.mubr.bf16.gmra.mxu0 %v488
        %v644 = vpop.f32.mrf.mxu0
        %v645 = vadd.f32 %v520, %v644
        %v646 = vpop.f32.mrf.mxu0
        %v647 = vpop.f32.mrf.mxu0
        %v648 = vadd.f32 %v520, %v647
        %v649 = vpop.f32.mrf.mxu0
        %650 = vmatprep.mubr.bf16.mxu0 0
        %651 = vmatmul.mubr.bf16.gmra.mxu0 %v489
        %v652 = vpop.f32.mrf.mxu0
        %v653 = vadd.f32 %v520, %v652
        %v654 = vpop.f32.mrf.mxu0
        %v655 = vpop.f32.mrf.mxu0
        %v656 = vadd.f32 %v520, %v655
        %v657 = vpop.f32.mrf.mxu0
        %658 = vmatprep.mubr.bf16.mxu0 0
        %659 = vmatmul.mubr.bf16.gmra.mxu0 %v490
        %v660 = vpop.f32.mrf.mxu0
        %v661 = vadd.f32 %v520, %v660
        %v662 = vpop.f32.mrf.mxu0
        %v663 = vpop.f32.mrf.mxu0
        %v664 = vadd.f32 %v520, %v663
        %v665 = vpop.f32.mrf.mxu0
        %666 = vmatprep.mubr.bf16.mxu0 0
        %667 = vmatmul.mubr.bf16.gmra.mxu0 %v491
        %v668 = vpop.f32.mrf.mxu0
        %v669 = vadd.f32 %v520, %v668
        %v670 = vpop.f32.mrf.mxu0
        %v671 = vpop.f32.mrf.mxu0
        %v672 = vadd.f32 %v520, %v671
        %v673 = vpop.f32.mrf.mxu0
        %674 = vmatprep.mubr.bf16.mxu0 0
        %675 = vmatmul.mubr.bf16.gmra.mxu0 %v492
        %v676 = vpop.f32.mrf.mxu0
        %v677 = vadd.f32 %v520, %v676
        %v678 = vpop.f32.mrf.mxu0
        %v679 = vpop.f32.mrf.mxu0
        %v680 = vadd.f32 %v520, %v679
        %v681 = vpop.f32.mrf.mxu0
        %682 = vmatprep.mubr.bf16.mxu0 0
        %683 = vmatmul.mubr.bf16.gmra.mxu0 %v493
        %v684 = vpop.f32.mrf.mxu0
        %v685 = vadd.f32 %v520, %v684
        %v686 = vpop.f32.mrf.mxu0
        %v687 = vpop.f32.mrf.mxu0
        %v688 = vadd.f32 %v520, %v687
        %v689 = vpop.f32.mrf.mxu0
        %690 = vmatprep.mubr.bf16.mxu0 0
        %691 = vmatmul.mubr.bf16.gmra.mxu0 %v494
        %v692 = vpop.f32.mrf.mxu0
        %v693 = vadd.f32 %v520, %v692
        %v694 = vpop.f32.mrf.mxu0
        %v695 = vpop.f32.mrf.mxu0
        %v696 = vadd.f32 %v520, %v695
        %v697 = vpop.f32.mrf.mxu0
        %698 = vmatprep.mubr.bf16.mxu0 0
        %699 = vmatmul.mubr.bf16.gmra.mxu0 %v495
        %v700 = vpop.f32.mrf.mxu0
        %v701 = vadd.f32 %v520, %v700
        %v702 = vpop.f32.mrf.mxu0
        %v703 = vpop.f32.mrf.mxu0
        %v704 = vadd.f32 %v520, %v703
        %v705 = vpop.f32.mrf.mxu0
        %706 = vmatprep.mubr.bf16.mxu0 0
        %707 = vmatmul.mubr.bf16.gmra.mxu0 %v496
        %v708 = vpop.f32.mrf.mxu0
        %v709 = vadd.f32 %v520, %v708
        %v710 = vpop.f32.mrf.mxu0
        %v711 = vpop.f32.mrf.mxu0
        %v712 = vadd.f32 %v520, %v711
        %v713 = vpop.f32.mrf.mxu0
        %714 = vmatprep.mubr.bf16.mxu0 0
        %715 = vmatmul.mubr.bf16.gmra.mxu0 %v497
        %v716 = vpop.f32.mrf.mxu0
        %v717 = vadd.f32 %v520, %v716
        %v718 = vpop.f32.mrf.mxu0
        %v719 = vpop.f32.mrf.mxu0
        %v720 = vadd.f32 %v520, %v719
        %v721 = vpop.f32.mrf.mxu0
        %722 = vmatprep.mubr.bf16.mxu0 0
        %723 = vmatmul.mubr.bf16.gmra.mxu0 %v498
        %v724 = vpop.f32.mrf.mxu0
        %v725 = vadd.f32 %v520, %v724
        %v726 = vpop.f32.mrf.mxu0
        %v727 = vpop.f32.mrf.mxu0
        %v728 = vadd.f32 %v520, %v727
        %v729 = vpop.f32.mrf.mxu0
        %730 = vdwg.mxu0
        %v731 = vsub.f32 0.0, %v605
        %v732 = vsub.f32 0.0, %v608
        %v733 = vsub.f32 0.0, %v613
        %v734 = vsub.f32 0.0, %v616
        %v735 = vsub.f32 0.0, %v621
        %v736 = vsub.f32 0.0, %v624
        %v737 = vsub.f32 0.0, %v629
        %v738 = vsub.f32 0.0, %v632
        %v739 = vsub.f32 0.0, %v637
        %v740 = vsub.f32 0.0, %v640
        %v741 = vsub.f32 0.0, %v645
        %v742 = vsub.f32 0.0, %v648
        %v743 = vsub.f32 0.0, %v653
        %v744 = vsub.f32 0.0, %v656
        %v745 = vsub.f32 0.0, %v661
        %v746 = vsub.f32 0.0, %v664
        %v747 = vsub.f32 0.0, %v669
        %v748 = vsub.f32 0.0, %v672
        %v749 = vsub.f32 0.0, %v677
        %v750 = vsub.f32 0.0, %v680
        %v751 = vsub.f32 0.0, %v685
        %v752 = vsub.f32 0.0, %v688
        %v753 = vsub.f32 0.0, %v693
        %v754 = vsub.f32 0.0, %v696
        %v755 = vsub.f32 0.0, %v701
        %v756 = vsub.f32 0.0, %v704
        %v757 = vsub.f32 0.0, %v709
        %v758 = vsub.f32 0.0, %v712
        %v759 = vsub.f32 0.0, %v717
        %v760 = vsub.f32 0.0, %v720
        %v761 = vsub.f32 0.0, %v725
        %v762 = vsub.f32 0.0, %v728
        %v763 = vmul.f32 %v731, 1.442695
        %v764 = vpow.pop %v763
        %v765 = vmul.f32 %v732, 1.442695
        %v766 = vpow.pop %v765
        %v767 = vmul.f32 %v733, 1.442695
        %v768 = vpow.pop %v767
        %v769 = vmul.f32 %v734, 1.442695
        %v770 = vpow.pop %v769
        %v771 = vmul.f32 %v735, 1.442695
        %v772 = vpow.pop %v771
        %v773 = vmul.f32 %v736, 1.442695
        %v774 = vpow.pop %v773
        %v775 = vmul.f32 %v737, 1.442695
        %v776 = vpow.pop %v775
        %v777 = vmul.f32 %v738, 1.442695
        %v778 = vpow.pop %v777
        %v779 = vmul.f32 %v739, 1.442695
        %v780 = vpow.pop %v779
        %v781 = vmul.f32 %v740, 1.442695
        %v782 = vpow.pop %v781
        %v783 = vmul.f32 %v741, 1.442695
        %v784 = vpow.pop %v783
        %v785 = vmul.f32 %v742, 1.442695
        %v786 = vpow.pop %v785
        %v787 = vmul.f32 %v743, 1.442695
        %v788 = vpow.pop %v787
        %v789 = vmul.f32 %v744, 1.442695
        %v790 = vpow.pop %v789
        %v791 = vmul.f32 %v745, 1.442695
        %v792 = vpow.pop %v791
        %v793 = vmul.f32 %v746, 1.442695
        %v794 = vpow.pop %v793
        %v795 = vmul.f32 %v747, 1.442695
        %v796 = vpow.pop %v795
        %v797 = vmul.f32 %v748, 1.442695
        %v798 = vpow.pop %v797
        %v799 = vmul.f32 %v749, 1.442695
        %v800 = vpow.pop %v799
        %v801 = vmul.f32 %v750, 1.442695
        %v802 = vpow.pop %v801
        %v803 = vmul.f32 %v751, 1.442695
        %v804 = vpow.pop %v803
        %v805 = vmul.f32 %v752, 1.442695
        %v806 = vpow.pop %v805
        %v807 = vmul.f32 %v753, 1.442695
        %v808 = vpow.pop %v807
        %v809 = vmul.f32 %v754, 1.442695
        %v810 = vpow.pop %v809
        %v811 = vmul.f32 %v755, 1.442695
        %v812 = vpow.pop %v811
        %v813 = vmul.f32 %v756, 1.442695
        %v814 = vpow.pop %v813
        %v815 = vmul.f32 %v757, 1.442695
        %v816 = vpow.pop %v815
        %v817 = vmul.f32 %v758, 1.442695
        %v818 = vpow.pop %v817
        %v819 = vmul.f32 %v759, 1.442695
        %v820 = vpow.pop %v819
        %v821 = vmul.f32 %v760, 1.442695
        %v822 = vpow.pop %v821
        %v823 = vmul.f32 %v761, 1.442695
        %v824 = vpow.pop %v823
        %v825 = vmul.f32 %v762, 1.442695
        %v826 = vpow.pop %v825
        %v827 = vadd.f32 %v764, 1.0
        %v828 = vadd.f32 %v766, 1.0
        %v829 = vadd.f32 %v768, 1.0
        %v830 = vadd.f32 %v770, 1.0
        %v831 = vadd.f32 %v772, 1.0
        %v832 = vadd.f32 %v774, 1.0
        %v833 = vadd.f32 %v776, 1.0
        %v834 = vadd.f32 %v778, 1.0
        %v835 = vadd.f32 %v780, 1.0
        %v836 = vadd.f32 %v782, 1.0
        %v837 = vadd.f32 %v784, 1.0
        %v838 = vadd.f32 %v786, 1.0
        %v839 = vadd.f32 %v788, 1.0
        %v840 = vadd.f32 %v790, 1.0
        %v841 = vadd.f32 %v792, 1.0
        %v842 = vadd.f32 %v794, 1.0
        %v843 = vadd.f32 %v796, 1.0
        %v844 = vadd.f32 %v798, 1.0
        %v845 = vadd.f32 %v800, 1.0
        %v846 = vadd.f32 %v802, 1.0
        %v847 = vadd.f32 %v804, 1.0
        %v848 = vadd.f32 %v806, 1.0
        %v849 = vadd.f32 %v808, 1.0
        %v850 = vadd.f32 %v810, 1.0
        %v851 = vadd.f32 %v812, 1.0
        %v852 = vadd.f32 %v814, 1.0
        %v853 = vadd.f32 %v816, 1.0
        %v854 = vadd.f32 %v818, 1.0
        %v855 = vadd.f32 %v820, 1.0
        %v856 = vadd.f32 %v822, 1.0
        %v857 = vadd.f32 %v824, 1.0
        %v858 = vadd.f32 %v826, 1.0
        %v859 = vrcp.pop %v827
        %v860 = vrcp.pop %v828
        %v861 = vrcp.pop %v829
        %v862 = vrcp.pop %v830
        %v863 = vrcp.pop %v831
        %v864 = vrcp.pop %v832
        %v865 = vrcp.pop %v833
        %v866 = vrcp.pop %v834
        %v867 = vrcp.pop %v835
        %v868 = vrcp.pop %v836
        %v869 = vrcp.pop %v837
        %v870 = vrcp.pop %v838
        %v871 = vrcp.pop %v839
        %v872 = vrcp.pop %v840
        %v873 = vrcp.pop %v841
        %v874 = vrcp.pop %v842
        %v875 = vrcp.pop %v843
        %v876 = vrcp.pop %v844
        %v877 = vrcp.pop %v845
        %v878 = vrcp.pop %v846
        %v879 = vrcp.pop %v847
        %v880 = vrcp.pop %v848
        %v881 = vrcp.pop %v849
        %v882 = vrcp.pop %v850
        %v883 = vrcp.pop %v851
        %v884 = vrcp.pop %v852
        %v885 = vrcp.pop %v853
        %v886 = vrcp.pop %v854
        %v887 = vrcp.pop %v855
        %v888 = vrcp.pop %v856
        %v889 = vrcp.pop %v857
        %v890 = vrcp.pop %v858
        %v891 = vmul.f32 %v605, %v859
        %v892 = vmul.f32 %v608, %v860
        %v893 = vmul.f32 %v613, %v861
        %v894 = vmul.f32 %v616, %v862
        %v895 = vmul.f32 %v621, %v863
        %v896 = vmul.f32 %v624, %v864
        %v897 = vmul.f32 %v629, %v865
        %v898 = vmul.f32 %v632, %v866
        %v899 = vmul.f32 %v637, %v867
        %v900 = vmul.f32 %v640, %v868
        %v901 = vmul.f32 %v645, %v869
        %v902 = vmul.f32 %v648, %v870
        %v903 = vmul.f32 %v653, %v871
        %v904 = vmul.f32 %v656, %v872
        %v905 = vmul.f32 %v661, %v873
        %v906 = vmul.f32 %v664, %v874
        %v907 = vmul.f32 %v669, %v875
        %v908 = vmul.f32 %v672, %v876
        %v909 = vmul.f32 %v677, %v877
        %v910 = vmul.f32 %v680, %v878
        %v911 = vmul.f32 %v685, %v879
        %v912 = vmul.f32 %v688, %v880
        %v913 = vmul.f32 %v693, %v881
        %v914 = vmul.f32 %v696, %v882
        %v915 = vmul.f32 %v701, %v883
        %v916 = vmul.f32 %v704, %v884
        %v917 = vmul.f32 %v709, %v885
        %v918 = vmul.f32 %v712, %v886
        %v919 = vmul.f32 %v717, %v887
        %v920 = vmul.f32 %v720, %v888
        %v921 = vmul.f32 %v725, %v889
        %v922 = vmul.f32 %v728, %v890
        %v923 = vpack.c.bf16 %v892, %v891
        %v924 = vpack.c.bf16 %v894, %v893
        %v925 = vpack.c.bf16 %v896, %v895
        %v926 = vpack.c.bf16 %v898, %v897
        %v927 = vpack.c.bf16 %v900, %v899
        %v928 = vpack.c.bf16 %v902, %v901
        %v929 = vpack.c.bf16 %v904, %v903
        %v930 = vpack.c.bf16 %v906, %v905
        %v931 = vpack.c.bf16 %v908, %v907
        %v932 = vpack.c.bf16 %v910, %v909
        %v933 = vpack.c.bf16 %v912, %v911
        %v934 = vpack.c.bf16 %v914, %v913
        %v935 = vpack.c.bf16 %v916, %v915
        %v936 = vpack.c.bf16 %v918, %v917
        %v937 = vpack.c.bf16 %v920, %v919
        %v938 = vpack.c.bf16 %v922, %v921
        %v939 = vld [vmem:[#allocation2] sm:$0xf]
        %v940 = vld [vmem:[#allocation2 + $0x4] sm:$0xf]
        %v941 = vld [vmem:[#allocation2 + $0x8] sm:$0xf]
        %v942 = vld [vmem:[#allocation2 + $0xc] sm:$0xf]
        %v943 = vld [vmem:[#allocation2 + $0x10] sm:$0xf]
        %v944 = vld [vmem:[#allocation2 + $0x14] sm:$0xf]
        %v945 = vld [vmem:[#allocation2 + $0x18] sm:$0xf]
        %v946 = vld [vmem:[#allocation2 + $0x1c] sm:$0xf]
        %v947 = vld [vmem:[#allocation2 + $0x20] sm:$0xf]
        %v948 = vld [vmem:[#allocation2 + $0x24] sm:$0xf]
        %v949 = vld [vmem:[#allocation2 + $0x28] sm:$0xf]
        %v950 = vld [vmem:[#allocation2 + $0x2c] sm:$0xf]
        %v951 = vld [vmem:[#allocation2 + $0x30] sm:$0xf]
        %v952 = vld [vmem:[#allocation2 + $0x34] sm:$0xf]
        %v953 = vld [vmem:[#allocation2 + $0x38] sm:$0xf]
        %v954 = vld [vmem:[#allocation2 + $0x3c] sm:$0xf]
        %v955 = vld [vmem:[%s4] sm:$0x1]
        %v957 = vlaneseq
        %v958 = vshrl.u32 %v957, 7
        %v959 = vsub.s32 0, %v958
        %v960 = vrot.slane %v955, %v959
        %v978 = vunpack.c.l.b16 %v939
        %v979 = vunpack.c.l.b16 %v940
        %v980 = vunpack.c.l.b16 %v941
        %v981 = vunpack.c.l.b16 %v942
        %v982 = vunpack.c.l.b16 %v943
        %v983 = vunpack.c.l.b16 %v944
        %v984 = vunpack.c.l.b16 %v945
        %v985 = vunpack.c.l.b16 %v946
        %v986 = vunpack.c.l.b16 %v947
        %v987 = vunpack.c.l.b16 %v948
        %v988 = vunpack.c.l.b16 %v949
        %v989 = vunpack.c.l.b16 %v950
        %v990 = vunpack.c.l.b16 %v951
        %v991 = vunpack.c.l.b16 %v952
        %v992 = vunpack.c.l.b16 %v953
        %v993 = vunpack.c.l.b16 %v954
        %v994 = vpack.c.b16 %v979, %v978
        %v995 = vpack.c.b16 %v981, %v980
        %v996 = vpack.c.b16 %v983, %v982
        %v997 = vpack.c.b16 %v985, %v984
        %v998 = vpack.c.b16 %v987, %v986
        %v999 = vpack.c.b16 %v989, %v988
        %v1000 = vpack.c.b16 %v991, %v990
        %v1001 = vpack.c.b16 %v993, %v992
        %1010 = vmatprep.subr.bf16.mxu0 0
        %1011 = vmatpush1.bf16.msra.mxu0 %v1001
        %1012 = vmatprep.subr.bf16.mxu0 0
        %1013 = vmatpush1.bf16.msra.mxu0 %v1000
        %1014 = vmatprep.subr.bf16.mxu0 0
        %1015 = vmatpush1.bf16.msra.mxu0 %v999
        %1016 = vmatprep.subr.bf16.mxu0 0
        %1017 = vmatpush1.bf16.msra.mxu0 %v998
        %1018 = vmatprep.subr.bf16.mxu0 0
        %1019 = vmatpush1.bf16.msra.mxu0 %v997
        %1020 = vmatprep.subr.bf16.mxu0 0
        %1021 = vmatpush1.bf16.msra.mxu0 %v996
        %1022 = vmatprep.subr.bf16.mxu0 0
        %1023 = vmatpush1.bf16.msra.mxu0 %v995
        %1024 = vmatprep.subr.bf16.mxu0 0
        %1025 = vmatpush1.bf16.msra.mxu0 %v994
        %1026 = vmatprep.subr.bf16.mxu0 0
        %1027 = vmatpush2.bf16.msra.mxu0 0
        %1028 = vmatprep.subr.bf16.mxu0 0
        %1029 = vmatpush2.bf16.msra.mxu0 0
        %1030 = vmatprep.subr.bf16.mxu0 0
        %1031 = vmatpush2.bf16.msra.mxu0 0
        %1032 = vmatprep.subr.bf16.mxu0 0
        %1033 = vmatpush2.bf16.msra.mxu0 0
        %1034 = vmatprep.subr.bf16.mxu0 0
        %1035 = vmatpush2.bf16.msra.mxu0 0
        %1036 = vmatprep.subr.bf16.mxu0 0
        %1037 = vmatpush2.bf16.msra.mxu0 0
        %1038 = vmatprep.subr.bf16.mxu0 0
        %1039 = vmatpush2.bf16.msra.mxu0 0
        %1040 = vmatprep.subr.bf16.mxu0 0
        %1041 = vmatpush2.bf16.msra.mxu0 0
        %1042 = vmatprep.mubr.bf16.mxu0 0
        %1043 = vmatmul.mubr.bf16.gmra.mxu0 %v923
        %v1044 = vpop.f32.mrf.mxu0
        %v1045 = vadd.f32 %v960, %v1044
        %v1046 = vpop.f32.mrf.mxu0
        %v1047 = vpop.f32.mrf.mxu0
        %v1048 = vadd.f32 %v960, %v1047
        %v1049 = vpop.f32.mrf.mxu0
        %1050 = vmatprep.mubr.bf16.mxu0 0
        %1051 = vmatmul.mubr.bf16.gmra.mxu0 %v924
        %v1052 = vpop.f32.mrf.mxu0
        %v1053 = vadd.f32 %v960, %v1052
        %v1054 = vpop.f32.mrf.mxu0
        %v1055 = vpop.f32.mrf.mxu0
        %v1056 = vadd.f32 %v960, %v1055
        %v1057 = vpop.f32.mrf.mxu0
        %1058 = vmatprep.mubr.bf16.mxu0 0
        %1059 = vmatmul.mubr.bf16.gmra.mxu0 %v925
        %v1060 = vpop.f32.mrf.mxu0
        %v1061 = vadd.f32 %v960, %v1060
        %v1062 = vpop.f32.mrf.mxu0
        %v1063 = vpop.f32.mrf.mxu0
        %v1064 = vadd.f32 %v960, %v1063
        %v1065 = vpop.f32.mrf.mxu0
        %1066 = vmatprep.mubr.bf16.mxu0 0
        %1067 = vmatmul.mubr.bf16.gmra.mxu0 %v926
        %v1068 = vpop.f32.mrf.mxu0
        %v1069 = vadd.f32 %v960, %v1068
        %v1070 = vpop.f32.mrf.mxu0
        %v1071 = vpop.f32.mrf.mxu0
        %v1072 = vadd.f32 %v960, %v1071
        %v1073 = vpop.f32.mrf.mxu0
        %1074 = vmatprep.mubr.bf16.mxu0 0
        %1075 = vmatmul.mubr.bf16.gmra.mxu0 %v927
        %v1076 = vpop.f32.mrf.mxu0
        %v1077 = vadd.f32 %v960, %v1076
        %v1078 = vpop.f32.mrf.mxu0
        %v1079 = vpop.f32.mrf.mxu0
        %v1080 = vadd.f32 %v960, %v1079
        %v1081 = vpop.f32.mrf.mxu0
        %1082 = vmatprep.mubr.bf16.mxu0 0
        %1083 = vmatmul.mubr.bf16.gmra.mxu0 %v928
        %v1084 = vpop.f32.mrf.mxu0
        %v1085 = vadd.f32 %v960, %v1084
        %v1086 = vpop.f32.mrf.mxu0
        %v1087 = vpop.f32.mrf.mxu0
        %v1088 = vadd.f32 %v960, %v1087
        %v1089 = vpop.f32.mrf.mxu0
        %1090 = vmatprep.mubr.bf16.mxu0 0
        %1091 = vmatmul.mubr.bf16.gmra.mxu0 %v929
        %v1092 = vpop.f32.mrf.mxu0
        %v1093 = vadd.f32 %v960, %v1092
        %v1094 = vpop.f32.mrf.mxu0
        %v1095 = vpop.f32.mrf.mxu0
        %v1096 = vadd.f32 %v960, %v1095
        %v1097 = vpop.f32.mrf.mxu0
        %1098 = vmatprep.mubr.bf16.mxu0 0
        %1099 = vmatmul.mubr.bf16.gmra.mxu0 %v930
        %v1100 = vpop.f32.mrf.mxu0
        %v1101 = vadd.f32 %v960, %v1100
        %v1102 = vpop.f32.mrf.mxu0
        %v1103 = vpop.f32.mrf.mxu0
        %v1104 = vadd.f32 %v960, %v1103
        %v1105 = vpop.f32.mrf.mxu0
        %1106 = vmatprep.mubr.bf16.mxu0 0
        %1107 = vmatmul.mubr.bf16.gmra.mxu0 %v931
        %v1108 = vpop.f32.mrf.mxu0
        %v1109 = vadd.f32 %v960, %v1108
        %v1110 = vpop.f32.mrf.mxu0
        %v1111 = vpop.f32.mrf.mxu0
        %v1112 = vadd.f32 %v960, %v1111
        %v1113 = vpop.f32.mrf.mxu0
        %1114 = vmatprep.mubr.bf16.mxu0 0
        %1115 = vmatmul.mubr.bf16.gmra.mxu0 %v932
        %v1116 = vpop.f32.mrf.mxu0
        %v1117 = vadd.f32 %v960, %v1116
        %v1118 = vpop.f32.mrf.mxu0
        %v1119 = vpop.f32.mrf.mxu0
        %v1120 = vadd.f32 %v960, %v1119
        %v1121 = vpop.f32.mrf.mxu0
        %1122 = vmatprep.mubr.bf16.mxu0 0
        %1123 = vmatmul.mubr.bf16.gmra.mxu0 %v933
        %v1124 = vpop.f32.mrf.mxu0
        %v1125 = vadd.f32 %v960, %v1124
        %v1126 = vpop.f32.mrf.mxu0
        %v1127 = vpop.f32.mrf.mxu0
        %v1128 = vadd.f32 %v960, %v1127
        %v1129 = vpop.f32.mrf.mxu0
        %1130 = vmatprep.mubr.bf16.mxu0 0
        %1131 = vmatmul.mubr.bf16.gmra.mxu0 %v934
        %v1132 = vpop.f32.mrf.mxu0
        %v1133 = vadd.f32 %v960, %v1132
        %v1134 = vpop.f32.mrf.mxu0
        %v1135 = vpop.f32.mrf.mxu0
        %v1136 = vadd.f32 %v960, %v1135
        %v1137 = vpop.f32.mrf.mxu0
        %1138 = vmatprep.mubr.bf16.mxu0 0
        %1139 = vmatmul.mubr.bf16.gmra.mxu0 %v935
        %v1140 = vpop.f32.mrf.mxu0
        %v1141 = vadd.f32 %v960, %v1140
        %v1142 = vpop.f32.mrf.mxu0
        %v1143 = vpop.f32.mrf.mxu0
        %v1144 = vadd.f32 %v960, %v1143
        %v1145 = vpop.f32.mrf.mxu0
        %1146 = vmatprep.mubr.bf16.mxu0 0
        %1147 = vmatmul.mubr.bf16.gmra.mxu0 %v936
        %v1148 = vpop.f32.mrf.mxu0
        %v1149 = vadd.f32 %v960, %v1148
        %v1150 = vpop.f32.mrf.mxu0
        %v1151 = vpop.f32.mrf.mxu0
        %v1152 = vadd.f32 %v960, %v1151
        %v1153 = vpop.f32.mrf.mxu0
        %1154 = vmatprep.mubr.bf16.mxu0 0
        %1155 = vmatmul.mubr.bf16.gmra.mxu0 %v937
        %v1156 = vpop.f32.mrf.mxu0
        %v1157 = vadd.f32 %v960, %v1156
        %v1158 = vpop.f32.mrf.mxu0
        %v1159 = vpop.f32.mrf.mxu0
        %v1160 = vadd.f32 %v960, %v1159
        %v1161 = vpop.f32.mrf.mxu0
        %1162 = vmatprep.mubr.bf16.mxu0 0
        %1163 = vmatmul.mubr.bf16.gmra.mxu0 %v938
        %v1164 = vpop.f32.mrf.mxu0
        %v1165 = vadd.f32 %v960, %v1164
        %v1166 = vpop.f32.mrf.mxu0
        %v1167 = vpop.f32.mrf.mxu0
        %v1168 = vadd.f32 %v960, %v1167
        %v1169 = vpop.f32.mrf.mxu0
        %1170 = vdwg.mxu0
        %v1171 = vsub.f32 0.0, %v1045
        %v1172 = vsub.f32 0.0, %v1048
        %v1173 = vsub.f32 0.0, %v1053
        %v1174 = vsub.f32 0.0, %v1056
        %v1175 = vsub.f32 0.0, %v1061
        %v1176 = vsub.f32 0.0, %v1064
        %v1177 = vsub.f32 0.0, %v1069
        %v1178 = vsub.f32 0.0, %v1072
        %v1179 = vsub.f32 0.0, %v1077
        %v1180 = vsub.f32 0.0, %v1080
        %v1181 = vsub.f32 0.0, %v1085
        %v1182 = vsub.f32 0.0, %v1088
        %v1183 = vsub.f32 0.0, %v1093
        %v1184 = vsub.f32 0.0, %v1096
        %v1185 = vsub.f32 0.0, %v1101
        %v1186 = vsub.f32 0.0, %v1104
        %v1187 = vsub.f32 0.0, %v1109
        %v1188 = vsub.f32 0.0, %v1112
        %v1189 = vsub.f32 0.0, %v1117
        %v1190 = vsub.f32 0.0, %v1120
        %v1191 = vsub.f32 0.0, %v1125
        %v1192 = vsub.f32 0.0, %v1128
        %v1193 = vsub.f32 0.0, %v1133
        %v1194 = vsub.f32 0.0, %v1136
        %v1195 = vsub.f32 0.0, %v1141
        %v1196 = vsub.f32 0.0, %v1144
        %v1197 = vsub.f32 0.0, %v1149
        %v1198 = vsub.f32 0.0, %v1152
        %v1199 = vsub.f32 0.0, %v1157
        %v1200 = vsub.f32 0.0, %v1160
        %v1201 = vsub.f32 0.0, %v1165
        %v1202 = vsub.f32 0.0, %v1168
        %v1203 = vmul.f32 %v1171, 1.442695
        %v1204 = vpow.pop %v1203
        %v1205 = vmul.f32 %v1172, 1.442695
        %v1206 = vpow.pop %v1205
        %v1207 = vmul.f32 %v1173, 1.442695
        %v1208 = vpow.pop %v1207
        %v1209 = vmul.f32 %v1174, 1.442695
        %v1210 = vpow.pop %v1209
        %v1211 = vmul.f32 %v1175, 1.442695
        %v1212 = vpow.pop %v1211
        %v1213 = vmul.f32 %v1176, 1.442695
        %v1214 = vpow.pop %v1213
        %v1215 = vmul.f32 %v1177, 1.442695
        %v1216 = vpow.pop %v1215
        %v1217 = vmul.f32 %v1178, 1.442695
        %v1218 = vpow.pop %v1217
        %v1219 = vmul.f32 %v1179, 1.442695
        %v1220 = vpow.pop %v1219
        %v1221 = vmul.f32 %v1180, 1.442695
        %v1222 = vpow.pop %v1221
        %v1223 = vmul.f32 %v1181, 1.442695
        %v1224 = vpow.pop %v1223
        %v1225 = vmul.f32 %v1182, 1.442695
        %v1226 = vpow.pop %v1225
        %v1227 = vmul.f32 %v1183, 1.442695
        %v1228 = vpow.pop %v1227
        %v1229 = vmul.f32 %v1184, 1.442695
        %v1230 = vpow.pop %v1229
        %v1231 = vmul.f32 %v1185, 1.442695
        %v1232 = vpow.pop %v1231
        %v1233 = vmul.f32 %v1186, 1.442695
        %v1234 = vpow.pop %v1233
        %v1235 = vmul.f32 %v1187, 1.442695
        %v1236 = vpow.pop %v1235
        %v1237 = vmul.f32 %v1188, 1.442695
        %v1238 = vpow.pop %v1237
        %v1239 = vmul.f32 %v1189, 1.442695
        %v1240 = vpow.pop %v1239
        %v1241 = vmul.f32 %v1190, 1.442695
        %v1242 = vpow.pop %v1241
        %v1243 = vmul.f32 %v1191, 1.442695
        %v1244 = vpow.pop %v1243
        %v1245 = vmul.f32 %v1192, 1.442695
        %v1246 = vpow.pop %v1245
        %v1247 = vmul.f32 %v1193, 1.442695
        %v1248 = vpow.pop %v1247
        %v1249 = vmul.f32 %v1194, 1.442695
        %v1250 = vpow.pop %v1249
        %v1251 = vmul.f32 %v1195, 1.442695
        %v1252 = vpow.pop %v1251
        %v1253 = vmul.f32 %v1196, 1.442695
        %v1254 = vpow.pop %v1253
        %v1255 = vmul.f32 %v1197, 1.442695
        %v1256 = vpow.pop %v1255
        %v1257 = vmul.f32 %v1198, 1.442695
        %v1258 = vpow.pop %v1257
        %v1259 = vmul.f32 %v1199, 1.442695
        %v1260 = vpow.pop %v1259
        %v1261 = vmul.f32 %v1200, 1.442695
        %v1262 = vpow.pop %v1261
        %v1263 = vmul.f32 %v1201, 1.442695
        %v1264 = vpow.pop %v1263
        %v1265 = vmul.f32 %v1202, 1.442695
        %v1266 = vpow.pop %v1265
        %v1267 = vadd.f32 %v1204, 1.0
        %v1268 = vadd.f32 %v1206, 1.0
        %v1269 = vadd.f32 %v1208, 1.0
        %v1270 = vadd.f32 %v1210, 1.0
        %v1271 = vadd.f32 %v1212, 1.0
        %v1272 = vadd.f32 %v1214, 1.0
        %v1273 = vadd.f32 %v1216, 1.0
        %v1274 = vadd.f32 %v1218, 1.0
        %v1275 = vadd.f32 %v1220, 1.0
        %v1276 = vadd.f32 %v1222, 1.0
        %v1277 = vadd.f32 %v1224, 1.0
        %v1278 = vadd.f32 %v1226, 1.0
        %v1279 = vadd.f32 %v1228, 1.0
        %v1280 = vadd.f32 %v1230, 1.0
        %v1281 = vadd.f32 %v1232, 1.0
        %v1282 = vadd.f32 %v1234, 1.0
        %v1283 = vadd.f32 %v1236, 1.0
        %v1284 = vadd.f32 %v1238, 1.0
        %v1285 = vadd.f32 %v1240, 1.0
        %v1286 = vadd.f32 %v1242, 1.0
        %v1287 = vadd.f32 %v1244, 1.0
        %v1288 = vadd.f32 %v1246, 1.0
        %v1289 = vadd.f32 %v1248, 1.0
        %v1290 = vadd.f32 %v1250, 1.0
        %v1291 = vadd.f32 %v1252, 1.0
        %v1292 = vadd.f32 %v1254, 1.0
        %v1293 = vadd.f32 %v1256, 1.0
        %v1294 = vadd.f32 %v1258, 1.0
        %v1295 = vadd.f32 %v1260, 1.0
        %v1296 = vadd.f32 %v1262, 1.0
        %v1297 = vadd.f32 %v1264, 1.0
        %v1298 = vadd.f32 %v1266, 1.0
        %v1299 = vrcp.pop %v1267
        %v1300 = vrcp.pop %v1268
        %v1301 = vrcp.pop %v1269
        %v1302 = vrcp.pop %v1270
        %v1303 = vrcp.pop %v1271
        %v1304 = vrcp.pop %v1272
        %v1305 = vrcp.pop %v1273
        %v1306 = vrcp.pop %v1274
        %v1307 = vrcp.pop %v1275
        %v1308 = vrcp.pop %v1276
        %v1309 = vrcp.pop %v1277
        %v1310 = vrcp.pop %v1278
        %v1311 = vrcp.pop %v1279
        %v1312 = vrcp.pop %v1280
        %v1313 = vrcp.pop %v1281
        %v1314 = vrcp.pop %v1282
        %v1315 = vrcp.pop %v1283
        %v1316 = vrcp.pop %v1284
        %v1317 = vrcp.pop %v1285
        %v1318 = vrcp.pop %v1286
        %v1319 = vrcp.pop %v1287
        %v1320 = vrcp.pop %v1288
        %v1321 = vrcp.pop %v1289
        %v1322 = vrcp.pop %v1290
        %v1323 = vrcp.pop %v1291
        %v1324 = vrcp.pop %v1292
        %v1325 = vrcp.pop %v1293
        %v1326 = vrcp.pop %v1294
        %v1327 = vrcp.pop %v1295
        %v1328 = vrcp.pop %v1296
        %v1329 = vrcp.pop %v1297
        %v1330 = vrcp.pop %v1298
        %v1331 = vmul.f32 %v1045, %v1299
        %v1332 = vmul.f32 %v1048, %v1300
        %v1333 = vmul.f32 %v1053, %v1301
        %v1334 = vmul.f32 %v1056, %v1302
        %v1335 = vmul.f32 %v1061, %v1303
        %v1336 = vmul.f32 %v1064, %v1304
        %v1337 = vmul.f32 %v1069, %v1305
        %v1338 = vmul.f32 %v1072, %v1306
        %v1339 = vmul.f32 %v1077, %v1307
        %v1340 = vmul.f32 %v1080, %v1308
        %v1341 = vmul.f32 %v1085, %v1309
        %v1342 = vmul.f32 %v1088, %v1310
        %v1343 = vmul.f32 %v1093, %v1311
        %v1344 = vmul.f32 %v1096, %v1312
        %v1345 = vmul.f32 %v1101, %v1313
        %v1346 = vmul.f32 %v1104, %v1314
        %v1347 = vmul.f32 %v1109, %v1315
        %v1348 = vmul.f32 %v1112, %v1316
        %v1349 = vmul.f32 %v1117, %v1317
        %v1350 = vmul.f32 %v1120, %v1318
        %v1351 = vmul.f32 %v1125, %v1319
        %v1352 = vmul.f32 %v1128, %v1320
        %v1353 = vmul.f32 %v1133, %v1321
        %v1354 = vmul.f32 %v1136, %v1322
        %v1355 = vmul.f32 %v1141, %v1323
        %v1356 = vmul.f32 %v1144, %v1324
        %v1357 = vmul.f32 %v1149, %v1325
        %v1358 = vmul.f32 %v1152, %v1326
        %v1359 = vmul.f32 %v1157, %v1327
        %v1360 = vmul.f32 %v1160, %v1328
        %v1361 = vmul.f32 %v1165, %v1329
        %v1362 = vmul.f32 %v1168, %v1330
        %v1363 = vlaneseq
        %v1364 = vshrl.u32 %v1363, 7
        %v1365 = vadd.s32 %v1364, 8
        %vm1366 = vcmp.ge.s32.totalorder %v1364, 1
        %vm1367 = vcmp.ge.s32.totalorder %v1365, 1
        %vm1368 = vcmp.le.s32.totalorder %v1364, 14
        %vm1369 = vcmp.le.s32.totalorder %v1365, 14
        %vm1402 = vcmask 1040384
        %v1403 = vrot.slane %v1331, 7
        %v1404 = vrot.slane %v1332, 7
        %v1405 = vsel %vm1402, %v1403, %v1404
        %v1406 = vrot.slane %v1333, 7
        %v1407 = vsel %vm1402, %v1404, %v1406
        %v1408 = vrot.slane %v1334, 7
        %v1409 = vsel %vm1402, %v1406, %v1408
        %v1410 = vrot.slane %v1335, 7
        %v1411 = vsel %vm1402, %v1408, %v1410
        %v1412 = vrot.slane %v1336, 7
        %v1413 = vsel %vm1402, %v1410, %v1412
        %v1414 = vrot.slane %v1337, 7
        %v1415 = vsel %vm1402, %v1412, %v1414
        %v1416 = vrot.slane %v1338, 7
        %v1417 = vsel %vm1402, %v1414, %v1416
        %v1418 = vrot.slane %v1339, 7
        %v1419 = vsel %vm1402, %v1416, %v1418
        %v1420 = vrot.slane %v1340, 7
        %v1421 = vsel %vm1402, %v1418, %v1420
        %v1422 = vrot.slane %v1341, 7
        %v1423 = vsel %vm1402, %v1420, %v1422
        %v1424 = vrot.slane %v1342, 7
        %v1425 = vsel %vm1402, %v1422, %v1424
        %v1426 = vrot.slane %v1343, 7
        %v1427 = vsel %vm1402, %v1424, %v1426
        %v1428 = vrot.slane %v1344, 7
        %v1429 = vsel %vm1402, %v1426, %v1428
        %v1430 = vrot.slane %v1345, 7
        %v1431 = vsel %vm1402, %v1428, %v1430
        %v1432 = vrot.slane %v1346, 7
        %v1433 = vsel %vm1402, %v1430, %v1432
        %v1434 = vrot.slane %v1347, 7
        %v1435 = vsel %vm1402, %v1432, %v1434
        %v1436 = vrot.slane %v1348, 7
        %v1437 = vsel %vm1402, %v1434, %v1436
        %v1438 = vrot.slane %v1349, 7
        %v1439 = vsel %vm1402, %v1436, %v1438
        %v1440 = vrot.slane %v1350, 7
        %v1441 = vsel %vm1402, %v1438, %v1440
        %v1442 = vrot.slane %v1351, 7
        %v1443 = vsel %vm1402, %v1440, %v1442
        %v1444 = vrot.slane %v1352, 7
        %v1445 = vsel %vm1402, %v1442, %v1444
        %v1446 = vrot.slane %v1353, 7
        %v1447 = vsel %vm1402, %v1444, %v1446
        %v1448 = vrot.slane %v1354, 7
        %v1449 = vsel %vm1402, %v1446, %v1448
        %v1450 = vrot.slane %v1355, 7
        %v1451 = vsel %vm1402, %v1448, %v1450
        %v1452 = vrot.slane %v1356, 7
        %v1453 = vsel %vm1402, %v1450, %v1452
        %v1454 = vrot.slane %v1357, 7
        %v1455 = vsel %vm1402, %v1452, %v1454
        %v1456 = vrot.slane %v1358, 7
        %v1457 = vsel %vm1402, %v1454, %v1456
        %v1458 = vrot.slane %v1359, 7
        %v1459 = vsel %vm1402, %v1456, %v1458
        %v1460 = vrot.slane %v1360, 7
        %v1461 = vsel %vm1402, %v1458, %v1460
        %v1462 = vrot.slane %v1361, 7
        %v1463 = vsel %vm1402, %v1460, %v1462
        %v1464 = vrot.slane %v1362, 7
        %v1465 = vsel %vm1402, %v1462, %v1464
        %v1498 = vsel %vm1402, 0.0, %v1403
        %v1499 = vsel %vm1366, %v1498, 0.0
        %v1500 = vsel %vm1367, %v1405, 0.0
        %v1501 = vsel %vm1366, %v1407, 0.0
        %v1502 = vsel %vm1367, %v1409, 0.0
        %v1503 = vsel %vm1366, %v1411, 0.0
        %v1504 = vsel %vm1367, %v1413, 0.0
        %v1505 = vsel %vm1366, %v1415, 0.0
        %v1506 = vsel %vm1367, %v1417, 0.0
        %v1507 = vsel %vm1366, %v1419, 0.0
        %v1508 = vsel %vm1367, %v1421, 0.0
        %v1509 = vsel %vm1366, %v1423, 0.0
        %v1510 = vsel %vm1367, %v1425, 0.0
        %v1511 = vsel %vm1366, %v1427, 0.0
        %v1512 = vsel %vm1367, %v1429, 0.0
        %v1513 = vsel %vm1366, %v1431, 0.0
        %v1514 = vsel %vm1367, %v1433, 0.0
        %v1515 = vsel %vm1366, %v1435, 0.0
        %v1516 = vsel %vm1367, %v1437, 0.0
        %v1517 = vsel %vm1366, %v1439, 0.0
        %v1518 = vsel %vm1367, %v1441, 0.0
        %v1519 = vsel %vm1366, %v1443, 0.0
        %v1520 = vsel %vm1367, %v1445, 0.0
        %v1521 = vsel %vm1366, %v1447, 0.0
        %v1522 = vsel %vm1367, %v1449, 0.0
        %v1523 = vsel %vm1366, %v1451, 0.0
        %v1524 = vsel %vm1367, %v1453, 0.0
        %v1525 = vsel %vm1366, %v1455, 0.0
        %v1526 = vsel %vm1367, %v1457, 0.0
        %v1527 = vsel %vm1366, %v1459, 0.0
        %v1528 = vsel %vm1367, %v1461, 0.0
        %v1529 = vsel %vm1366, %v1463, 0.0
        %v1530 = vsel %vm1367, %v1465, 0.0
        %v1531 = vpack.c.bf16 %v1500, %v1499
        %v1532 = vpack.c.bf16 %v1502, %v1501
        %v1533 = vpack.c.bf16 %v1504, %v1503
        %v1534 = vpack.c.bf16 %v1506, %v1505
        %v1535 = vpack.c.bf16 %v1508, %v1507
        %v1536 = vpack.c.bf16 %v1510, %v1509
        %v1537 = vpack.c.bf16 %v1512, %v1511
        %v1538 = vpack.c.bf16 %v1514, %v1513
        %v1539 = vpack.c.bf16 %v1516, %v1515
        %v1540 = vpack.c.bf16 %v1518, %v1517
        %v1541 = vpack.c.bf16 %v1520, %v1519
        %v1542 = vpack.c.bf16 %v1522, %v1521
        %v1543 = vpack.c.bf16 %v1524, %v1523
        %v1544 = vpack.c.bf16 %v1526, %v1525
        %v1545 = vpack.c.bf16 %v1528, %v1527
        %v1546 = vpack.c.bf16 %v1530, %v1529
        %v1547 = vpack.c.bf16 %v1332, %v1331
        %v1548 = vpack.c.bf16 %v1334, %v1333
        %v1549 = vpack.c.bf16 %v1336, %v1335
        %v1550 = vpack.c.bf16 %v1338, %v1337
        %v1551 = vpack.c.bf16 %v1340, %v1339
        %v1552 = vpack.c.bf16 %v1342, %v1341
        %v1553 = vpack.c.bf16 %v1344, %v1343
        %v1554 = vpack.c.bf16 %v1346, %v1345
        %v1555 = vpack.c.bf16 %v1348, %v1347
        %v1556 = vpack.c.bf16 %v1350, %v1349
        %v1557 = vpack.c.bf16 %v1352, %v1351
        %v1558 = vpack.c.bf16 %v1354, %v1353
        %v1559 = vpack.c.bf16 %v1356, %v1355
        %v1560 = vpack.c.bf16 %v1358, %v1357
        %v1561 = vpack.c.bf16 %v1360, %v1359
        %v1562 = vpack.c.bf16 %v1362, %v1361
        %vm1563 = vcmask 1046528
        %v1564 = vrot.slane %v1331, 1
        %v1565 = vrot.slane %v1332, 1
        %v1566 = vsel %vm1563, %v1564, %v1565
        %v1567 = vrot.slane %v1333, 1
        %v1568 = vsel %vm1563, %v1565, %v1567
        %v1569 = vrot.slane %v1334, 1
        %v1570 = vsel %vm1563, %v1567, %v1569
        %v1571 = vrot.slane %v1335, 1
        %v1572 = vsel %vm1563, %v1569, %v1571
        %v1573 = vrot.slane %v1336, 1
        %v1574 = vsel %vm1563, %v1571, %v1573
        %v1575 = vrot.slane %v1337, 1
        %v1576 = vsel %vm1563, %v1573, %v1575
        %v1577 = vrot.slane %v1338, 1
        %v1578 = vsel %vm1563, %v1575, %v1577
        %v1579 = vrot.slane %v1339, 1
        %v1580 = vsel %vm1563, %v1577, %v1579
        %v1581 = vrot.slane %v1340, 1
        %v1582 = vsel %vm1563, %v1579, %v1581
        %v1583 = vrot.slane %v1341, 1
        %v1584 = vsel %vm1563, %v1581, %v1583
        %v1585 = vrot.slane %v1342, 1
        %v1586 = vsel %vm1563, %v1583, %v1585
        %v1587 = vrot.slane %v1343, 1
        %v1588 = vsel %vm1563, %v1585, %v1587
        %v1589 = vrot.slane %v1344, 1
        %v1590 = vsel %vm1563, %v1587, %v1589
        %v1591 = vrot.slane %v1345, 1
        %v1592 = vsel %vm1563, %v1589, %v1591
        %v1593 = vrot.slane %v1346, 1
        %v1594 = vsel %vm1563, %v1591, %v1593
        %v1595 = vrot.slane %v1347, 1
        %v1596 = vsel %vm1563, %v1593, %v1595
        %v1597 = vrot.slane %v1348, 1
        %v1598 = vsel %vm1563, %v1595, %v1597
        %v1599 = vrot.slane %v1349, 1
        %v1600 = vsel %vm1563, %v1597, %v1599
        %v1601 = vrot.slane %v1350, 1
        %v1602 = vsel %vm1563, %v1599, %v1601
        %v1603 = vrot.slane %v1351, 1
        %v1604 = vsel %vm1563, %v1601, %v1603
        %v1605 = vrot.slane %v1352, 1
        %v1606 = vsel %vm1563, %v1603, %v1605
        %v1607 = vrot.slane %v1353, 1
        %v1608 = vsel %vm1563, %v1605, %v1607
        %v1609 = vrot.slane %v1354, 1
        %v1610 = vsel %vm1563, %v1607, %v1609
        %v1611 = vrot.slane %v1355, 1
        %v1612 = vsel %vm1563, %v1609, %v1611
        %v1613 = vrot.slane %v1356, 1
        %v1614 = vsel %vm1563, %v1611, %v1613
        %v1615 = vrot.slane %v1357, 1
        %v1616 = vsel %vm1563, %v1613, %v1615
        %v1617 = vrot.slane %v1358, 1
        %v1618 = vsel %vm1563, %v1615, %v1617
        %v1619 = vrot.slane %v1359, 1
        %v1620 = vsel %vm1563, %v1617, %v1619
        %v1621 = vrot.slane %v1360, 1
        %v1622 = vsel %vm1563, %v1619, %v1621
        %v1623 = vrot.slane %v1361, 1
        %v1624 = vsel %vm1563, %v1621, %v1623
        %v1625 = vrot.slane %v1362, 1
        %v1626 = vsel %vm1563, %v1623, %v1625
        %v1659 = vsel %vm1563, %v1625, 0.0
        %v1660 = vsel %vm1368, %v1566, 0.0
        %v1661 = vsel %vm1369, %v1568, 0.0
        %v1662 = vsel %vm1368, %v1570, 0.0
        %v1663 = vsel %vm1369, %v1572, 0.0
        %v1664 = vsel %vm1368, %v1574, 0.0
        %v1665 = vsel %vm1369, %v1576, 0.0
        %v1666 = vsel %vm1368, %v1578, 0.0
        %v1667 = vsel %vm1369, %v1580, 0.0
        %v1668 = vsel %vm1368, %v1582, 0.0
        %v1669 = vsel %vm1369, %v1584, 0.0
        %v1670 = vsel %vm1368, %v1586, 0.0
        %v1671 = vsel %vm1369, %v1588, 0.0
        %v1672 = vsel %vm1368, %v1590, 0.0
        %v1673 = vsel %vm1369, %v1592, 0.0
        %v1674 = vsel %vm1368, %v1594, 0.0
        %v1675 = vsel %vm1369, %v1596, 0.0
        %v1676 = vsel %vm1368, %v1598, 0.0
        %v1677 = vsel %vm1369, %v1600, 0.0
        %v1678 = vsel %vm1368, %v1602, 0.0
        %v1679 = vsel %vm1369, %v1604, 0.0
        %v1680 = vsel %vm1368, %v1606, 0.0
        %v1681 = vsel %vm1369, %v1608, 0.0
        %v1682 = vsel %vm1368, %v1610, 0.0
        %v1683 = vsel %vm1369, %v1612, 0.0
        %v1684 = vsel %vm1368, %v1614, 0.0
        %v1685 = vsel %vm1369, %v1616, 0.0
        %v1686 = vsel %vm1368, %v1618, 0.0
        %v1687 = vsel %vm1369, %v1620, 0.0
        %v1688 = vsel %vm1368, %v1622, 0.0
        %v1689 = vsel %vm1369, %v1624, 0.0
        %v1690 = vsel %vm1368, %v1626, 0.0
        %v1691 = vsel %vm1369, %v1659, 0.0
        %v1692 = vpack.c.bf16 %v1661, %v1660
        %v1693 = vpack.c.bf16 %v1663, %v1662
        %v1694 = vpack.c.bf16 %v1665, %v1664
        %v1695 = vpack.c.bf16 %v1667, %v1666
        %v1696 = vpack.c.bf16 %v1669, %v1668
        %v1697 = vpack.c.bf16 %v1671, %v1670
        %v1698 = vpack.c.bf16 %v1673, %v1672
        %v1699 = vpack.c.bf16 %v1675, %v1674
        %v1700 = vpack.c.bf16 %v1677, %v1676
        %v1701 = vpack.c.bf16 %v1679, %v1678
        %v1702 = vpack.c.bf16 %v1681, %v1680
        %v1703 = vpack.c.bf16 %v1683, %v1682
        %v1704 = vpack.c.bf16 %v1685, %v1684
        %v1705 = vpack.c.bf16 %v1687, %v1686
        %v1706 = vpack.c.bf16 %v1689, %v1688
        %v1707 = vpack.c.bf16 %v1691, %v1690
        %v1708 = vld [vmem:[%s5] sm:$0xf]
        %v1709 = vld [vmem:[%s5 + $0x4] sm:$0xf]
        %v1710 = vld [vmem:[%s5 + $0x8] sm:$0xf]
        %v1711 = vld [vmem:[%s5 + $0xc] sm:$0xf]
        %v1712 = vld [vmem:[%s5 + $0x10] sm:$0xf]
        %v1713 = vld [vmem:[%s5 + $0x14] sm:$0xf]
        %v1714 = vld [vmem:[%s5 + $0x18] sm:$0xf]
        %v1715 = vld [vmem:[%s5 + $0x1c] sm:$0xf]
        %v1716 = vld [vmem:[%s5 + $0x20] sm:$0xf]
        %v1717 = vld [vmem:[%s5 + $0x24] sm:$0xf]
        %v1718 = vld [vmem:[%s5 + $0x28] sm:$0xf]
        %v1719 = vld [vmem:[%s5 + $0x2c] sm:$0xf]
        %v1720 = vld [vmem:[%s5 + $0x30] sm:$0xf]
        %v1721 = vld [vmem:[%s5 + $0x34] sm:$0xf]
        %v1722 = vld [vmem:[%s5 + $0x38] sm:$0xf]
        %v1723 = vld [vmem:[%s5 + $0x3c] sm:$0xf]
        %s1724 = scalar_lea.vmem %s5, 64
        %v1725 = vld [vmem:[%s1724] sm:$0xf]
        %v1726 = vld [vmem:[%s1724 + $0x4] sm:$0xf]
        %v1727 = vld [vmem:[%s1724 + $0x8] sm:$0xf]
        %v1728 = vld [vmem:[%s1724 + $0xc] sm:$0xf]
        %v1729 = vld [vmem:[%s1724 + $0x10] sm:$0xf]
        %v1730 = vld [vmem:[%s1724 + $0x14] sm:$0xf]
        %v1731 = vld [vmem:[%s1724 + $0x18] sm:$0xf]
        %v1732 = vld [vmem:[%s1724 + $0x1c] sm:$0xf]
        %v1733 = vld [vmem:[%s1724 + $0x20] sm:$0xf]
        %v1734 = vld [vmem:[%s1724 + $0x24] sm:$0xf]
        %v1735 = vld [vmem:[%s1724 + $0x28] sm:$0xf]
        %v1736 = vld [vmem:[%s1724 + $0x2c] sm:$0xf]
        %v1737 = vld [vmem:[%s1724 + $0x30] sm:$0xf]
        %v1738 = vld [vmem:[%s1724 + $0x34] sm:$0xf]
        %v1739 = vld [vmem:[%s1724 + $0x38] sm:$0xf]
        %v1740 = vld [vmem:[%s1724 + $0x3c] sm:$0xf]
        %v1757 = vunpack.c.l.b16 %v1725
        %v1758 = vunpack.c.l.b16 %v1726
        %v1759 = vunpack.c.l.b16 %v1727
        %v1760 = vunpack.c.l.b16 %v1728
        %v1761 = vunpack.c.l.b16 %v1729
        %v1762 = vunpack.c.l.b16 %v1730
        %v1763 = vunpack.c.l.b16 %v1731
        %v1764 = vunpack.c.l.b16 %v1732
        %v1765 = vunpack.c.l.b16 %v1733
        %v1766 = vunpack.c.l.b16 %v1734
        %v1767 = vunpack.c.l.b16 %v1735
        %v1768 = vunpack.c.l.b16 %v1736
        %v1769 = vunpack.c.l.b16 %v1737
        %v1770 = vunpack.c.l.b16 %v1738
        %v1771 = vunpack.c.l.b16 %v1739
        %v1772 = vunpack.c.l.b16 %v1740
        %v1773 = vpack.c.b16 %v1758, %v1757
        %v1774 = vpack.c.b16 %v1760, %v1759
        %v1775 = vpack.c.b16 %v1762, %v1761
        %v1776 = vpack.c.b16 %v1764, %v1763
        %v1777 = vpack.c.b16 %v1766, %v1765
        %v1778 = vpack.c.b16 %v1768, %v1767
        %v1779 = vpack.c.b16 %v1770, %v1769
        %v1780 = vpack.c.b16 %v1772, %v1771
        %1789 = vmatprep.subr.bf16.mxu0 0
        %1790 = vmatpush1.bf16.msra.mxu0 %v1780
        %1791 = vmatprep.subr.bf16.mxu0 0
        %1792 = vmatpush1.bf16.msra.mxu0 %v1779
        %1793 = vmatprep.subr.bf16.mxu0 0
        %1794 = vmatpush1.bf16.msra.mxu0 %v1778
        %1795 = vmatprep.subr.bf16.mxu0 0
        %1796 = vmatpush1.bf16.msra.mxu0 %v1777
        %1797 = vmatprep.subr.bf16.mxu0 0
        %1798 = vmatpush1.bf16.msra.mxu0 %v1776
        %1799 = vmatprep.subr.bf16.mxu0 0
        %1800 = vmatpush1.bf16.msra.mxu0 %v1775
        %1801 = vmatprep.subr.bf16.mxu0 0
        %1802 = vmatpush1.bf16.msra.mxu0 %v1774
        %1803 = vmatprep.subr.bf16.mxu0 0
        %1804 = vmatpush1.bf16.msra.mxu0 %v1773
        %1805 = vmatprep.subr.bf16.mxu0 0
        %1806 = vmatpush2.bf16.msra.mxu0 0
        %1807 = vmatprep.subr.bf16.mxu0 0
        %1808 = vmatpush2.bf16.msra.mxu0 0
        %1809 = vmatprep.subr.bf16.mxu0 0
        %1810 = vmatpush2.bf16.msra.mxu0 0
        %1811 = vmatprep.subr.bf16.mxu0 0
        %1812 = vmatpush2.bf16.msra.mxu0 0
        %1813 = vmatprep.subr.bf16.mxu0 0
        %1814 = vmatpush2.bf16.msra.mxu0 0
        %1815 = vmatprep.subr.bf16.mxu0 0
        %1816 = vmatpush2.bf16.msra.mxu0 0
        %1817 = vmatprep.subr.bf16.mxu0 0
        %1818 = vmatpush2.bf16.msra.mxu0 0
        %1819 = vmatprep.subr.bf16.mxu0 0
        %1820 = vmatpush2.bf16.msra.mxu0 0
        %1821 = vmatprep.mubr.bf16.mxu0 0
        %1822 = vmatmul.mubr.bf16.gmra.mxu0 0
        %v1823 = vpop.f32.mrf.mxu0
        %v1824 = vadd.f32 0.0, %v1823
        %v1825 = vpop.f32.mrf.mxu0
        %v1826 = vpop.f32.mrf.mxu0
        %v1827 = vadd.f32 0.0, %v1826
        %v1828 = vpop.f32.mrf.mxu0
        %1829 = vmatprep.mubr.bf16.mxu0 0
        %1830 = vmatmul.mubr.bf16.gmra.mxu0 %v1547
        %v1831 = vpop.f32.mrf.mxu0
        %v1832 = vadd.f32 0.0, %v1831
        %v1833 = vpop.f32.mrf.mxu0
        %v1834 = vpop.f32.mrf.mxu0
        %v1835 = vadd.f32 0.0, %v1834
        %v1836 = vpop.f32.mrf.mxu0
        %1837 = vmatprep.mubr.bf16.mxu0 0
        %1838 = vmatmul.mubr.bf16.gmra.mxu0 %v1548
        %v1839 = vpop.f32.mrf.mxu0
        %v1840 = vadd.f32 0.0, %v1839
        %v1841 = vpop.f32.mrf.mxu0
        %v1842 = vpop.f32.mrf.mxu0
        %v1843 = vadd.f32 0.0, %v1842
        %v1844 = vpop.f32.mrf.mxu0
        %1845 = vmatprep.mubr.bf16.mxu0 0
        %1846 = vmatmul.mubr.bf16.gmra.mxu0 %v1549
        %v1847 = vpop.f32.mrf.mxu0
        %v1848 = vadd.f32 0.0, %v1847
        %v1849 = vpop.f32.mrf.mxu0
        %v1850 = vpop.f32.mrf.mxu0
        %v1851 = vadd.f32 0.0, %v1850
        %v1852 = vpop.f32.mrf.mxu0
        %1853 = vmatprep.mubr.bf16.mxu0 0
        %1854 = vmatmul.mubr.bf16.gmra.mxu0 %v1550
        %v1855 = vpop.f32.mrf.mxu0
        %v1856 = vadd.f32 0.0, %v1855
        %v1857 = vpop.f32.mrf.mxu0
        %v1858 = vpop.f32.mrf.mxu0
        %v1859 = vadd.f32 0.0, %v1858
        %v1860 = vpop.f32.mrf.mxu0
        %1861 = vmatprep.mubr.bf16.mxu0 0
        %1862 = vmatmul.mubr.bf16.gmra.mxu0 %v1551
        %v1863 = vpop.f32.mrf.mxu0
        %v1864 = vadd.f32 0.0, %v1863
        %v1865 = vpop.f32.mrf.mxu0
        %v1866 = vpop.f32.mrf.mxu0
        %v1867 = vadd.f32 0.0, %v1866
        %v1868 = vpop.f32.mrf.mxu0
        %1869 = vmatprep.mubr.bf16.mxu0 0
        %1870 = vmatmul.mubr.bf16.gmra.mxu0 %v1552
        %v1871 = vpop.f32.mrf.mxu0
        %v1872 = vadd.f32 0.0, %v1871
        %v1873 = vpop.f32.mrf.mxu0
        %v1874 = vpop.f32.mrf.mxu0
        %v1875 = vadd.f32 0.0, %v1874
        %v1876 = vpop.f32.mrf.mxu0
        %1877 = vmatprep.mubr.bf16.mxu0 0
        %1878 = vmatmul.mubr.bf16.gmra.mxu0 %v1553
        %v1879 = vpop.f32.mrf.mxu0
        %v1880 = vadd.f32 0.0, %v1879
        %v1881 = vpop.f32.mrf.mxu0
        %v1882 = vpop.f32.mrf.mxu0
        %v1883 = vadd.f32 0.0, %v1882
        %v1884 = vpop.f32.mrf.mxu0
        %1885 = vmatprep.mubr.bf16.mxu0 0
        %1886 = vmatmul.mubr.bf16.gmra.mxu0 %v1554
        %v1887 = vpop.f32.mrf.mxu0
        %v1888 = vadd.f32 0.0, %v1887
        %v1889 = vpop.f32.mrf.mxu0
        %v1890 = vpop.f32.mrf.mxu0
        %v1891 = vadd.f32 0.0, %v1890
        %v1892 = vpop.f32.mrf.mxu0
        %1893 = vmatprep.mubr.bf16.mxu0 0
        %1894 = vmatmul.mubr.bf16.gmra.mxu0 %v1555
        %v1895 = vpop.f32.mrf.mxu0
        %v1896 = vadd.f32 0.0, %v1895
        %v1897 = vpop.f32.mrf.mxu0
        %v1898 = vpop.f32.mrf.mxu0
        %v1899 = vadd.f32 0.0, %v1898
        %v1900 = vpop.f32.mrf.mxu0
        %1901 = vmatprep.mubr.bf16.mxu0 0
        %1902 = vmatmul.mubr.bf16.gmra.mxu0 %v1556
        %v1903 = vpop.f32.mrf.mxu0
        %v1904 = vadd.f32 0.0, %v1903
        %v1905 = vpop.f32.mrf.mxu0
        %v1906 = vpop.f32.mrf.mxu0
        %v1907 = vadd.f32 0.0, %v1906
        %v1908 = vpop.f32.mrf.mxu0
        %1909 = vmatprep.mubr.bf16.mxu0 0
        %1910 = vmatmul.mubr.bf16.gmra.mxu0 %v1557
        %v1911 = vpop.f32.mrf.mxu0
        %v1912 = vadd.f32 0.0, %v1911
        %v1913 = vpop.f32.mrf.mxu0
        %v1914 = vpop.f32.mrf.mxu0
        %v1915 = vadd.f32 0.0, %v1914
        %v1916 = vpop.f32.mrf.mxu0
        %1917 = vmatprep.mubr.bf16.mxu0 0
        %1918 = vmatmul.mubr.bf16.gmra.mxu0 %v1558
        %v1919 = vpop.f32.mrf.mxu0
        %v1920 = vadd.f32 0.0, %v1919
        %v1921 = vpop.f32.mrf.mxu0
        %v1922 = vpop.f32.mrf.mxu0
        %v1923 = vadd.f32 0.0, %v1922
        %v1924 = vpop.f32.mrf.mxu0
        %1925 = vmatprep.mubr.bf16.mxu0 0
        %1926 = vmatmul.mubr.bf16.gmra.mxu0 %v1559
        %v1927 = vpop.f32.mrf.mxu0
        %v1928 = vadd.f32 0.0, %v1927
        %v1929 = vpop.f32.mrf.mxu0
        %v1930 = vpop.f32.mrf.mxu0
        %v1931 = vadd.f32 0.0, %v1930
        %v1932 = vpop.f32.mrf.mxu0
        %1933 = vmatprep.mubr.bf16.mxu0 0
        %1934 = vmatmul.mubr.bf16.gmra.mxu0 %v1560
        %v1935 = vpop.f32.mrf.mxu0
        %v1936 = vadd.f32 0.0, %v1935
        %v1937 = vpop.f32.mrf.mxu0
        %v1938 = vpop.f32.mrf.mxu0
        %v1939 = vadd.f32 0.0, %v1938
        %v1940 = vpop.f32.mrf.mxu0
        %1941 = vmatprep.mubr.bf16.mxu0 0
        %1942 = vmatmul.mubr.bf16.gmra.mxu0 %v1561
        %v1943 = vpop.f32.mrf.mxu0
        %v1944 = vadd.f32 0.0, %v1943
        %v1945 = vpop.f32.mrf.mxu0
        %v1946 = vpop.f32.mrf.mxu0
        %v1947 = vadd.f32 0.0, %v1946
        %v1948 = vpop.f32.mrf.mxu0
        %1949 = vdwg.mxu0
        %v1966 = vunpack.c.l.b16 %v1708
        %v1967 = vunpack.c.l.b16 %v1709
        %v1968 = vunpack.c.l.b16 %v1710
        %v1969 = vunpack.c.l.b16 %v1711
        %v1970 = vunpack.c.l.b16 %v1712
        %v1971 = vunpack.c.l.b16 %v1713
        %v1972 = vunpack.c.l.b16 %v1714
        %v1973 = vunpack.c.l.b16 %v1715
        %v1974 = vunpack.c.l.b16 %v1716
        %v1975 = vunpack.c.l.b16 %v1717
        %v1976 = vunpack.c.l.b16 %v1718
        %v1977 = vunpack.c.l.b16 %v1719
        %v1978 = vunpack.c.l.b16 %v1720
        %v1979 = vunpack.c.l.b16 %v1721
        %v1980 = vunpack.c.l.b16 %v1722
        %v1981 = vunpack.c.l.b16 %v1723
        %v1982 = vpack.c.b16 %v1967, %v1966
        %v1983 = vpack.c.b16 %v1969, %v1968
        %v1984 = vpack.c.b16 %v1971, %v1970
        %v1985 = vpack.c.b16 %v1973, %v1972
        %v1986 = vpack.c.b16 %v1975, %v1974
        %v1987 = vpack.c.b16 %v1977, %v1976
        %v1988 = vpack.c.b16 %v1979, %v1978
        %v1989 = vpack.c.b16 %v1981, %v1980
        %1998 = vmatprep.subr.bf16.mxu0 0
        %1999 = vmatpush1.bf16.msra.mxu0 %v1989
        %2000 = vmatprep.subr.bf16.mxu0 0
        %2001 = vmatpush1.bf16.msra.mxu0 %v1988
        %2002 = vmatprep.subr.bf16.mxu0 0
        %2003 = vmatpush1.bf16.msra.mxu0 %v1987
        %2004 = vmatprep.subr.bf16.mxu0 0
        %2005 = vmatpush1.bf16.msra.mxu0 %v1986
        %2006 = vmatprep.subr.bf16.mxu0 0
        %2007 = vmatpush1.bf16.msra.mxu0 %v1985
        %2008 = vmatprep.subr.bf16.mxu0 0
        %2009 = vmatpush1.bf16.msra.mxu0 %v1984
        %2010 = vmatprep.subr.bf16.mxu0 0
        %2011 = vmatpush1.bf16.msra.mxu0 %v1983
        %2012 = vmatprep.subr.bf16.mxu0 0
        %2013 = vmatpush1.bf16.msra.mxu0 %v1982
        %2014 = vmatprep.subr.bf16.mxu0 0
        %2015 = vmatpush2.bf16.msra.mxu0 0
        %2016 = vmatprep.subr.bf16.mxu0 0
        %2017 = vmatpush2.bf16.msra.mxu0 0
        %2018 = vmatprep.subr.bf16.mxu0 0
        %2019 = vmatpush2.bf16.msra.mxu0 0
        %2020 = vmatprep.subr.bf16.mxu0 0
        %2021 = vmatpush2.bf16.msra.mxu0 0
        %2022 = vmatprep.subr.bf16.mxu0 0
        %2023 = vmatpush2.bf16.msra.mxu0 0
        %2024 = vmatprep.subr.bf16.mxu0 0
        %2025 = vmatpush2.bf16.msra.mxu0 0
        %2026 = vmatprep.subr.bf16.mxu0 0
        %2027 = vmatpush2.bf16.msra.mxu0 0
        %2028 = vmatprep.subr.bf16.mxu0 0
        %2029 = vmatpush2.bf16.msra.mxu0 0
        %2030 = vmatprep.mubr.bf16.mxu0 0
        %2031 = vmatmul.mubr.bf16.gmra.mxu0 0
        %v2032 = vpop.f32.mrf.mxu0
        %v2033 = vadd.f32 %v1824, %v2032
        %v2034 = vpop.f32.mrf.mxu0
        %v2035 = vpop.f32.mrf.mxu0
        %v2036 = vadd.f32 %v1827, %v2035
        %v2037 = vpop.f32.mrf.mxu0
        %2038 = vmatprep.mubr.bf16.mxu0 0
        %2039 = vmatmul.mubr.bf16.gmra.mxu0 %v1531
        %v2040 = vpop.f32.mrf.mxu0
        %v2041 = vadd.f32 %v1832, %v2040
        %v2042 = vpop.f32.mrf.mxu0
        %v2043 = vpop.f32.mrf.mxu0
        %v2044 = vadd.f32 %v1835, %v2043
        %v2045 = vpop.f32.mrf.mxu0
        %2046 = vmatprep.mubr.bf16.mxu0 0
        %2047 = vmatmul.mubr.bf16.gmra.mxu0 %v1532
        %v2048 = vpop.f32.mrf.mxu0
        %v2049 = vadd.f32 %v1840, %v2048
        %v2050 = vpop.f32.mrf.mxu0
        %v2051 = vpop.f32.mrf.mxu0
        %v2052 = vadd.f32 %v1843, %v2051
        %v2053 = vpop.f32.mrf.mxu0
        %2054 = vmatprep.mubr.bf16.mxu0 0
        %2055 = vmatmul.mubr.bf16.gmra.mxu0 %v1533
        %v2056 = vpop.f32.mrf.mxu0
        %v2057 = vadd.f32 %v1848, %v2056
        %v2058 = vpop.f32.mrf.mxu0
        %v2059 = vpop.f32.mrf.mxu0
        %v2060 = vadd.f32 %v1851, %v2059
        %v2061 = vpop.f32.mrf.mxu0
        %2062 = vmatprep.mubr.bf16.mxu0 0
        %2063 = vmatmul.mubr.bf16.gmra.mxu0 %v1534
        %v2064 = vpop.f32.mrf.mxu0
        %v2065 = vadd.f32 %v1856, %v2064
        %v2066 = vpop.f32.mrf.mxu0
        %v2067 = vpop.f32.mrf.mxu0
        %v2068 = vadd.f32 %v1859, %v2067
        %v2069 = vpop.f32.mrf.mxu0
        %2070 = vmatprep.mubr.bf16.mxu0 0
        %2071 = vmatmul.mubr.bf16.gmra.mxu0 %v1535
        %v2072 = vpop.f32.mrf.mxu0
        %v2073 = vadd.f32 %v1864, %v2072
        %v2074 = vpop.f32.mrf.mxu0
        %v2075 = vpop.f32.mrf.mxu0
        %v2076 = vadd.f32 %v1867, %v2075
        %v2077 = vpop.f32.mrf.mxu0
        %2078 = vmatprep.mubr.bf16.mxu0 0
        %2079 = vmatmul.mubr.bf16.gmra.mxu0 %v1536
        %v2080 = vpop.f32.mrf.mxu0
        %v2081 = vadd.f32 %v1872, %v2080
        %v2082 = vpop.f32.mrf.mxu0
        %v2083 = vpop.f32.mrf.mxu0
        %v2084 = vadd.f32 %v1875, %v2083
        %v2085 = vpop.f32.mrf.mxu0
        %2086 = vmatprep.mubr.bf16.mxu0 0
        %2087 = vmatmul.mubr.bf16.gmra.mxu0 %v1537
        %v2088 = vpop.f32.mrf.mxu0
        %v2089 = vadd.f32 %v1880, %v2088
        %v2090 = vpop.f32.mrf.mxu0
        %v2091 = vpop.f32.mrf.mxu0
        %v2092 = vadd.f32 %v1883, %v2091
        %v2093 = vpop.f32.mrf.mxu0
        %2094 = vmatprep.mubr.bf16.mxu0 0
        %2095 = vmatmul.mubr.bf16.gmra.mxu0 %v1538
        %v2096 = vpop.f32.mrf.mxu0
        %v2097 = vadd.f32 %v1888, %v2096
        %v2098 = vpop.f32.mrf.mxu0
        %v2099 = vpop.f32.mrf.mxu0
        %v2100 = vadd.f32 %v1891, %v2099
        %v2101 = vpop.f32.mrf.mxu0
        %2102 = vmatprep.mubr.bf16.mxu0 0
        %2103 = vmatmul.mubr.bf16.gmra.mxu0 %v1539
        %v2104 = vpop.f32.mrf.mxu0
        %v2105 = vadd.f32 %v1896, %v2104
        %v2106 = vpop.f32.mrf.mxu0
        %v2107 = vpop.f32.mrf.mxu0
        %v2108 = vadd.f32 %v1899, %v2107
        %v2109 = vpop.f32.mrf.mxu0
        %2110 = vmatprep.mubr.bf16.mxu0 0
        %2111 = vmatmul.mubr.bf16.gmra.mxu0 %v1540
        %v2112 = vpop.f32.mrf.mxu0
        %v2113 = vadd.f32 %v1904, %v2112
        %v2114 = vpop.f32.mrf.mxu0
        %v2115 = vpop.f32.mrf.mxu0
        %v2116 = vadd.f32 %v1907, %v2115
        %v2117 = vpop.f32.mrf.mxu0
        %2118 = vmatprep.mubr.bf16.mxu0 0
        %2119 = vmatmul.mubr.bf16.gmra.mxu0 %v1541
        %v2120 = vpop.f32.mrf.mxu0
        %v2121 = vadd.f32 %v1912, %v2120
        %v2122 = vpop.f32.mrf.mxu0
        %v2123 = vpop.f32.mrf.mxu0
        %v2124 = vadd.f32 %v1915, %v2123
        %v2125 = vpop.f32.mrf.mxu0
        %2126 = vmatprep.mubr.bf16.mxu0 0
        %2127 = vmatmul.mubr.bf16.gmra.mxu0 %v1542
        %v2128 = vpop.f32.mrf.mxu0
        %v2129 = vadd.f32 %v1920, %v2128
        %v2130 = vpop.f32.mrf.mxu0
        %v2131 = vpop.f32.mrf.mxu0
        %v2132 = vadd.f32 %v1923, %v2131
        %v2133 = vpop.f32.mrf.mxu0
        %2134 = vmatprep.mubr.bf16.mxu0 0
        %2135 = vmatmul.mubr.bf16.gmra.mxu0 %v1543
        %v2136 = vpop.f32.mrf.mxu0
        %v2137 = vadd.f32 %v1928, %v2136
        %v2138 = vpop.f32.mrf.mxu0
        %v2139 = vpop.f32.mrf.mxu0
        %v2140 = vadd.f32 %v1931, %v2139
        %v2141 = vpop.f32.mrf.mxu0
        %2142 = vmatprep.mubr.bf16.mxu0 0
        %2143 = vmatmul.mubr.bf16.gmra.mxu0 %v1544
        %v2144 = vpop.f32.mrf.mxu0
        %v2145 = vadd.f32 %v1936, %v2144
        %v2146 = vpop.f32.mrf.mxu0
        %v2147 = vpop.f32.mrf.mxu0
        %v2148 = vadd.f32 %v1939, %v2147
        %v2149 = vpop.f32.mrf.mxu0
        %2150 = vmatprep.mubr.bf16.mxu0 0
        %2151 = vmatmul.mubr.bf16.gmra.mxu0 %v1545
        %v2152 = vpop.f32.mrf.mxu0
        %v2153 = vadd.f32 %v1944, %v2152
        %v2154 = vpop.f32.mrf.mxu0
        %v2155 = vpop.f32.mrf.mxu0
        %v2156 = vadd.f32 %v1947, %v2155
        %v2157 = vpop.f32.mrf.mxu0
        %2158 = vdwg.mxu0
        %s2159 = scalar_lea.vmem %s5, 128
        %v2160 = vld [vmem:[%s2159] sm:$0xf]
        %v2161 = vld [vmem:[%s2159 + $0x4] sm:$0xf]
        %v2162 = vld [vmem:[%s2159 + $0x8] sm:$0xf]
        %v2163 = vld [vmem:[%s2159 + $0xc] sm:$0xf]
        %v2164 = vld [vmem:[%s2159 + $0x10] sm:$0xf]
        %v2165 = vld [vmem:[%s2159 + $0x14] sm:$0xf]
        %v2166 = vld [vmem:[%s2159 + $0x18] sm:$0xf]
        %v2167 = vld [vmem:[%s2159 + $0x1c] sm:$0xf]
        %v2168 = vld [vmem:[%s2159 + $0x20] sm:$0xf]
        %v2169 = vld [vmem:[%s2159 + $0x24] sm:$0xf]
        %v2170 = vld [vmem:[%s2159 + $0x28] sm:$0xf]
        %v2171 = vld [vmem:[%s2159 + $0x2c] sm:$0xf]
        %v2172 = vld [vmem:[%s2159 + $0x30] sm:$0xf]
        %v2173 = vld [vmem:[%s2159 + $0x34] sm:$0xf]
        %v2174 = vld [vmem:[%s2159 + $0x38] sm:$0xf]
        %v2175 = vld [vmem:[%s2159 + $0x3c] sm:$0xf]
        %v2192 = vunpack.c.l.b16 %v2160
        %v2193 = vunpack.c.l.b16 %v2161
        %v2194 = vunpack.c.l.b16 %v2162
        %v2195 = vunpack.c.l.b16 %v2163
        %v2196 = vunpack.c.l.b16 %v2164
        %v2197 = vunpack.c.l.b16 %v2165
        %v2198 = vunpack.c.l.b16 %v2166
        %v2199 = vunpack.c.l.b16 %v2167
        %v2200 = vunpack.c.l.b16 %v2168
        %v2201 = vunpack.c.l.b16 %v2169
        %v2202 = vunpack.c.l.b16 %v2170
        %v2203 = vunpack.c.l.b16 %v2171
        %v2204 = vunpack.c.l.b16 %v2172
        %v2205 = vunpack.c.l.b16 %v2173
        %v2206 = vunpack.c.l.b16 %v2174
        %v2207 = vunpack.c.l.b16 %v2175
        %v2208 = vpack.c.b16 %v2193, %v2192
        %v2209 = vpack.c.b16 %v2195, %v2194
        %v2210 = vpack.c.b16 %v2197, %v2196
        %v2211 = vpack.c.b16 %v2199, %v2198
        %v2212 = vpack.c.b16 %v2201, %v2200
        %v2213 = vpack.c.b16 %v2203, %v2202
        %v2214 = vpack.c.b16 %v2205, %v2204
        %v2215 = vpack.c.b16 %v2207, %v2206
        %2224 = vmatprep.subr.bf16.mxu0 0
        %2225 = vmatpush1.bf16.msra.mxu0 %v2215
        %2226 = vmatprep.subr.bf16.mxu0 0
        %2227 = vmatpush1.bf16.msra.mxu0 %v2214
        %2228 = vmatprep.subr.bf16.mxu0 0
        %2229 = vmatpush1.bf16.msra.mxu0 %v2213
        %2230 = vmatprep.subr.bf16.mxu0 0
        %2231 = vmatpush1.bf16.msra.mxu0 %v2212
        %2232 = vmatprep.subr.bf16.mxu0 0
        %2233 = vmatpush1.bf16.msra.mxu0 %v2211
        %2234 = vmatprep.subr.bf16.mxu0 0
        %2235 = vmatpush1.bf16.msra.mxu0 %v2210
        %2236 = vmatprep.subr.bf16.mxu0 0
        %2237 = vmatpush1.bf16.msra.mxu0 %v2209
        %2238 = vmatprep.subr.bf16.mxu0 0
        %2239 = vmatpush1.bf16.msra.mxu0 %v2208
        %2240 = vmatprep.subr.bf16.mxu0 0
        %2241 = vmatpush2.bf16.msra.mxu0 0
        %2242 = vmatprep.subr.bf16.mxu0 0
        %2243 = vmatpush2.bf16.msra.mxu0 0
        %2244 = vmatprep.subr.bf16.mxu0 0
        %2245 = vmatpush2.bf16.msra.mxu0 0
        %2246 = vmatprep.subr.bf16.mxu0 0
        %2247 = vmatpush2.bf16.msra.mxu0 0
        %2248 = vmatprep.subr.bf16.mxu0 0
        %2249 = vmatpush2.bf16.msra.mxu0 0
        %2250 = vmatprep.subr.bf16.mxu0 0
        %2251 = vmatpush2.bf16.msra.mxu0 0
        %2252 = vmatprep.subr.bf16.mxu0 0
        %2253 = vmatpush2.bf16.msra.mxu0 0
        %2254 = vmatprep.subr.bf16.mxu0 0
        %2255 = vmatpush2.bf16.msra.mxu0 0
        %2256 = vmatprep.mubr.bf16.mxu0 0
        %2257 = vmatmul.mubr.bf16.gmra.mxu0 0
        %v2258 = vpop.f32.mrf.mxu0
        %v2259 = vadd.f32 0.0, %v2258
        %v2260 = vpop.f32.mrf.mxu0
        %v2261 = vpop.f32.mrf.mxu0
        %v2262 = vadd.f32 0.0, %v2261
        %v2263 = vpop.f32.mrf.mxu0
        %2264 = vmatprep.mubr.bf16.mxu0 0
        %2265 = vmatmul.mubr.bf16.gmra.mxu0 %v1692
        %v2266 = vpop.f32.mrf.mxu0
        %v2267 = vadd.f32 0.0, %v2266
        %v2268 = vpop.f32.mrf.mxu0
        %v2269 = vpop.f32.mrf.mxu0
        %v2270 = vadd.f32 0.0, %v2269
        %v2271 = vpop.f32.mrf.mxu0
        %2272 = vmatprep.mubr.bf16.mxu0 0
        %2273 = vmatmul.mubr.bf16.gmra.mxu0 %v1693
        %v2274 = vpop.f32.mrf.mxu0
        %v2275 = vadd.f32 0.0, %v2274
        %v2276 = vpop.f32.mrf.mxu0
        %v2277 = vpop.f32.mrf.mxu0
        %v2278 = vadd.f32 0.0, %v2277
        %v2279 = vpop.f32.mrf.mxu0
        %2280 = vmatprep.mubr.bf16.mxu0 0
        %2281 = vmatmul.mubr.bf16.gmra.mxu0 %v1694
        %v2282 = vpop.f32.mrf.mxu0
        %v2283 = vadd.f32 0.0, %v2282
        %v2284 = vpop.f32.mrf.mxu0
        %v2285 = vpop.f32.mrf.mxu0
        %v2286 = vadd.f32 0.0, %v2285
        %v2287 = vpop.f32.mrf.mxu0
        %2288 = vmatprep.mubr.bf16.mxu0 0
        %2289 = vmatmul.mubr.bf16.gmra.mxu0 %v1695
        %v2290 = vpop.f32.mrf.mxu0
        %v2291 = vadd.f32 0.0, %v2290
        %v2292 = vpop.f32.mrf.mxu0
        %v2293 = vpop.f32.mrf.mxu0
        %v2294 = vadd.f32 0.0, %v2293
        %v2295 = vpop.f32.mrf.mxu0
        %2296 = vmatprep.mubr.bf16.mxu0 0
        %2297 = vmatmul.mubr.bf16.gmra.mxu0 %v1696
        %v2298 = vpop.f32.mrf.mxu0
        %v2299 = vadd.f32 0.0, %v2298
        %v2300 = vpop.f32.mrf.mxu0
        %v2301 = vpop.f32.mrf.mxu0
        %v2302 = vadd.f32 0.0, %v2301
        %v2303 = vpop.f32.mrf.mxu0
        %2304 = vmatprep.mubr.bf16.mxu0 0
        %2305 = vmatmul.mubr.bf16.gmra.mxu0 %v1697
        %v2306 = vpop.f32.mrf.mxu0
        %v2307 = vadd.f32 0.0, %v2306
        %v2308 = vpop.f32.mrf.mxu0
        %v2309 = vpop.f32.mrf.mxu0
        %v2310 = vadd.f32 0.0, %v2309
        %v2311 = vpop.f32.mrf.mxu0
        %2312 = vmatprep.mubr.bf16.mxu0 0
        %2313 = vmatmul.mubr.bf16.gmra.mxu0 %v1698
        %v2314 = vpop.f32.mrf.mxu0
        %v2315 = vadd.f32 0.0, %v2314
        %v2316 = vpop.f32.mrf.mxu0
        %v2317 = vpop.f32.mrf.mxu0
        %v2318 = vadd.f32 0.0, %v2317
        %v2319 = vpop.f32.mrf.mxu0
        %2320 = vmatprep.mubr.bf16.mxu0 0
        %2321 = vmatmul.mubr.bf16.gmra.mxu0 %v1699
        %v2322 = vpop.f32.mrf.mxu0
        %v2323 = vadd.f32 0.0, %v2322
        %v2324 = vpop.f32.mrf.mxu0
        %v2325 = vpop.f32.mrf.mxu0
        %v2326 = vadd.f32 0.0, %v2325
        %v2327 = vpop.f32.mrf.mxu0
        %2328 = vmatprep.mubr.bf16.mxu0 0
        %2329 = vmatmul.mubr.bf16.gmra.mxu0 %v1700
        %v2330 = vpop.f32.mrf.mxu0
        %v2331 = vadd.f32 0.0, %v2330
        %v2332 = vpop.f32.mrf.mxu0
        %v2333 = vpop.f32.mrf.mxu0
        %v2334 = vadd.f32 0.0, %v2333
        %v2335 = vpop.f32.mrf.mxu0
        %2336 = vmatprep.mubr.bf16.mxu0 0
        %2337 = vmatmul.mubr.bf16.gmra.mxu0 %v1701
        %v2338 = vpop.f32.mrf.mxu0
        %v2339 = vadd.f32 0.0, %v2338
        %v2340 = vpop.f32.mrf.mxu0
        %v2341 = vpop.f32.mrf.mxu0
        %v2342 = vadd.f32 0.0, %v2341
        %v2343 = vpop.f32.mrf.mxu0
        %2344 = vmatprep.mubr.bf16.mxu0 0
        %2345 = vmatmul.mubr.bf16.gmra.mxu0 %v1702
        %v2346 = vpop.f32.mrf.mxu0
        %v2347 = vadd.f32 0.0, %v2346
        %v2348 = vpop.f32.mrf.mxu0
        %v2349 = vpop.f32.mrf.mxu0
        %v2350 = vadd.f32 0.0, %v2349
        %v2351 = vpop.f32.mrf.mxu0
        %2352 = vmatprep.mubr.bf16.mxu0 0
        %2353 = vmatmul.mubr.bf16.gmra.mxu0 %v1703
        %v2354 = vpop.f32.mrf.mxu0
        %v2355 = vadd.f32 0.0, %v2354
        %v2356 = vpop.f32.mrf.mxu0
        %v2357 = vpop.f32.mrf.mxu0
        %v2358 = vadd.f32 0.0, %v2357
        %v2359 = vpop.f32.mrf.mxu0
        %2360 = vmatprep.mubr.bf16.mxu0 0
        %2361 = vmatmul.mubr.bf16.gmra.mxu0 %v1704
        %v2362 = vpop.f32.mrf.mxu0
        %v2363 = vadd.f32 0.0, %v2362
        %v2364 = vpop.f32.mrf.mxu0
        %v2365 = vpop.f32.mrf.mxu0
        %v2366 = vadd.f32 0.0, %v2365
        %v2367 = vpop.f32.mrf.mxu0
        %2368 = vmatprep.mubr.bf16.mxu0 0
        %2369 = vmatmul.mubr.bf16.gmra.mxu0 %v1705
        %v2370 = vpop.f32.mrf.mxu0
        %v2371 = vadd.f32 0.0, %v2370
        %v2372 = vpop.f32.mrf.mxu0
        %v2373 = vpop.f32.mrf.mxu0
        %v2374 = vadd.f32 0.0, %v2373
        %v2375 = vpop.f32.mrf.mxu0
        %2376 = vmatprep.mubr.bf16.mxu0 0
        %2377 = vmatmul.mubr.bf16.gmra.mxu0 %v1706
        %v2378 = vpop.f32.mrf.mxu0
        %v2379 = vadd.f32 0.0, %v2378
        %v2380 = vpop.f32.mrf.mxu0
        %v2381 = vpop.f32.mrf.mxu0
        %v2382 = vadd.f32 0.0, %v2381
        %v2383 = vpop.f32.mrf.mxu0
        %2384 = vdwg.mxu0
        %v2385 = vadd.f32 %v2033, %v2259
        %v2386 = vadd.f32 %v2036, %v2262
        %v2387 = vadd.f32 %v2041, %v2267
        %v2388 = vadd.f32 %v2044, %v2270
        %v2389 = vadd.f32 %v2049, %v2275
        %v2390 = vadd.f32 %v2052, %v2278
        %v2391 = vadd.f32 %v2057, %v2283
        %v2392 = vadd.f32 %v2060, %v2286
        %v2393 = vadd.f32 %v2065, %v2291
        %v2394 = vadd.f32 %v2068, %v2294
        %v2395 = vadd.f32 %v2073, %v2299
        %v2396 = vadd.f32 %v2076, %v2302
        %v2397 = vadd.f32 %v2081, %v2307
        %v2398 = vadd.f32 %v2084, %v2310
        %v2399 = vadd.f32 %v2089, %v2315
        %v2400 = vadd.f32 %v2092, %v2318
        %v2401 = vadd.f32 %v2097, %v2323
        %v2402 = vadd.f32 %v2100, %v2326
        %v2403 = vadd.f32 %v2105, %v2331
        %v2404 = vadd.f32 %v2108, %v2334
        %v2405 = vadd.f32 %v2113, %v2339
        %v2406 = vadd.f32 %v2116, %v2342
        %v2407 = vadd.f32 %v2121, %v2347
        %v2408 = vadd.f32 %v2124, %v2350
        %v2409 = vadd.f32 %v2129, %v2355
        %v2410 = vadd.f32 %v2132, %v2358
        %v2411 = vadd.f32 %v2137, %v2363
        %v2412 = vadd.f32 %v2140, %v2366
        %v2413 = vadd.f32 %v2145, %v2371
        %v2414 = vadd.f32 %v2148, %v2374
        %v2415 = vadd.f32 %v2153, %v2379
        %v2416 = vadd.f32 %v2156, %v2382
        %s2417 = scalar_lea.vmem %s5, 192
        %v2418 = vld [vmem:[%s2417] sm:$0xf]
        %v2419 = vld [vmem:[%s2417 + $0x4] sm:$0xf]
        %v2420 = vld [vmem:[%s2417 + $0x8] sm:$0xf]
        %v2421 = vld [vmem:[%s2417 + $0xc] sm:$0xf]
        %v2422 = vld [vmem:[%s2417 + $0x10] sm:$0xf]
        %v2423 = vld [vmem:[%s2417 + $0x14] sm:$0xf]
        %v2424 = vld [vmem:[%s2417 + $0x18] sm:$0xf]
        %v2425 = vld [vmem:[%s2417 + $0x1c] sm:$0xf]
        %v2426 = vld [vmem:[%s2417 + $0x20] sm:$0xf]
        %v2427 = vld [vmem:[%s2417 + $0x24] sm:$0xf]
        %v2428 = vld [vmem:[%s2417 + $0x28] sm:$0xf]
        %v2429 = vld [vmem:[%s2417 + $0x2c] sm:$0xf]
        %v2430 = vld [vmem:[%s2417 + $0x30] sm:$0xf]
        %v2431 = vld [vmem:[%s2417 + $0x34] sm:$0xf]
        %v2432 = vld [vmem:[%s2417 + $0x38] sm:$0xf]
        %v2433 = vld [vmem:[%s2417 + $0x3c] sm:$0xf]
        %v2450 = vunpack.c.l.b16 %v2418
        %v2451 = vunpack.c.l.b16 %v2419
        %v2452 = vunpack.c.l.b16 %v2420
        %v2453 = vunpack.c.l.b16 %v2421
        %v2454 = vunpack.c.l.b16 %v2422
        %v2455 = vunpack.c.l.b16 %v2423
        %v2456 = vunpack.c.l.b16 %v2424
        %v2457 = vunpack.c.l.b16 %v2425
        %v2458 = vunpack.c.l.b16 %v2426
        %v2459 = vunpack.c.l.b16 %v2427
        %v2460 = vunpack.c.l.b16 %v2428
        %v2461 = vunpack.c.l.b16 %v2429
        %v2462 = vunpack.c.l.b16 %v2430
        %v2463 = vunpack.c.l.b16 %v2431
        %v2464 = vunpack.c.l.b16 %v2432
        %v2465 = vunpack.c.l.b16 %v2433
        %v2466 = vpack.c.b16 %v2451, %v2450
        %v2467 = vpack.c.b16 %v2453, %v2452
        %v2468 = vpack.c.b16 %v2455, %v2454
        %v2469 = vpack.c.b16 %v2457, %v2456
        %v2470 = vpack.c.b16 %v2459, %v2458
        %v2471 = vpack.c.b16 %v2461, %v2460
        %v2472 = vpack.c.b16 %v2463, %v2462
        %v2473 = vpack.c.b16 %v2465, %v2464
        %2482 = vmatprep.subr.bf16.mxu0 0
        %2483 = vmatpush1.bf16.msra.mxu0 %v2473
        %2484 = vmatprep.subr.bf16.mxu0 0
        %2485 = vmatpush1.bf16.msra.mxu0 %v2472
        %2486 = vmatprep.subr.bf16.mxu0 0
        %2487 = vmatpush1.bf16.msra.mxu0 %v2471
        %2488 = vmatprep.subr.bf16.mxu0 0
        %2489 = vmatpush1.bf16.msra.mxu0 %v2470
        %2490 = vmatprep.subr.bf16.mxu0 0
        %2491 = vmatpush1.bf16.msra.mxu0 %v2469
        %2492 = vmatprep.subr.bf16.mxu0 0
        %2493 = vmatpush1.bf16.msra.mxu0 %v2468
        %2494 = vmatprep.subr.bf16.mxu0 0
        %2495 = vmatpush1.bf16.msra.mxu0 %v2467
        %2496 = vmatprep.subr.bf16.mxu0 0
        %2497 = vmatpush1.bf16.msra.mxu0 %v2466
        %2498 = vmatprep.subr.bf16.mxu0 0
        %2499 = vmatpush2.bf16.msra.mxu0 0
        %2500 = vmatprep.subr.bf16.mxu0 0
        %2501 = vmatpush2.bf16.msra.mxu0 0
        %2502 = vmatprep.subr.bf16.mxu0 0
        %2503 = vmatpush2.bf16.msra.mxu0 0
        %2504 = vmatprep.subr.bf16.mxu0 0
        %2505 = vmatpush2.bf16.msra.mxu0 0
        %2506 = vmatprep.subr.bf16.mxu0 0
        %2507 = vmatpush2.bf16.msra.mxu0 0
        %2508 = vmatprep.subr.bf16.mxu0 0
        %2509 = vmatpush2.bf16.msra.mxu0 0
        %2510 = vmatprep.subr.bf16.mxu0 0
        %2511 = vmatpush2.bf16.msra.mxu0 0
        %2512 = vmatprep.subr.bf16.mxu0 0
        %2513 = vmatpush2.bf16.msra.mxu0 0
        %2514 = vmatprep.mubr.bf16.mxu0 0
        %2515 = vmatmul.mubr.bf16.gmra.mxu0 %v1531
        %v2516 = vpop.f32.mrf.mxu0
        %v2517 = vadd.f32 0.0, %v2516
        %v2518 = vpop.f32.mrf.mxu0
        %v2519 = vpop.f32.mrf.mxu0
        %v2520 = vadd.f32 0.0, %v2519
        %v2521 = vpop.f32.mrf.mxu0
        %2522 = vmatprep.mubr.bf16.mxu0 0
        %2523 = vmatmul.mubr.bf16.gmra.mxu0 %v1532
        %v2524 = vpop.f32.mrf.mxu0
        %v2525 = vadd.f32 0.0, %v2524
        %v2526 = vpop.f32.mrf.mxu0
        %v2527 = vpop.f32.mrf.mxu0
        %v2528 = vadd.f32 0.0, %v2527
        %v2529 = vpop.f32.mrf.mxu0
        %2530 = vmatprep.mubr.bf16.mxu0 0
        %2531 = vmatmul.mubr.bf16.gmra.mxu0 %v1533
        %v2532 = vpop.f32.mrf.mxu0
        %v2533 = vadd.f32 0.0, %v2532
        %v2534 = vpop.f32.mrf.mxu0
        %v2535 = vpop.f32.mrf.mxu0
        %v2536 = vadd.f32 0.0, %v2535
        %v2537 = vpop.f32.mrf.mxu0
        %2538 = vmatprep.mubr.bf16.mxu0 0
        %2539 = vmatmul.mubr.bf16.gmra.mxu0 %v1534
        %v2540 = vpop.f32.mrf.mxu0
        %v2541 = vadd.f32 0.0, %v2540
        %v2542 = vpop.f32.mrf.mxu0
        %v2543 = vpop.f32.mrf.mxu0
        %v2544 = vadd.f32 0.0, %v2543
        %v2545 = vpop.f32.mrf.mxu0
        %2546 = vmatprep.mubr.bf16.mxu0 0
        %2547 = vmatmul.mubr.bf16.gmra.mxu0 %v1535
        %v2548 = vpop.f32.mrf.mxu0
        %v2549 = vadd.f32 0.0, %v2548
        %v2550 = vpop.f32.mrf.mxu0
        %v2551 = vpop.f32.mrf.mxu0
        %v2552 = vadd.f32 0.0, %v2551
        %v2553 = vpop.f32.mrf.mxu0
        %2554 = vmatprep.mubr.bf16.mxu0 0
        %2555 = vmatmul.mubr.bf16.gmra.mxu0 %v1536
        %v2556 = vpop.f32.mrf.mxu0
        %v2557 = vadd.f32 0.0, %v2556
        %v2558 = vpop.f32.mrf.mxu0
        %v2559 = vpop.f32.mrf.mxu0
        %v2560 = vadd.f32 0.0, %v2559
        %v2561 = vpop.f32.mrf.mxu0
        %2562 = vmatprep.mubr.bf16.mxu0 0
        %2563 = vmatmul.mubr.bf16.gmra.mxu0 %v1537
        %v2564 = vpop.f32.mrf.mxu0
        %v2565 = vadd.f32 0.0, %v2564
        %v2566 = vpop.f32.mrf.mxu0
        %v2567 = vpop.f32.mrf.mxu0
        %v2568 = vadd.f32 0.0, %v2567
        %v2569 = vpop.f32.mrf.mxu0
        %2570 = vmatprep.mubr.bf16.mxu0 0
        %2571 = vmatmul.mubr.bf16.gmra.mxu0 %v1538
        %v2572 = vpop.f32.mrf.mxu0
        %v2573 = vadd.f32 0.0, %v2572
        %v2574 = vpop.f32.mrf.mxu0
        %v2575 = vpop.f32.mrf.mxu0
        %v2576 = vadd.f32 0.0, %v2575
        %v2577 = vpop.f32.mrf.mxu0
        %2578 = vmatprep.mubr.bf16.mxu0 0
        %2579 = vmatmul.mubr.bf16.gmra.mxu0 %v1539
        %v2580 = vpop.f32.mrf.mxu0
        %v2581 = vadd.f32 0.0, %v2580
        %v2582 = vpop.f32.mrf.mxu0
        %v2583 = vpop.f32.mrf.mxu0
        %v2584 = vadd.f32 0.0, %v2583
        %v2585 = vpop.f32.mrf.mxu0
        %2586 = vmatprep.mubr.bf16.mxu0 0
        %2587 = vmatmul.mubr.bf16.gmra.mxu0 %v1540
        %v2588 = vpop.f32.mrf.mxu0
        %v2589 = vadd.f32 0.0, %v2588
        %v2590 = vpop.f32.mrf.mxu0
        %v2591 = vpop.f32.mrf.mxu0
        %v2592 = vadd.f32 0.0, %v2591
        %v2593 = vpop.f32.mrf.mxu0
        %2594 = vmatprep.mubr.bf16.mxu0 0
        %2595 = vmatmul.mubr.bf16.gmra.mxu0 %v1541
        %v2596 = vpop.f32.mrf.mxu0
        %v2597 = vadd.f32 0.0, %v2596
        %v2598 = vpop.f32.mrf.mxu0
        %v2599 = vpop.f32.mrf.mxu0
        %v2600 = vadd.f32 0.0, %v2599
        %v2601 = vpop.f32.mrf.mxu0
        %2602 = vmatprep.mubr.bf16.mxu0 0
        %2603 = vmatmul.mubr.bf16.gmra.mxu0 %v1542
        %v2604 = vpop.f32.mrf.mxu0
        %v2605 = vadd.f32 0.0, %v2604
        %v2606 = vpop.f32.mrf.mxu0
        %v2607 = vpop.f32.mrf.mxu0
        %v2608 = vadd.f32 0.0, %v2607
        %v2609 = vpop.f32.mrf.mxu0
        %2610 = vmatprep.mubr.bf16.mxu0 0
        %2611 = vmatmul.mubr.bf16.gmra.mxu0 %v1543
        %v2612 = vpop.f32.mrf.mxu0
        %v2613 = vadd.f32 0.0, %v2612
        %v2614 = vpop.f32.mrf.mxu0
        %v2615 = vpop.f32.mrf.mxu0
        %v2616 = vadd.f32 0.0, %v2615
        %v2617 = vpop.f32.mrf.mxu0
        %2618 = vmatprep.mubr.bf16.mxu0 0
        %2619 = vmatmul.mubr.bf16.gmra.mxu0 %v1544
        %v2620 = vpop.f32.mrf.mxu0
        %v2621 = vadd.f32 0.0, %v2620
        %v2622 = vpop.f32.mrf.mxu0
        %v2623 = vpop.f32.mrf.mxu0
        %v2624 = vadd.f32 0.0, %v2623
        %v2625 = vpop.f32.mrf.mxu0
        %2626 = vmatprep.mubr.bf16.mxu0 0
        %2627 = vmatmul.mubr.bf16.gmra.mxu0 %v1545
        %v2628 = vpop.f32.mrf.mxu0
        %v2629 = vadd.f32 0.0, %v2628
        %v2630 = vpop.f32.mrf.mxu0
        %v2631 = vpop.f32.mrf.mxu0
        %v2632 = vadd.f32 0.0, %v2631
        %v2633 = vpop.f32.mrf.mxu0
        %2634 = vmatprep.mubr.bf16.mxu0 0
        %2635 = vmatmul.mubr.bf16.gmra.mxu0 %v1546
        %v2636 = vpop.f32.mrf.mxu0
        %v2637 = vadd.f32 0.0, %v2636
        %v2638 = vpop.f32.mrf.mxu0
        %v2639 = vpop.f32.mrf.mxu0
        %v2640 = vadd.f32 0.0, %v2639
        %v2641 = vpop.f32.mrf.mxu0
        %2642 = vdwg.mxu0
        %v2643 = vadd.f32 %v2385, %v2517
        %v2644 = vadd.f32 %v2386, %v2520
        %v2645 = vadd.f32 %v2387, %v2525
        %v2646 = vadd.f32 %v2388, %v2528
        %v2647 = vadd.f32 %v2389, %v2533
        %v2648 = vadd.f32 %v2390, %v2536
        %v2649 = vadd.f32 %v2391, %v2541
        %v2650 = vadd.f32 %v2392, %v2544
        %v2651 = vadd.f32 %v2393, %v2549
        %v2652 = vadd.f32 %v2394, %v2552
        %v2653 = vadd.f32 %v2395, %v2557
        %v2654 = vadd.f32 %v2396, %v2560
        %v2655 = vadd.f32 %v2397, %v2565
        %v2656 = vadd.f32 %v2398, %v2568
        %v2657 = vadd.f32 %v2399, %v2573
        %v2658 = vadd.f32 %v2400, %v2576
        %v2659 = vadd.f32 %v2401, %v2581
        %v2660 = vadd.f32 %v2402, %v2584
        %v2661 = vadd.f32 %v2403, %v2589
        %v2662 = vadd.f32 %v2404, %v2592
        %v2663 = vadd.f32 %v2405, %v2597
        %v2664 = vadd.f32 %v2406, %v2600
        %v2665 = vadd.f32 %v2407, %v2605
        %v2666 = vadd.f32 %v2408, %v2608
        %v2667 = vadd.f32 %v2409, %v2613
        %v2668 = vadd.f32 %v2410, %v2616
        %v2669 = vadd.f32 %v2411, %v2621
        %v2670 = vadd.f32 %v2412, %v2624
        %v2671 = vadd.f32 %v2413, %v2629
        %v2672 = vadd.f32 %v2414, %v2632
        %v2673 = vadd.f32 %v2415, %v2637
        %v2674 = vadd.f32 %v2416, %v2640
        %s2675 = scalar_lea.vmem %s5, 256
        %v2676 = vld [vmem:[%s2675] sm:$0xf]
        %v2677 = vld [vmem:[%s2675 + $0x4] sm:$0xf]
        %v2678 = vld [vmem:[%s2675 + $0x8] sm:$0xf]
        %v2679 = vld [vmem:[%s2675 + $0xc] sm:$0xf]
        %v2680 = vld [vmem:[%s2675 + $0x10] sm:$0xf]
        %v2681 = vld [vmem:[%s2675 + $0x14] sm:$0xf]
        %v2682 = vld [vmem:[%s2675 + $0x18] sm:$0xf]
        %v2683 = vld [vmem:[%s2675 + $0x1c] sm:$0xf]
        %v2684 = vld [vmem:[%s2675 + $0x20] sm:$0xf]
        %v2685 = vld [vmem:[%s2675 + $0x24] sm:$0xf]
        %v2686 = vld [vmem:[%s2675 + $0x28] sm:$0xf]
        %v2687 = vld [vmem:[%s2675 + $0x2c] sm:$0xf]
        %v2688 = vld [vmem:[%s2675 + $0x30] sm:$0xf]
        %v2689 = vld [vmem:[%s2675 + $0x34] sm:$0xf]
        %v2690 = vld [vmem:[%s2675 + $0x38] sm:$0xf]
        %v2691 = vld [vmem:[%s2675 + $0x3c] sm:$0xf]
        %v2708 = vunpack.c.l.b16 %v2676
        %v2709 = vunpack.c.l.b16 %v2677
        %v2710 = vunpack.c.l.b16 %v2678
        %v2711 = vunpack.c.l.b16 %v2679
        %v2712 = vunpack.c.l.b16 %v2680
        %v2713 = vunpack.c.l.b16 %v2681
        %v2714 = vunpack.c.l.b16 %v2682
        %v2715 = vunpack.c.l.b16 %v2683
        %v2716 = vunpack.c.l.b16 %v2684
        %v2717 = vunpack.c.l.b16 %v2685
        %v2718 = vunpack.c.l.b16 %v2686
        %v2719 = vunpack.c.l.b16 %v2687
        %v2720 = vunpack.c.l.b16 %v2688
        %v2721 = vunpack.c.l.b16 %v2689
        %v2722 = vunpack.c.l.b16 %v2690
        %v2723 = vunpack.c.l.b16 %v2691
        %v2724 = vpack.c.b16 %v2709, %v2708
        %v2725 = vpack.c.b16 %v2711, %v2710
        %v2726 = vpack.c.b16 %v2713, %v2712
        %v2727 = vpack.c.b16 %v2715, %v2714
        %v2728 = vpack.c.b16 %v2717, %v2716
        %v2729 = vpack.c.b16 %v2719, %v2718
        %v2730 = vpack.c.b16 %v2721, %v2720
        %v2731 = vpack.c.b16 %v2723, %v2722
        %2740 = vmatprep.subr.bf16.mxu0 0
        %2741 = vmatpush1.bf16.msra.mxu0 %v2731
        %2742 = vmatprep.subr.bf16.mxu0 0
        %2743 = vmatpush1.bf16.msra.mxu0 %v2730
        %2744 = vmatprep.subr.bf16.mxu0 0
        %2745 = vmatpush1.bf16.msra.mxu0 %v2729
        %2746 = vmatprep.subr.bf16.mxu0 0
        %2747 = vmatpush1.bf16.msra.mxu0 %v2728
        %2748 = vmatprep.subr.bf16.mxu0 0
        %2749 = vmatpush1.bf16.msra.mxu0 %v2727
        %2750 = vmatprep.subr.bf16.mxu0 0
        %2751 = vmatpush1.bf16.msra.mxu0 %v2726
        %2752 = vmatprep.subr.bf16.mxu0 0
        %2753 = vmatpush1.bf16.msra.mxu0 %v2725
        %2754 = vmatprep.subr.bf16.mxu0 0
        %2755 = vmatpush1.bf16.msra.mxu0 %v2724
        %2756 = vmatprep.subr.bf16.mxu0 0
        %2757 = vmatpush2.bf16.msra.mxu0 0
        %2758 = vmatprep.subr.bf16.mxu0 0
        %2759 = vmatpush2.bf16.msra.mxu0 0
        %2760 = vmatprep.subr.bf16.mxu0 0
        %2761 = vmatpush2.bf16.msra.mxu0 0
        %2762 = vmatprep.subr.bf16.mxu0 0
        %2763 = vmatpush2.bf16.msra.mxu0 0
        %2764 = vmatprep.subr.bf16.mxu0 0
        %2765 = vmatpush2.bf16.msra.mxu0 0
        %2766 = vmatprep.subr.bf16.mxu0 0
        %2767 = vmatpush2.bf16.msra.mxu0 0
        %2768 = vmatprep.subr.bf16.mxu0 0
        %2769 = vmatpush2.bf16.msra.mxu0 0
        %2770 = vmatprep.subr.bf16.mxu0 0
        %2771 = vmatpush2.bf16.msra.mxu0 0
        %2772 = vmatprep.mubr.bf16.mxu0 0
        %2773 = vmatmul.mubr.bf16.gmra.mxu0 %v1547
        %v2774 = vpop.f32.mrf.mxu0
        %v2775 = vadd.f32 0.0, %v2774
        %v2776 = vpop.f32.mrf.mxu0
        %v2777 = vpop.f32.mrf.mxu0
        %v2778 = vadd.f32 0.0, %v2777
        %v2779 = vpop.f32.mrf.mxu0
        %2780 = vmatprep.mubr.bf16.mxu0 0
        %2781 = vmatmul.mubr.bf16.gmra.mxu0 %v1548
        %v2782 = vpop.f32.mrf.mxu0
        %v2783 = vadd.f32 0.0, %v2782
        %v2784 = vpop.f32.mrf.mxu0
        %v2785 = vpop.f32.mrf.mxu0
        %v2786 = vadd.f32 0.0, %v2785
        %v2787 = vpop.f32.mrf.mxu0
        %2788 = vmatprep.mubr.bf16.mxu0 0
        %2789 = vmatmul.mubr.bf16.gmra.mxu0 %v1549
        %v2790 = vpop.f32.mrf.mxu0
        %v2791 = vadd.f32 0.0, %v2790
        %v2792 = vpop.f32.mrf.mxu0
        %v2793 = vpop.f32.mrf.mxu0
        %v2794 = vadd.f32 0.0, %v2793
        %v2795 = vpop.f32.mrf.mxu0
        %2796 = vmatprep.mubr.bf16.mxu0 0
        %2797 = vmatmul.mubr.bf16.gmra.mxu0 %v1550
        %v2798 = vpop.f32.mrf.mxu0
        %v2799 = vadd.f32 0.0, %v2798
        %v2800 = vpop.f32.mrf.mxu0
        %v2801 = vpop.f32.mrf.mxu0
        %v2802 = vadd.f32 0.0, %v2801
        %v2803 = vpop.f32.mrf.mxu0
        %2804 = vmatprep.mubr.bf16.mxu0 0
        %2805 = vmatmul.mubr.bf16.gmra.mxu0 %v1551
        %v2806 = vpop.f32.mrf.mxu0
        %v2807 = vadd.f32 0.0, %v2806
        %v2808 = vpop.f32.mrf.mxu0
        %v2809 = vpop.f32.mrf.mxu0
        %v2810 = vadd.f32 0.0, %v2809
        %v2811 = vpop.f32.mrf.mxu0
        %2812 = vmatprep.mubr.bf16.mxu0 0
        %2813 = vmatmul.mubr.bf16.gmra.mxu0 %v1552
        %v2814 = vpop.f32.mrf.mxu0
        %v2815 = vadd.f32 0.0, %v2814
        %v2816 = vpop.f32.mrf.mxu0
        %v2817 = vpop.f32.mrf.mxu0
        %v2818 = vadd.f32 0.0, %v2817
        %v2819 = vpop.f32.mrf.mxu0
        %2820 = vmatprep.mubr.bf16.mxu0 0
        %2821 = vmatmul.mubr.bf16.gmra.mxu0 %v1553
        %v2822 = vpop.f32.mrf.mxu0
        %v2823 = vadd.f32 0.0, %v2822
        %v2824 = vpop.f32.mrf.mxu0
        %v2825 = vpop.f32.mrf.mxu0
        %v2826 = vadd.f32 0.0, %v2825
        %v2827 = vpop.f32.mrf.mxu0
        %2828 = vmatprep.mubr.bf16.mxu0 0
        %2829 = vmatmul.mubr.bf16.gmra.mxu0 %v1554
        %v2830 = vpop.f32.mrf.mxu0
        %v2831 = vadd.f32 0.0, %v2830
        %v2832 = vpop.f32.mrf.mxu0
        %v2833 = vpop.f32.mrf.mxu0
        %v2834 = vadd.f32 0.0, %v2833
        %v2835 = vpop.f32.mrf.mxu0
        %2836 = vmatprep.mubr.bf16.mxu0 0
        %2837 = vmatmul.mubr.bf16.gmra.mxu0 %v1555
        %v2838 = vpop.f32.mrf.mxu0
        %v2839 = vadd.f32 0.0, %v2838
        %v2840 = vpop.f32.mrf.mxu0
        %v2841 = vpop.f32.mrf.mxu0
        %v2842 = vadd.f32 0.0, %v2841
        %v2843 = vpop.f32.mrf.mxu0
        %2844 = vmatprep.mubr.bf16.mxu0 0
        %2845 = vmatmul.mubr.bf16.gmra.mxu0 %v1556
        %v2846 = vpop.f32.mrf.mxu0
        %v2847 = vadd.f32 0.0, %v2846
        %v2848 = vpop.f32.mrf.mxu0
        %v2849 = vpop.f32.mrf.mxu0
        %v2850 = vadd.f32 0.0, %v2849
        %v2851 = vpop.f32.mrf.mxu0
        %2852 = vmatprep.mubr.bf16.mxu0 0
        %2853 = vmatmul.mubr.bf16.gmra.mxu0 %v1557
        %v2854 = vpop.f32.mrf.mxu0
        %v2855 = vadd.f32 0.0, %v2854
        %v2856 = vpop.f32.mrf.mxu0
        %v2857 = vpop.f32.mrf.mxu0
        %v2858 = vadd.f32 0.0, %v2857
        %v2859 = vpop.f32.mrf.mxu0
        %2860 = vmatprep.mubr.bf16.mxu0 0
        %2861 = vmatmul.mubr.bf16.gmra.mxu0 %v1558
        %v2862 = vpop.f32.mrf.mxu0
        %v2863 = vadd.f32 0.0, %v2862
        %v2864 = vpop.f32.mrf.mxu0
        %v2865 = vpop.f32.mrf.mxu0
        %v2866 = vadd.f32 0.0, %v2865
        %v2867 = vpop.f32.mrf.mxu0
        %2868 = vmatprep.mubr.bf16.mxu0 0
        %2869 = vmatmul.mubr.bf16.gmra.mxu0 %v1559
        %v2870 = vpop.f32.mrf.mxu0
        %v2871 = vadd.f32 0.0, %v2870
        %v2872 = vpop.f32.mrf.mxu0
        %v2873 = vpop.f32.mrf.mxu0
        %v2874 = vadd.f32 0.0, %v2873
        %v2875 = vpop.f32.mrf.mxu0
        %2876 = vmatprep.mubr.bf16.mxu0 0
        %2877 = vmatmul.mubr.bf16.gmra.mxu0 %v1560
        %v2878 = vpop.f32.mrf.mxu0
        %v2879 = vadd.f32 0.0, %v2878
        %v2880 = vpop.f32.mrf.mxu0
        %v2881 = vpop.f32.mrf.mxu0
        %v2882 = vadd.f32 0.0, %v2881
        %v2883 = vpop.f32.mrf.mxu0
        %2884 = vmatprep.mubr.bf16.mxu0 0
        %2885 = vmatmul.mubr.bf16.gmra.mxu0 %v1561
        %v2886 = vpop.f32.mrf.mxu0
        %v2887 = vadd.f32 0.0, %v2886
        %v2888 = vpop.f32.mrf.mxu0
        %v2889 = vpop.f32.mrf.mxu0
        %v2890 = vadd.f32 0.0, %v2889
        %v2891 = vpop.f32.mrf.mxu0
        %2892 = vmatprep.mubr.bf16.mxu0 0
        %2893 = vmatmul.mubr.bf16.gmra.mxu0 %v1562
        %v2894 = vpop.f32.mrf.mxu0
        %v2895 = vadd.f32 0.0, %v2894
        %v2896 = vpop.f32.mrf.mxu0
        %v2897 = vpop.f32.mrf.mxu0
        %v2898 = vadd.f32 0.0, %v2897
        %v2899 = vpop.f32.mrf.mxu0
        %2900 = vdwg.mxu0
        %v2901 = vadd.f32 %v2643, %v2775
        %v2902 = vadd.f32 %v2644, %v2778
        %v2903 = vadd.f32 %v2645, %v2783
        %v2904 = vadd.f32 %v2646, %v2786
        %v2905 = vadd.f32 %v2647, %v2791
        %v2906 = vadd.f32 %v2648, %v2794
        %v2907 = vadd.f32 %v2649, %v2799
        %v2908 = vadd.f32 %v2650, %v2802
        %v2909 = vadd.f32 %v2651, %v2807
        %v2910 = vadd.f32 %v2652, %v2810
        %v2911 = vadd.f32 %v2653, %v2815
        %v2912 = vadd.f32 %v2654, %v2818
        %v2913 = vadd.f32 %v2655, %v2823
        %v2914 = vadd.f32 %v2656, %v2826
        %v2915 = vadd.f32 %v2657, %v2831
        %v2916 = vadd.f32 %v2658, %v2834
        %v2917 = vadd.f32 %v2659, %v2839
        %v2918 = vadd.f32 %v2660, %v2842
        %v2919 = vadd.f32 %v2661, %v2847
        %v2920 = vadd.f32 %v2662, %v2850
        %v2921 = vadd.f32 %v2663, %v2855
        %v2922 = vadd.f32 %v2664, %v2858
        %v2923 = vadd.f32 %v2665, %v2863
        %v2924 = vadd.f32 %v2666, %v2866
        %v2925 = vadd.f32 %v2667, %v2871
        %v2926 = vadd.f32 %v2668, %v2874
        %v2927 = vadd.f32 %v2669, %v2879
        %v2928 = vadd.f32 %v2670, %v2882
        %v2929 = vadd.f32 %v2671, %v2887
        %v2930 = vadd.f32 %v2672, %v2890
        %v2931 = vadd.f32 %v2673, %v2895
        %v2932 = vadd.f32 %v2674, %v2898
        %s2933 = scalar_lea.vmem %s5, 320
        %v2934 = vld [vmem:[%s2933] sm:$0xf]
        %v2935 = vld [vmem:[%s2933 + $0x4] sm:$0xf]
        %v2936 = vld [vmem:[%s2933 + $0x8] sm:$0xf]
        %v2937 = vld [vmem:[%s2933 + $0xc] sm:$0xf]
        %v2938 = vld [vmem:[%s2933 + $0x10] sm:$0xf]
        %v2939 = vld [vmem:[%s2933 + $0x14] sm:$0xf]
        %v2940 = vld [vmem:[%s2933 + $0x18] sm:$0xf]
        %v2941 = vld [vmem:[%s2933 + $0x1c] sm:$0xf]
        %v2942 = vld [vmem:[%s2933 + $0x20] sm:$0xf]
        %v2943 = vld [vmem:[%s2933 + $0x24] sm:$0xf]
        %v2944 = vld [vmem:[%s2933 + $0x28] sm:$0xf]
        %v2945 = vld [vmem:[%s2933 + $0x2c] sm:$0xf]
        %v2946 = vld [vmem:[%s2933 + $0x30] sm:$0xf]
        %v2947 = vld [vmem:[%s2933 + $0x34] sm:$0xf]
        %v2948 = vld [vmem:[%s2933 + $0x38] sm:$0xf]
        %v2949 = vld [vmem:[%s2933 + $0x3c] sm:$0xf]
        %v2966 = vunpack.c.l.b16 %v2934
        %v2967 = vunpack.c.l.b16 %v2935
        %v2968 = vunpack.c.l.b16 %v2936
        %v2969 = vunpack.c.l.b16 %v2937
        %v2970 = vunpack.c.l.b16 %v2938
        %v2971 = vunpack.c.l.b16 %v2939
        %v2972 = vunpack.c.l.b16 %v2940
        %v2973 = vunpack.c.l.b16 %v2941
        %v2974 = vunpack.c.l.b16 %v2942
        %v2975 = vunpack.c.l.b16 %v2943
        %v2976 = vunpack.c.l.b16 %v2944
        %v2977 = vunpack.c.l.b16 %v2945
        %v2978 = vunpack.c.l.b16 %v2946
        %v2979 = vunpack.c.l.b16 %v2947
        %v2980 = vunpack.c.l.b16 %v2948
        %v2981 = vunpack.c.l.b16 %v2949
        %v2982 = vpack.c.b16 %v2967, %v2966
        %v2983 = vpack.c.b16 %v2969, %v2968
        %v2984 = vpack.c.b16 %v2971, %v2970
        %v2985 = vpack.c.b16 %v2973, %v2972
        %v2986 = vpack.c.b16 %v2975, %v2974
        %v2987 = vpack.c.b16 %v2977, %v2976
        %v2988 = vpack.c.b16 %v2979, %v2978
        %v2989 = vpack.c.b16 %v2981, %v2980
        %2998 = vmatprep.subr.bf16.mxu0 0
        %2999 = vmatpush1.bf16.msra.mxu0 %v2989
        %3000 = vmatprep.subr.bf16.mxu0 0
        %3001 = vmatpush1.bf16.msra.mxu0 %v2988
        %3002 = vmatprep.subr.bf16.mxu0 0
        %3003 = vmatpush1.bf16.msra.mxu0 %v2987
        %3004 = vmatprep.subr.bf16.mxu0 0
        %3005 = vmatpush1.bf16.msra.mxu0 %v2986
        %3006 = vmatprep.subr.bf16.mxu0 0
        %3007 = vmatpush1.bf16.msra.mxu0 %v2985
        %3008 = vmatprep.subr.bf16.mxu0 0
        %3009 = vmatpush1.bf16.msra.mxu0 %v2984
        %3010 = vmatprep.subr.bf16.mxu0 0
        %3011 = vmatpush1.bf16.msra.mxu0 %v2983
        %3012 = vmatprep.subr.bf16.mxu0 0
        %3013 = vmatpush1.bf16.msra.mxu0 %v2982
        %3014 = vmatprep.subr.bf16.mxu0 0
        %3015 = vmatpush2.bf16.msra.mxu0 0
        %3016 = vmatprep.subr.bf16.mxu0 0
        %3017 = vmatpush2.bf16.msra.mxu0 0
        %3018 = vmatprep.subr.bf16.mxu0 0
        %3019 = vmatpush2.bf16.msra.mxu0 0
        %3020 = vmatprep.subr.bf16.mxu0 0
        %3021 = vmatpush2.bf16.msra.mxu0 0
        %3022 = vmatprep.subr.bf16.mxu0 0
        %3023 = vmatpush2.bf16.msra.mxu0 0
        %3024 = vmatprep.subr.bf16.mxu0 0
        %3025 = vmatpush2.bf16.msra.mxu0 0
        %3026 = vmatprep.subr.bf16.mxu0 0
        %3027 = vmatpush2.bf16.msra.mxu0 0
        %3028 = vmatprep.subr.bf16.mxu0 0
        %3029 = vmatpush2.bf16.msra.mxu0 0
        %3030 = vmatprep.mubr.bf16.mxu0 0
        %3031 = vmatmul.mubr.bf16.gmra.mxu0 %v1692
        %v3032 = vpop.f32.mrf.mxu0
        %v3033 = vadd.f32 0.0, %v3032
        %v3034 = vpop.f32.mrf.mxu0
        %v3035 = vpop.f32.mrf.mxu0
        %v3036 = vadd.f32 0.0, %v3035
        %v3037 = vpop.f32.mrf.mxu0
        %3038 = vmatprep.mubr.bf16.mxu0 0
        %3039 = vmatmul.mubr.bf16.gmra.mxu0 %v1693
        %v3040 = vpop.f32.mrf.mxu0
        %v3041 = vadd.f32 0.0, %v3040
        %v3042 = vpop.f32.mrf.mxu0
        %v3043 = vpop.f32.mrf.mxu0
        %v3044 = vadd.f32 0.0, %v3043
        %v3045 = vpop.f32.mrf.mxu0
        %3046 = vmatprep.mubr.bf16.mxu0 0
        %3047 = vmatmul.mubr.bf16.gmra.mxu0 %v1694
        %v3048 = vpop.f32.mrf.mxu0
        %v3049 = vadd.f32 0.0, %v3048
        %v3050 = vpop.f32.mrf.mxu0
        %v3051 = vpop.f32.mrf.mxu0
        %v3052 = vadd.f32 0.0, %v3051
        %v3053 = vpop.f32.mrf.mxu0
        %3054 = vmatprep.mubr.bf16.mxu0 0
        %3055 = vmatmul.mubr.bf16.gmra.mxu0 %v1695
        %v3056 = vpop.f32.mrf.mxu0
        %v3057 = vadd.f32 0.0, %v3056
        %v3058 = vpop.f32.mrf.mxu0
        %v3059 = vpop.f32.mrf.mxu0
        %v3060 = vadd.f32 0.0, %v3059
        %v3061 = vpop.f32.mrf.mxu0
        %3062 = vmatprep.mubr.bf16.mxu0 0
        %3063 = vmatmul.mubr.bf16.gmra.mxu0 %v1696
        %v3064 = vpop.f32.mrf.mxu0
        %v3065 = vadd.f32 0.0, %v3064
        %v3066 = vpop.f32.mrf.mxu0
        %v3067 = vpop.f32.mrf.mxu0
        %v3068 = vadd.f32 0.0, %v3067
        %v3069 = vpop.f32.mrf.mxu0
        %3070 = vmatprep.mubr.bf16.mxu0 0
        %3071 = vmatmul.mubr.bf16.gmra.mxu0 %v1697
        %v3072 = vpop.f32.mrf.mxu0
        %v3073 = vadd.f32 0.0, %v3072
        %v3074 = vpop.f32.mrf.mxu0
        %v3075 = vpop.f32.mrf.mxu0
        %v3076 = vadd.f32 0.0, %v3075
        %v3077 = vpop.f32.mrf.mxu0
        %3078 = vmatprep.mubr.bf16.mxu0 0
        %3079 = vmatmul.mubr.bf16.gmra.mxu0 %v1698
        %v3080 = vpop.f32.mrf.mxu0
        %v3081 = vadd.f32 0.0, %v3080
        %v3082 = vpop.f32.mrf.mxu0
        %v3083 = vpop.f32.mrf.mxu0
        %v3084 = vadd.f32 0.0, %v3083
        %v3085 = vpop.f32.mrf.mxu0
        %3086 = vmatprep.mubr.bf16.mxu0 0
        %3087 = vmatmul.mubr.bf16.gmra.mxu0 %v1699
        %v3088 = vpop.f32.mrf.mxu0
        %v3089 = vadd.f32 0.0, %v3088
        %v3090 = vpop.f32.mrf.mxu0
        %v3091 = vpop.f32.mrf.mxu0
        %v3092 = vadd.f32 0.0, %v3091
        %v3093 = vpop.f32.mrf.mxu0
        %3094 = vmatprep.mubr.bf16.mxu0 0
        %3095 = vmatmul.mubr.bf16.gmra.mxu0 %v1700
        %v3096 = vpop.f32.mrf.mxu0
        %v3097 = vadd.f32 0.0, %v3096
        %v3098 = vpop.f32.mrf.mxu0
        %v3099 = vpop.f32.mrf.mxu0
        %v3100 = vadd.f32 0.0, %v3099
        %v3101 = vpop.f32.mrf.mxu0
        %3102 = vmatprep.mubr.bf16.mxu0 0
        %3103 = vmatmul.mubr.bf16.gmra.mxu0 %v1701
        %v3104 = vpop.f32.mrf.mxu0
        %v3105 = vadd.f32 0.0, %v3104
        %v3106 = vpop.f32.mrf.mxu0
        %v3107 = vpop.f32.mrf.mxu0
        %v3108 = vadd.f32 0.0, %v3107
        %v3109 = vpop.f32.mrf.mxu0
        %3110 = vmatprep.mubr.bf16.mxu0 0
        %3111 = vmatmul.mubr.bf16.gmra.mxu0 %v1702
        %v3112 = vpop.f32.mrf.mxu0
        %v3113 = vadd.f32 0.0, %v3112
        %v3114 = vpop.f32.mrf.mxu0
        %v3115 = vpop.f32.mrf.mxu0
        %v3116 = vadd.f32 0.0, %v3115
        %v3117 = vpop.f32.mrf.mxu0
        %3118 = vmatprep.mubr.bf16.mxu0 0
        %3119 = vmatmul.mubr.bf16.gmra.mxu0 %v1703
        %v3120 = vpop.f32.mrf.mxu0
        %v3121 = vadd.f32 0.0, %v3120
        %v3122 = vpop.f32.mrf.mxu0
        %v3123 = vpop.f32.mrf.mxu0
        %v3124 = vadd.f32 0.0, %v3123
        %v3125 = vpop.f32.mrf.mxu0
        %3126 = vmatprep.mubr.bf16.mxu0 0
        %3127 = vmatmul.mubr.bf16.gmra.mxu0 %v1704
        %v3128 = vpop.f32.mrf.mxu0
        %v3129 = vadd.f32 0.0, %v3128
        %v3130 = vpop.f32.mrf.mxu0
        %v3131 = vpop.f32.mrf.mxu0
        %v3132 = vadd.f32 0.0, %v3131
        %v3133 = vpop.f32.mrf.mxu0
        %3134 = vmatprep.mubr.bf16.mxu0 0
        %3135 = vmatmul.mubr.bf16.gmra.mxu0 %v1705
        %v3136 = vpop.f32.mrf.mxu0
        %v3137 = vadd.f32 0.0, %v3136
        %v3138 = vpop.f32.mrf.mxu0
        %v3139 = vpop.f32.mrf.mxu0
        %v3140 = vadd.f32 0.0, %v3139
        %v3141 = vpop.f32.mrf.mxu0
        %3142 = vmatprep.mubr.bf16.mxu0 0
        %3143 = vmatmul.mubr.bf16.gmra.mxu0 %v1706
        %v3144 = vpop.f32.mrf.mxu0
        %v3145 = vadd.f32 0.0, %v3144
        %v3146 = vpop.f32.mrf.mxu0
        %v3147 = vpop.f32.mrf.mxu0
        %v3148 = vadd.f32 0.0, %v3147
        %v3149 = vpop.f32.mrf.mxu0
        %3150 = vmatprep.mubr.bf16.mxu0 0
        %3151 = vmatmul.mubr.bf16.gmra.mxu0 %v1707
        %v3152 = vpop.f32.mrf.mxu0
        %v3153 = vadd.f32 0.0, %v3152
        %v3154 = vpop.f32.mrf.mxu0
        %v3155 = vpop.f32.mrf.mxu0
        %v3156 = vadd.f32 0.0, %v3155
        %v3157 = vpop.f32.mrf.mxu0
        %3158 = vdwg.mxu0
        %v3159 = vadd.f32 %v2901, %v3033
        %v3160 = vadd.f32 %v2902, %v3036
        %v3161 = vadd.f32 %v2903, %v3041
        %v3162 = vadd.f32 %v2904, %v3044
        %v3163 = vadd.f32 %v2905, %v3049
        %v3164 = vadd.f32 %v2906, %v3052
        %v3165 = vadd.f32 %v2907, %v3057
        %v3166 = vadd.f32 %v2908, %v3060
        %v3167 = vadd.f32 %v2909, %v3065
        %v3168 = vadd.f32 %v2910, %v3068
        %v3169 = vadd.f32 %v2911, %v3073
        %v3170 = vadd.f32 %v2912, %v3076
        %v3171 = vadd.f32 %v2913, %v3081
        %v3172 = vadd.f32 %v2914, %v3084
        %v3173 = vadd.f32 %v2915, %v3089
        %v3174 = vadd.f32 %v2916, %v3092
        %v3175 = vadd.f32 %v2917, %v3097
        %v3176 = vadd.f32 %v2918, %v3100
        %v3177 = vadd.f32 %v2919, %v3105
        %v3178 = vadd.f32 %v2920, %v3108
        %v3179 = vadd.f32 %v2921, %v3113
        %v3180 = vadd.f32 %v2922, %v3116
        %v3181 = vadd.f32 %v2923, %v3121
        %v3182 = vadd.f32 %v2924, %v3124
        %v3183 = vadd.f32 %v2925, %v3129
        %v3184 = vadd.f32 %v2926, %v3132
        %v3185 = vadd.f32 %v2927, %v3137
        %v3186 = vadd.f32 %v2928, %v3140
        %v3187 = vadd.f32 %v2929, %v3145
        %v3188 = vadd.f32 %v2930, %v3148
        %v3189 = vadd.f32 %v2931, %v3153
        %v3190 = vadd.f32 %v2932, %v3156
        %s3191 = scalar_lea.vmem %s5, 384
        %v3192 = vld [vmem:[%s3191] sm:$0xf]
        %v3193 = vld [vmem:[%s3191 + $0x4] sm:$0xf]
        %v3194 = vld [vmem:[%s3191 + $0x8] sm:$0xf]
        %v3195 = vld [vmem:[%s3191 + $0xc] sm:$0xf]
        %v3196 = vld [vmem:[%s3191 + $0x10] sm:$0xf]
        %v3197 = vld [vmem:[%s3191 + $0x14] sm:$0xf]
        %v3198 = vld [vmem:[%s3191 + $0x18] sm:$0xf]
        %v3199 = vld [vmem:[%s3191 + $0x1c] sm:$0xf]
        %v3200 = vld [vmem:[%s3191 + $0x20] sm:$0xf]
        %v3201 = vld [vmem:[%s3191 + $0x24] sm:$0xf]
        %v3202 = vld [vmem:[%s3191 + $0x28] sm:$0xf]
        %v3203 = vld [vmem:[%s3191 + $0x2c] sm:$0xf]
        %v3204 = vld [vmem:[%s3191 + $0x30] sm:$0xf]
        %v3205 = vld [vmem:[%s3191 + $0x34] sm:$0xf]
        %v3206 = vld [vmem:[%s3191 + $0x38] sm:$0xf]
        %v3207 = vld [vmem:[%s3191 + $0x3c] sm:$0xf]
        %v3224 = vunpack.c.l.b16 %v3192
        %v3225 = vunpack.c.l.b16 %v3193
        %v3226 = vunpack.c.l.b16 %v3194
        %v3227 = vunpack.c.l.b16 %v3195
        %v3228 = vunpack.c.l.b16 %v3196
        %v3229 = vunpack.c.l.b16 %v3197
        %v3230 = vunpack.c.l.b16 %v3198
        %v3231 = vunpack.c.l.b16 %v3199
        %v3232 = vunpack.c.l.b16 %v3200
        %v3233 = vunpack.c.l.b16 %v3201
        %v3234 = vunpack.c.l.b16 %v3202
        %v3235 = vunpack.c.l.b16 %v3203
        %v3236 = vunpack.c.l.b16 %v3204
        %v3237 = vunpack.c.l.b16 %v3205
        %v3238 = vunpack.c.l.b16 %v3206
        %v3239 = vunpack.c.l.b16 %v3207
        %v3240 = vpack.c.b16 %v3225, %v3224
        %v3241 = vpack.c.b16 %v3227, %v3226
        %v3242 = vpack.c.b16 %v3229, %v3228
        %v3243 = vpack.c.b16 %v3231, %v3230
        %v3244 = vpack.c.b16 %v3233, %v3232
        %v3245 = vpack.c.b16 %v3235, %v3234
        %v3246 = vpack.c.b16 %v3237, %v3236
        %v3247 = vpack.c.b16 %v3239, %v3238
        %3256 = vmatprep.subr.bf16.mxu0 0
        %3257 = vmatpush1.bf16.msra.mxu0 %v3247
        %3258 = vmatprep.subr.bf16.mxu0 0
        %3259 = vmatpush1.bf16.msra.mxu0 %v3246
        %3260 = vmatprep.subr.bf16.mxu0 0
        %3261 = vmatpush1.bf16.msra.mxu0 %v3245
        %3262 = vmatprep.subr.bf16.mxu0 0
        %3263 = vmatpush1.bf16.msra.mxu0 %v3244
        %3264 = vmatprep.subr.bf16.mxu0 0
        %3265 = vmatpush1.bf16.msra.mxu0 %v3243
        %3266 = vmatprep.subr.bf16.mxu0 0
        %3267 = vmatpush1.bf16.msra.mxu0 %v3242
        %3268 = vmatprep.subr.bf16.mxu0 0
        %3269 = vmatpush1.bf16.msra.mxu0 %v3241
        %3270 = vmatprep.subr.bf16.mxu0 0
        %3271 = vmatpush1.bf16.msra.mxu0 %v3240
        %3272 = vmatprep.subr.bf16.mxu0 0
        %3273 = vmatpush2.bf16.msra.mxu0 0
        %3274 = vmatprep.subr.bf16.mxu0 0
        %3275 = vmatpush2.bf16.msra.mxu0 0
        %3276 = vmatprep.subr.bf16.mxu0 0
        %3277 = vmatpush2.bf16.msra.mxu0 0
        %3278 = vmatprep.subr.bf16.mxu0 0
        %3279 = vmatpush2.bf16.msra.mxu0 0
        %3280 = vmatprep.subr.bf16.mxu0 0
        %3281 = vmatpush2.bf16.msra.mxu0 0
        %3282 = vmatprep.subr.bf16.mxu0 0
        %3283 = vmatpush2.bf16.msra.mxu0 0
        %3284 = vmatprep.subr.bf16.mxu0 0
        %3285 = vmatpush2.bf16.msra.mxu0 0
        %3286 = vmatprep.subr.bf16.mxu0 0
        %3287 = vmatpush2.bf16.msra.mxu0 0
        %3288 = vmatprep.mubr.bf16.mxu0 0
        %3289 = vmatmul.mubr.bf16.gmra.mxu0 %v1532
        %v3290 = vpop.f32.mrf.mxu0
        %v3291 = vadd.f32 0.0, %v3290
        %v3292 = vpop.f32.mrf.mxu0
        %v3293 = vpop.f32.mrf.mxu0
        %v3294 = vadd.f32 0.0, %v3293
        %v3295 = vpop.f32.mrf.mxu0
        %3296 = vmatprep.mubr.bf16.mxu0 0
        %3297 = vmatmul.mubr.bf16.gmra.mxu0 %v1533
        %v3298 = vpop.f32.mrf.mxu0
        %v3299 = vadd.f32 0.0, %v3298
        %v3300 = vpop.f32.mrf.mxu0
        %v3301 = vpop.f32.mrf.mxu0
        %v3302 = vadd.f32 0.0, %v3301
        %v3303 = vpop.f32.mrf.mxu0
        %3304 = vmatprep.mubr.bf16.mxu0 0
        %3305 = vmatmul.mubr.bf16.gmra.mxu0 %v1534
        %v3306 = vpop.f32.mrf.mxu0
        %v3307 = vadd.f32 0.0, %v3306
        %v3308 = vpop.f32.mrf.mxu0
        %v3309 = vpop.f32.mrf.mxu0
        %v3310 = vadd.f32 0.0, %v3309
        %v3311 = vpop.f32.mrf.mxu0
        %3312 = vmatprep.mubr.bf16.mxu0 0
        %3313 = vmatmul.mubr.bf16.gmra.mxu0 %v1535
        %v3314 = vpop.f32.mrf.mxu0
        %v3315 = vadd.f32 0.0, %v3314
        %v3316 = vpop.f32.mrf.mxu0
        %v3317 = vpop.f32.mrf.mxu0
        %v3318 = vadd.f32 0.0, %v3317
        %v3319 = vpop.f32.mrf.mxu0
        %3320 = vmatprep.mubr.bf16.mxu0 0
        %3321 = vmatmul.mubr.bf16.gmra.mxu0 %v1536
        %v3322 = vpop.f32.mrf.mxu0
        %v3323 = vadd.f32 0.0, %v3322
        %v3324 = vpop.f32.mrf.mxu0
        %v3325 = vpop.f32.mrf.mxu0
        %v3326 = vadd.f32 0.0, %v3325
        %v3327 = vpop.f32.mrf.mxu0
        %3328 = vmatprep.mubr.bf16.mxu0 0
        %3329 = vmatmul.mubr.bf16.gmra.mxu0 %v1537
        %v3330 = vpop.f32.mrf.mxu0
        %v3331 = vadd.f32 0.0, %v3330
        %v3332 = vpop.f32.mrf.mxu0
        %v3333 = vpop.f32.mrf.mxu0
        %v3334 = vadd.f32 0.0, %v3333
        %v3335 = vpop.f32.mrf.mxu0
        %3336 = vmatprep.mubr.bf16.mxu0 0
        %3337 = vmatmul.mubr.bf16.gmra.mxu0 %v1538
        %v3338 = vpop.f32.mrf.mxu0
        %v3339 = vadd.f32 0.0, %v3338
        %v3340 = vpop.f32.mrf.mxu0
        %v3341 = vpop.f32.mrf.mxu0
        %v3342 = vadd.f32 0.0, %v3341
        %v3343 = vpop.f32.mrf.mxu0
        %3344 = vmatprep.mubr.bf16.mxu0 0
        %3345 = vmatmul.mubr.bf16.gmra.mxu0 %v1539
        %v3346 = vpop.f32.mrf.mxu0
        %v3347 = vadd.f32 0.0, %v3346
        %v3348 = vpop.f32.mrf.mxu0
        %v3349 = vpop.f32.mrf.mxu0
        %v3350 = vadd.f32 0.0, %v3349
        %v3351 = vpop.f32.mrf.mxu0
        %3352 = vmatprep.mubr.bf16.mxu0 0
        %3353 = vmatmul.mubr.bf16.gmra.mxu0 %v1540
        %v3354 = vpop.f32.mrf.mxu0
        %v3355 = vadd.f32 0.0, %v3354
        %v3356 = vpop.f32.mrf.mxu0
        %v3357 = vpop.f32.mrf.mxu0
        %v3358 = vadd.f32 0.0, %v3357
        %v3359 = vpop.f32.mrf.mxu0
        %3360 = vmatprep.mubr.bf16.mxu0 0
        %3361 = vmatmul.mubr.bf16.gmra.mxu0 %v1541
        %v3362 = vpop.f32.mrf.mxu0
        %v3363 = vadd.f32 0.0, %v3362
        %v3364 = vpop.f32.mrf.mxu0
        %v3365 = vpop.f32.mrf.mxu0
        %v3366 = vadd.f32 0.0, %v3365
        %v3367 = vpop.f32.mrf.mxu0
        %3368 = vmatprep.mubr.bf16.mxu0 0
        %3369 = vmatmul.mubr.bf16.gmra.mxu0 %v1542
        %v3370 = vpop.f32.mrf.mxu0
        %v3371 = vadd.f32 0.0, %v3370
        %v3372 = vpop.f32.mrf.mxu0
        %v3373 = vpop.f32.mrf.mxu0
        %v3374 = vadd.f32 0.0, %v3373
        %v3375 = vpop.f32.mrf.mxu0
        %3376 = vmatprep.mubr.bf16.mxu0 0
        %3377 = vmatmul.mubr.bf16.gmra.mxu0 %v1543
        %v3378 = vpop.f32.mrf.mxu0
        %v3379 = vadd.f32 0.0, %v3378
        %v3380 = vpop.f32.mrf.mxu0
        %v3381 = vpop.f32.mrf.mxu0
        %v3382 = vadd.f32 0.0, %v3381
        %v3383 = vpop.f32.mrf.mxu0
        %3384 = vmatprep.mubr.bf16.mxu0 0
        %3385 = vmatmul.mubr.bf16.gmra.mxu0 %v1544
        %v3386 = vpop.f32.mrf.mxu0
        %v3387 = vadd.f32 0.0, %v3386
        %v3388 = vpop.f32.mrf.mxu0
        %v3389 = vpop.f32.mrf.mxu0
        %v3390 = vadd.f32 0.0, %v3389
        %v3391 = vpop.f32.mrf.mxu0
        %3392 = vmatprep.mubr.bf16.mxu0 0
        %3393 = vmatmul.mubr.bf16.gmra.mxu0 %v1545
        %v3394 = vpop.f32.mrf.mxu0
        %v3395 = vadd.f32 0.0, %v3394
        %v3396 = vpop.f32.mrf.mxu0
        %v3397 = vpop.f32.mrf.mxu0
        %v3398 = vadd.f32 0.0, %v3397
        %v3399 = vpop.f32.mrf.mxu0
        %3400 = vmatprep.mubr.bf16.mxu0 0
        %3401 = vmatmul.mubr.bf16.gmra.mxu0 %v1546
        %v3402 = vpop.f32.mrf.mxu0
        %v3403 = vadd.f32 0.0, %v3402
        %v3404 = vpop.f32.mrf.mxu0
        %v3405 = vpop.f32.mrf.mxu0
        %v3406 = vadd.f32 0.0, %v3405
        %v3407 = vpop.f32.mrf.mxu0
        %3408 = vmatprep.mubr.bf16.mxu0 0
        %3409 = vmatmul.mubr.bf16.gmra.mxu0 0
        %v3410 = vpop.f32.mrf.mxu0
        %v3411 = vadd.f32 0.0, %v3410
        %v3412 = vpop.f32.mrf.mxu0
        %v3413 = vpop.f32.mrf.mxu0
        %v3414 = vadd.f32 0.0, %v3413
        %v3415 = vpop.f32.mrf.mxu0
        %3416 = vdwg.mxu0
        %v3417 = vadd.f32 %v3159, %v3291
        %v3418 = vadd.f32 %v3160, %v3294
        %v3419 = vadd.f32 %v3161, %v3299
        %v3420 = vadd.f32 %v3162, %v3302
        %v3421 = vadd.f32 %v3163, %v3307
        %v3422 = vadd.f32 %v3164, %v3310
        %v3423 = vadd.f32 %v3165, %v3315
        %v3424 = vadd.f32 %v3166, %v3318
        %v3425 = vadd.f32 %v3167, %v3323
        %v3426 = vadd.f32 %v3168, %v3326
        %v3427 = vadd.f32 %v3169, %v3331
        %v3428 = vadd.f32 %v3170, %v3334
        %v3429 = vadd.f32 %v3171, %v3339
        %v3430 = vadd.f32 %v3172, %v3342
        %v3431 = vadd.f32 %v3173, %v3347
        %v3432 = vadd.f32 %v3174, %v3350
        %v3433 = vadd.f32 %v3175, %v3355
        %v3434 = vadd.f32 %v3176, %v3358
        %v3435 = vadd.f32 %v3177, %v3363
        %v3436 = vadd.f32 %v3178, %v3366
        %v3437 = vadd.f32 %v3179, %v3371
        %v3438 = vadd.f32 %v3180, %v3374
        %v3439 = vadd.f32 %v3181, %v3379
        %v3440 = vadd.f32 %v3182, %v3382
        %v3441 = vadd.f32 %v3183, %v3387
        %v3442 = vadd.f32 %v3184, %v3390
        %v3443 = vadd.f32 %v3185, %v3395
        %v3444 = vadd.f32 %v3186, %v3398
        %v3445 = vadd.f32 %v3187, %v3403
        %v3446 = vadd.f32 %v3188, %v3406
        %v3447 = vadd.f32 %v3189, %v3411
        %v3448 = vadd.f32 %v3190, %v3414
        %s3449 = scalar_lea.vmem %s5, 448
        %v3450 = vld [vmem:[%s3449] sm:$0xf]
        %v3451 = vld [vmem:[%s3449 + $0x4] sm:$0xf]
        %v3452 = vld [vmem:[%s3449 + $0x8] sm:$0xf]
        %v3453 = vld [vmem:[%s3449 + $0xc] sm:$0xf]
        %v3454 = vld [vmem:[%s3449 + $0x10] sm:$0xf]
        %v3455 = vld [vmem:[%s3449 + $0x14] sm:$0xf]
        %v3456 = vld [vmem:[%s3449 + $0x18] sm:$0xf]
        %v3457 = vld [vmem:[%s3449 + $0x1c] sm:$0xf]
        %v3458 = vld [vmem:[%s3449 + $0x20] sm:$0xf]
        %v3459 = vld [vmem:[%s3449 + $0x24] sm:$0xf]
        %v3460 = vld [vmem:[%s3449 + $0x28] sm:$0xf]
        %v3461 = vld [vmem:[%s3449 + $0x2c] sm:$0xf]
        %v3462 = vld [vmem:[%s3449 + $0x30] sm:$0xf]
        %v3463 = vld [vmem:[%s3449 + $0x34] sm:$0xf]
        %v3464 = vld [vmem:[%s3449 + $0x38] sm:$0xf]
        %v3465 = vld [vmem:[%s3449 + $0x3c] sm:$0xf]
        %v3482 = vunpack.c.l.b16 %v3450
        %v3483 = vunpack.c.l.b16 %v3451
        %v3484 = vunpack.c.l.b16 %v3452
        %v3485 = vunpack.c.l.b16 %v3453
        %v3486 = vunpack.c.l.b16 %v3454
        %v3487 = vunpack.c.l.b16 %v3455
        %v3488 = vunpack.c.l.b16 %v3456
        %v3489 = vunpack.c.l.b16 %v3457
        %v3490 = vunpack.c.l.b16 %v3458
        %v3491 = vunpack.c.l.b16 %v3459
        %v3492 = vunpack.c.l.b16 %v3460
        %v3493 = vunpack.c.l.b16 %v3461
        %v3494 = vunpack.c.l.b16 %v3462
        %v3495 = vunpack.c.l.b16 %v3463
        %v3496 = vunpack.c.l.b16 %v3464
        %v3497 = vunpack.c.l.b16 %v3465
        %v3498 = vpack.c.b16 %v3483, %v3482
        %v3499 = vpack.c.b16 %v3485, %v3484
        %v3500 = vpack.c.b16 %v3487, %v3486
        %v3501 = vpack.c.b16 %v3489, %v3488
        %v3502 = vpack.c.b16 %v3491, %v3490
        %v3503 = vpack.c.b16 %v3493, %v3492
        %v3504 = vpack.c.b16 %v3495, %v3494
        %v3505 = vpack.c.b16 %v3497, %v3496
        %3514 = vmatprep.subr.bf16.mxu0 0
        %3515 = vmatpush1.bf16.msra.mxu0 %v3505
        %3516 = vmatprep.subr.bf16.mxu0 0
        %3517 = vmatpush1.bf16.msra.mxu0 %v3504
        %3518 = vmatprep.subr.bf16.mxu0 0
        %3519 = vmatpush1.bf16.msra.mxu0 %v3503
        %3520 = vmatprep.subr.bf16.mxu0 0
        %3521 = vmatpush1.bf16.msra.mxu0 %v3502
        %3522 = vmatprep.subr.bf16.mxu0 0
        %3523 = vmatpush1.bf16.msra.mxu0 %v3501
        %3524 = vmatprep.subr.bf16.mxu0 0
        %3525 = vmatpush1.bf16.msra.mxu0 %v3500
        %3526 = vmatprep.subr.bf16.mxu0 0
        %3527 = vmatpush1.bf16.msra.mxu0 %v3499
        %3528 = vmatprep.subr.bf16.mxu0 0
        %3529 = vmatpush1.bf16.msra.mxu0 %v3498
        %3530 = vmatprep.subr.bf16.mxu0 0
        %3531 = vmatpush2.bf16.msra.mxu0 0
        %3532 = vmatprep.subr.bf16.mxu0 0
        %3533 = vmatpush2.bf16.msra.mxu0 0
        %3534 = vmatprep.subr.bf16.mxu0 0
        %3535 = vmatpush2.bf16.msra.mxu0 0
        %3536 = vmatprep.subr.bf16.mxu0 0
        %3537 = vmatpush2.bf16.msra.mxu0 0
        %3538 = vmatprep.subr.bf16.mxu0 0
        %3539 = vmatpush2.bf16.msra.mxu0 0
        %3540 = vmatprep.subr.bf16.mxu0 0
        %3541 = vmatpush2.bf16.msra.mxu0 0
        %3542 = vmatprep.subr.bf16.mxu0 0
        %3543 = vmatpush2.bf16.msra.mxu0 0
        %3544 = vmatprep.subr.bf16.mxu0 0
        %3545 = vmatpush2.bf16.msra.mxu0 0
        %3546 = vmatprep.mubr.bf16.mxu0 0
        %3547 = vmatmul.mubr.bf16.gmra.mxu0 %v1548
        %v3548 = vpop.f32.mrf.mxu0
        %v3549 = vadd.f32 0.0, %v3548
        %v3550 = vpop.f32.mrf.mxu0
        %v3551 = vpop.f32.mrf.mxu0
        %v3552 = vadd.f32 0.0, %v3551
        %v3553 = vpop.f32.mrf.mxu0
        %3554 = vmatprep.mubr.bf16.mxu0 0
        %3555 = vmatmul.mubr.bf16.gmra.mxu0 %v1549
        %v3556 = vpop.f32.mrf.mxu0
        %v3557 = vadd.f32 0.0, %v3556
        %v3558 = vpop.f32.mrf.mxu0
        %v3559 = vpop.f32.mrf.mxu0
        %v3560 = vadd.f32 0.0, %v3559
        %v3561 = vpop.f32.mrf.mxu0
        %3562 = vmatprep.mubr.bf16.mxu0 0
        %3563 = vmatmul.mubr.bf16.gmra.mxu0 %v1550
        %v3564 = vpop.f32.mrf.mxu0
        %v3565 = vadd.f32 0.0, %v3564
        %v3566 = vpop.f32.mrf.mxu0
        %v3567 = vpop.f32.mrf.mxu0
        %v3568 = vadd.f32 0.0, %v3567
        %v3569 = vpop.f32.mrf.mxu0
        %3570 = vmatprep.mubr.bf16.mxu0 0
        %3571 = vmatmul.mubr.bf16.gmra.mxu0 %v1551
        %v3572 = vpop.f32.mrf.mxu0
        %v3573 = vadd.f32 0.0, %v3572
        %v3574 = vpop.f32.mrf.mxu0
        %v3575 = vpop.f32.mrf.mxu0
        %v3576 = vadd.f32 0.0, %v3575
        %v3577 = vpop.f32.mrf.mxu0
        %3578 = vmatprep.mubr.bf16.mxu0 0
        %3579 = vmatmul.mubr.bf16.gmra.mxu0 %v1552
        %v3580 = vpop.f32.mrf.mxu0
        %v3581 = vadd.f32 0.0, %v3580
        %v3582 = vpop.f32.mrf.mxu0
        %v3583 = vpop.f32.mrf.mxu0
        %v3584 = vadd.f32 0.0, %v3583
        %v3585 = vpop.f32.mrf.mxu0
        %3586 = vmatprep.mubr.bf16.mxu0 0
        %3587 = vmatmul.mubr.bf16.gmra.mxu0 %v1553
        %v3588 = vpop.f32.mrf.mxu0
        %v3589 = vadd.f32 0.0, %v3588
        %v3590 = vpop.f32.mrf.mxu0
        %v3591 = vpop.f32.mrf.mxu0
        %v3592 = vadd.f32 0.0, %v3591
        %v3593 = vpop.f32.mrf.mxu0
        %3594 = vmatprep.mubr.bf16.mxu0 0
        %3595 = vmatmul.mubr.bf16.gmra.mxu0 %v1554
        %v3596 = vpop.f32.mrf.mxu0
        %v3597 = vadd.f32 0.0, %v3596
        %v3598 = vpop.f32.mrf.mxu0
        %v3599 = vpop.f32.mrf.mxu0
        %v3600 = vadd.f32 0.0, %v3599
        %v3601 = vpop.f32.mrf.mxu0
        %3602 = vmatprep.mubr.bf16.mxu0 0
        %3603 = vmatmul.mubr.bf16.gmra.mxu0 %v1555
        %v3604 = vpop.f32.mrf.mxu0
        %v3605 = vadd.f32 0.0, %v3604
        %v3606 = vpop.f32.mrf.mxu0
        %v3607 = vpop.f32.mrf.mxu0
        %v3608 = vadd.f32 0.0, %v3607
        %v3609 = vpop.f32.mrf.mxu0
        %3610 = vmatprep.mubr.bf16.mxu0 0
        %3611 = vmatmul.mubr.bf16.gmra.mxu0 %v1556
        %v3612 = vpop.f32.mrf.mxu0
        %v3613 = vadd.f32 0.0, %v3612
        %v3614 = vpop.f32.mrf.mxu0
        %v3615 = vpop.f32.mrf.mxu0
        %v3616 = vadd.f32 0.0, %v3615
        %v3617 = vpop.f32.mrf.mxu0
        %3618 = vmatprep.mubr.bf16.mxu0 0
        %3619 = vmatmul.mubr.bf16.gmra.mxu0 %v1557
        %v3620 = vpop.f32.mrf.mxu0
        %v3621 = vadd.f32 0.0, %v3620
        %v3622 = vpop.f32.mrf.mxu0
        %v3623 = vpop.f32.mrf.mxu0
        %v3624 = vadd.f32 0.0, %v3623
        %v3625 = vpop.f32.mrf.mxu0
        %3626 = vmatprep.mubr.bf16.mxu0 0
        %3627 = vmatmul.mubr.bf16.gmra.mxu0 %v1558
        %v3628 = vpop.f32.mrf.mxu0
        %v3629 = vadd.f32 0.0, %v3628
        %v3630 = vpop.f32.mrf.mxu0
        %v3631 = vpop.f32.mrf.mxu0
        %v3632 = vadd.f32 0.0, %v3631
        %v3633 = vpop.f32.mrf.mxu0
        %3634 = vmatprep.mubr.bf16.mxu0 0
        %3635 = vmatmul.mubr.bf16.gmra.mxu0 %v1559
        %v3636 = vpop.f32.mrf.mxu0
        %v3637 = vadd.f32 0.0, %v3636
        %v3638 = vpop.f32.mrf.mxu0
        %v3639 = vpop.f32.mrf.mxu0
        %v3640 = vadd.f32 0.0, %v3639
        %v3641 = vpop.f32.mrf.mxu0
        %3642 = vmatprep.mubr.bf16.mxu0 0
        %3643 = vmatmul.mubr.bf16.gmra.mxu0 %v1560
        %v3644 = vpop.f32.mrf.mxu0
        %v3645 = vadd.f32 0.0, %v3644
        %v3646 = vpop.f32.mrf.mxu0
        %v3647 = vpop.f32.mrf.mxu0
        %v3648 = vadd.f32 0.0, %v3647
        %v3649 = vpop.f32.mrf.mxu0
        %3650 = vmatprep.mubr.bf16.mxu0 0
        %3651 = vmatmul.mubr.bf16.gmra.mxu0 %v1561
        %v3652 = vpop.f32.mrf.mxu0
        %v3653 = vadd.f32 0.0, %v3652
        %v3654 = vpop.f32.mrf.mxu0
        %v3655 = vpop.f32.mrf.mxu0
        %v3656 = vadd.f32 0.0, %v3655
        %v3657 = vpop.f32.mrf.mxu0
        %3658 = vmatprep.mubr.bf16.mxu0 0
        %3659 = vmatmul.mubr.bf16.gmra.mxu0 %v1562
        %v3660 = vpop.f32.mrf.mxu0
        %v3661 = vadd.f32 0.0, %v3660
        %v3662 = vpop.f32.mrf.mxu0
        %v3663 = vpop.f32.mrf.mxu0
        %v3664 = vadd.f32 0.0, %v3663
        %v3665 = vpop.f32.mrf.mxu0
        %3666 = vmatprep.mubr.bf16.mxu0 0
        %3667 = vmatmul.mubr.bf16.gmra.mxu0 0
        %v3668 = vpop.f32.mrf.mxu0
        %v3669 = vadd.f32 0.0, %v3668
        %v3670 = vpop.f32.mrf.mxu0
        %v3671 = vpop.f32.mrf.mxu0
        %v3672 = vadd.f32 0.0, %v3671
        %v3673 = vpop.f32.mrf.mxu0
        %3674 = vdwg.mxu0
        %v3675 = vadd.f32 %v3417, %v3549
        %v3676 = vadd.f32 %v3418, %v3552
        %v3677 = vadd.f32 %v3419, %v3557
        %v3678 = vadd.f32 %v3420, %v3560
        %v3679 = vadd.f32 %v3421, %v3565
        %v3680 = vadd.f32 %v3422, %v3568
        %v3681 = vadd.f32 %v3423, %v3573
        %v3682 = vadd.f32 %v3424, %v3576
        %v3683 = vadd.f32 %v3425, %v3581
        %v3684 = vadd.f32 %v3426, %v3584
        %v3685 = vadd.f32 %v3427, %v3589
        %v3686 = vadd.f32 %v3428, %v3592
        %v3687 = vadd.f32 %v3429, %v3597
        %v3688 = vadd.f32 %v3430, %v3600
        %v3689 = vadd.f32 %v3431, %v3605
        %v3690 = vadd.f32 %v3432, %v3608
        %v3691 = vadd.f32 %v3433, %v3613
        %v3692 = vadd.f32 %v3434, %v3616
        %v3693 = vadd.f32 %v3435, %v3621
        %v3694 = vadd.f32 %v3436, %v3624
        %v3695 = vadd.f32 %v3437, %v3629
        %v3696 = vadd.f32 %v3438, %v3632
        %v3697 = vadd.f32 %v3439, %v3637
        %v3698 = vadd.f32 %v3440, %v3640
        %v3699 = vadd.f32 %v3441, %v3645
        %v3700 = vadd.f32 %v3442, %v3648
        %v3701 = vadd.f32 %v3443, %v3653
        %v3702 = vadd.f32 %v3444, %v3656
        %v3703 = vadd.f32 %v3445, %v3661
        %v3704 = vadd.f32 %v3446, %v3664
        %v3705 = vadd.f32 %v3447, %v3669
        %v3706 = vadd.f32 %v3448, %v3672
        %s3707 = scalar_lea.vmem %s5, 512
        %v3708 = vld [vmem:[%s3707] sm:$0xf]
        %v3709 = vld [vmem:[%s3707 + $0x4] sm:$0xf]
        %v3710 = vld [vmem:[%s3707 + $0x8] sm:$0xf]
        %v3711 = vld [vmem:[%s3707 + $0xc] sm:$0xf]
        %v3712 = vld [vmem:[%s3707 + $0x10] sm:$0xf]
        %v3713 = vld [vmem:[%s3707 + $0x14] sm:$0xf]
        %v3714 = vld [vmem:[%s3707 + $0x18] sm:$0xf]
        %v3715 = vld [vmem:[%s3707 + $0x1c] sm:$0xf]
        %v3716 = vld [vmem:[%s3707 + $0x20] sm:$0xf]
        %v3717 = vld [vmem:[%s3707 + $0x24] sm:$0xf]
        %v3718 = vld [vmem:[%s3707 + $0x28] sm:$0xf]
        %v3719 = vld [vmem:[%s3707 + $0x2c] sm:$0xf]
        %v3720 = vld [vmem:[%s3707 + $0x30] sm:$0xf]
        %v3721 = vld [vmem:[%s3707 + $0x34] sm:$0xf]
        %v3722 = vld [vmem:[%s3707 + $0x38] sm:$0xf]
        %v3723 = vld [vmem:[%s3707 + $0x3c] sm:$0xf]
        %v3740 = vunpack.c.l.b16 %v3708
        %v3741 = vunpack.c.l.b16 %v3709
        %v3742 = vunpack.c.l.b16 %v3710
        %v3743 = vunpack.c.l.b16 %v3711
        %v3744 = vunpack.c.l.b16 %v3712
        %v3745 = vunpack.c.l.b16 %v3713
        %v3746 = vunpack.c.l.b16 %v3714
        %v3747 = vunpack.c.l.b16 %v3715
        %v3748 = vunpack.c.l.b16 %v3716
        %v3749 = vunpack.c.l.b16 %v3717
        %v3750 = vunpack.c.l.b16 %v3718
        %v3751 = vunpack.c.l.b16 %v3719
        %v3752 = vunpack.c.l.b16 %v3720
        %v3753 = vunpack.c.l.b16 %v3721
        %v3754 = vunpack.c.l.b16 %v3722
        %v3755 = vunpack.c.l.b16 %v3723
        %v3756 = vpack.c.b16 %v3741, %v3740
        %v3757 = vpack.c.b16 %v3743, %v3742
        %v3758 = vpack.c.b16 %v3745, %v3744
        %v3759 = vpack.c.b16 %v3747, %v3746
        %v3760 = vpack.c.b16 %v3749, %v3748
        %v3761 = vpack.c.b16 %v3751, %v3750
        %v3762 = vpack.c.b16 %v3753, %v3752
        %v3763 = vpack.c.b16 %v3755, %v3754
        %3772 = vmatprep.subr.bf16.mxu0 0
        %3773 = vmatpush1.bf16.msra.mxu0 %v3763
        %3774 = vmatprep.subr.bf16.mxu0 0
        %3775 = vmatpush1.bf16.msra.mxu0 %v3762
        %3776 = vmatprep.subr.bf16.mxu0 0
        %3777 = vmatpush1.bf16.msra.mxu0 %v3761
        %3778 = vmatprep.subr.bf16.mxu0 0
        %3779 = vmatpush1.bf16.msra.mxu0 %v3760
        %3780 = vmatprep.subr.bf16.mxu0 0
        %3781 = vmatpush1.bf16.msra.mxu0 %v3759
        %3782 = vmatprep.subr.bf16.mxu0 0
        %3783 = vmatpush1.bf16.msra.mxu0 %v3758
        %3784 = vmatprep.subr.bf16.mxu0 0
        %3785 = vmatpush1.bf16.msra.mxu0 %v3757
        %3786 = vmatprep.subr.bf16.mxu0 0
        %3787 = vmatpush1.bf16.msra.mxu0 %v3756
        %3788 = vmatprep.subr.bf16.mxu0 0
        %3789 = vmatpush2.bf16.msra.mxu0 0
        %3790 = vmatprep.subr.bf16.mxu0 0
        %3791 = vmatpush2.bf16.msra.mxu0 0
        %3792 = vmatprep.subr.bf16.mxu0 0
        %3793 = vmatpush2.bf16.msra.mxu0 0
        %3794 = vmatprep.subr.bf16.mxu0 0
        %3795 = vmatpush2.bf16.msra.mxu0 0
        %3796 = vmatprep.subr.bf16.mxu0 0
        %3797 = vmatpush2.bf16.msra.mxu0 0
        %3798 = vmatprep.subr.bf16.mxu0 0
        %3799 = vmatpush2.bf16.msra.mxu0 0
        %3800 = vmatprep.subr.bf16.mxu0 0
        %3801 = vmatpush2.bf16.msra.mxu0 0
        %3802 = vmatprep.subr.bf16.mxu0 0
        %3803 = vmatpush2.bf16.msra.mxu0 0
        %3804 = vmatprep.mubr.bf16.mxu0 0
        %3805 = vmatmul.mubr.bf16.gmra.mxu0 %v1693
        %v3806 = vpop.f32.mrf.mxu0
        %v3807 = vadd.f32 0.0, %v3806
        %v3808 = vpop.f32.mrf.mxu0
        %v3809 = vpop.f32.mrf.mxu0
        %v3810 = vadd.f32 0.0, %v3809
        %v3811 = vpop.f32.mrf.mxu0
        %3812 = vmatprep.mubr.bf16.mxu0 0
        %3813 = vmatmul.mubr.bf16.gmra.mxu0 %v1694
        %v3814 = vpop.f32.mrf.mxu0
        %v3815 = vadd.f32 0.0, %v3814
        %v3816 = vpop.f32.mrf.mxu0
        %v3817 = vpop.f32.mrf.mxu0
        %v3818 = vadd.f32 0.0, %v3817
        %v3819 = vpop.f32.mrf.mxu0
        %3820 = vmatprep.mubr.bf16.mxu0 0
        %3821 = vmatmul.mubr.bf16.gmra.mxu0 %v1695
        %v3822 = vpop.f32.mrf.mxu0
        %v3823 = vadd.f32 0.0, %v3822
        %v3824 = vpop.f32.mrf.mxu0
        %v3825 = vpop.f32.mrf.mxu0
        %v3826 = vadd.f32 0.0, %v3825
        %v3827 = vpop.f32.mrf.mxu0
        %3828 = vmatprep.mubr.bf16.mxu0 0
        %3829 = vmatmul.mubr.bf16.gmra.mxu0 %v1696
        %v3830 = vpop.f32.mrf.mxu0
        %v3831 = vadd.f32 0.0, %v3830
        %v3832 = vpop.f32.mrf.mxu0
        %v3833 = vpop.f32.mrf.mxu0
        %v3834 = vadd.f32 0.0, %v3833
        %v3835 = vpop.f32.mrf.mxu0
        %3836 = vmatprep.mubr.bf16.mxu0 0
        %3837 = vmatmul.mubr.bf16.gmra.mxu0 %v1697
        %v3838 = vpop.f32.mrf.mxu0
        %v3839 = vadd.f32 0.0, %v3838
        %v3840 = vpop.f32.mrf.mxu0
        %v3841 = vpop.f32.mrf.mxu0
        %v3842 = vadd.f32 0.0, %v3841
        %v3843 = vpop.f32.mrf.mxu0
        %3844 = vmatprep.mubr.bf16.mxu0 0
        %3845 = vmatmul.mubr.bf16.gmra.mxu0 %v1698
        %v3846 = vpop.f32.mrf.mxu0
        %v3847 = vadd.f32 0.0, %v3846
        %v3848 = vpop.f32.mrf.mxu0
        %v3849 = vpop.f32.mrf.mxu0
        %v3850 = vadd.f32 0.0, %v3849
        %v3851 = vpop.f32.mrf.mxu0
        %3852 = vmatprep.mubr.bf16.mxu0 0
        %3853 = vmatmul.mubr.bf16.gmra.mxu0 %v1699
        %v3854 = vpop.f32.mrf.mxu0
        %v3855 = vadd.f32 0.0, %v3854
        %v3856 = vpop.f32.mrf.mxu0
        %v3857 = vpop.f32.mrf.mxu0
        %v3858 = vadd.f32 0.0, %v3857
        %v3859 = vpop.f32.mrf.mxu0
        %3860 = vmatprep.mubr.bf16.mxu0 0
        %3861 = vmatmul.mubr.bf16.gmra.mxu0 %v1700
        %v3862 = vpop.f32.mrf.mxu0
        %v3863 = vadd.f32 0.0, %v3862
        %v3864 = vpop.f32.mrf.mxu0
        %v3865 = vpop.f32.mrf.mxu0
        %v3866 = vadd.f32 0.0, %v3865
        %v3867 = vpop.f32.mrf.mxu0
        %3868 = vmatprep.mubr.bf16.mxu0 0
        %3869 = vmatmul.mubr.bf16.gmra.mxu0 %v1701
        %v3870 = vpop.f32.mrf.mxu0
        %v3871 = vadd.f32 0.0, %v3870
        %v3872 = vpop.f32.mrf.mxu0
        %v3873 = vpop.f32.mrf.mxu0
        %v3874 = vadd.f32 0.0, %v3873
        %v3875 = vpop.f32.mrf.mxu0
        %3876 = vmatprep.mubr.bf16.mxu0 0
        %3877 = vmatmul.mubr.bf16.gmra.mxu0 %v1702
        %v3878 = vpop.f32.mrf.mxu0
        %v3879 = vadd.f32 0.0, %v3878
        %v3880 = vpop.f32.mrf.mxu0
        %v3881 = vpop.f32.mrf.mxu0
        %v3882 = vadd.f32 0.0, %v3881
        %v3883 = vpop.f32.mrf.mxu0
        %3884 = vmatprep.mubr.bf16.mxu0 0
        %3885 = vmatmul.mubr.bf16.gmra.mxu0 %v1703
        %v3886 = vpop.f32.mrf.mxu0
        %v3887 = vadd.f32 0.0, %v3886
        %v3888 = vpop.f32.mrf.mxu0
        %v3889 = vpop.f32.mrf.mxu0
        %v3890 = vadd.f32 0.0, %v3889
        %v3891 = vpop.f32.mrf.mxu0
        %3892 = vmatprep.mubr.bf16.mxu0 0
        %3893 = vmatmul.mubr.bf16.gmra.mxu0 %v1704
        %v3894 = vpop.f32.mrf.mxu0
        %v3895 = vadd.f32 0.0, %v3894
        %v3896 = vpop.f32.mrf.mxu0
        %v3897 = vpop.f32.mrf.mxu0
        %v3898 = vadd.f32 0.0, %v3897
        %v3899 = vpop.f32.mrf.mxu0
        %3900 = vmatprep.mubr.bf16.mxu0 0
        %3901 = vmatmul.mubr.bf16.gmra.mxu0 %v1705
        %v3902 = vpop.f32.mrf.mxu0
        %v3903 = vadd.f32 0.0, %v3902
        %v3904 = vpop.f32.mrf.mxu0
        %v3905 = vpop.f32.mrf.mxu0
        %v3906 = vadd.f32 0.0, %v3905
        %v3907 = vpop.f32.mrf.mxu0
        %3908 = vmatprep.mubr.bf16.mxu0 0
        %3909 = vmatmul.mubr.bf16.gmra.mxu0 %v1706
        %v3910 = vpop.f32.mrf.mxu0
        %v3911 = vadd.f32 0.0, %v3910
        %v3912 = vpop.f32.mrf.mxu0
        %v3913 = vpop.f32.mrf.mxu0
        %v3914 = vadd.f32 0.0, %v3913
        %v3915 = vpop.f32.mrf.mxu0
        %3916 = vmatprep.mubr.bf16.mxu0 0
        %3917 = vmatmul.mubr.bf16.gmra.mxu0 %v1707
        %v3918 = vpop.f32.mrf.mxu0
        %v3919 = vadd.f32 0.0, %v3918
        %v3920 = vpop.f32.mrf.mxu0
        %v3921 = vpop.f32.mrf.mxu0
        %v3922 = vadd.f32 0.0, %v3921
        %v3923 = vpop.f32.mrf.mxu0
        %3924 = vmatprep.mubr.bf16.mxu0 0
        %3925 = vmatmul.mubr.bf16.gmra.mxu0 0
        %v3926 = vpop.f32.mrf.mxu0
        %v3927 = vadd.f32 0.0, %v3926
        %v3928 = vpop.f32.mrf.mxu0
        %v3929 = vpop.f32.mrf.mxu0
        %v3930 = vadd.f32 0.0, %v3929
        %v3931 = vpop.f32.mrf.mxu0
        %3932 = vdwg.mxu0
        %v3933 = vadd.f32 %v3675, %v3807
        %v3934 = vadd.f32 %v3676, %v3810
        %v3935 = vadd.f32 %v3677, %v3815
        %v3936 = vadd.f32 %v3678, %v3818
        %v3937 = vadd.f32 %v3679, %v3823
        %v3938 = vadd.f32 %v3680, %v3826
        %v3939 = vadd.f32 %v3681, %v3831
        %v3940 = vadd.f32 %v3682, %v3834
        %v3941 = vadd.f32 %v3683, %v3839
        %v3942 = vadd.f32 %v3684, %v3842
        %v3943 = vadd.f32 %v3685, %v3847
        %v3944 = vadd.f32 %v3686, %v3850
        %v3945 = vadd.f32 %v3687, %v3855
        %v3946 = vadd.f32 %v3688, %v3858
        %v3947 = vadd.f32 %v3689, %v3863
        %v3948 = vadd.f32 %v3690, %v3866
        %v3949 = vadd.f32 %v3691, %v3871
        %v3950 = vadd.f32 %v3692, %v3874
        %v3951 = vadd.f32 %v3693, %v3879
        %v3952 = vadd.f32 %v3694, %v3882
        %v3953 = vadd.f32 %v3695, %v3887
        %v3954 = vadd.f32 %v3696, %v3890
        %v3955 = vadd.f32 %v3697, %v3895
        %v3956 = vadd.f32 %v3698, %v3898
        %v3957 = vadd.f32 %v3699, %v3903
        %v3958 = vadd.f32 %v3700, %v3906
        %v3959 = vadd.f32 %v3701, %v3911
        %v3960 = vadd.f32 %v3702, %v3914
        %v3961 = vadd.f32 %v3703, %v3919
        %v3962 = vadd.f32 %v3704, %v3922
        %v3963 = vadd.f32 %v3705, %v3927
        %v3964 = vadd.f32 %v3706, %v3930
        %v3965 = vld [vmem:[%s6] sm:$0x1]
        %v3967 = vlaneseq
        %v3968 = vshrl.u32 %v3967, 7
        %v3969 = vsub.s32 0, %v3968
        %v3970 = vrot.slane %v3965, %v3969
        %v3972 = vadd.f32 %v3933, %v3970
        %v3973 = vadd.f32 %v3934, %v3970
        %v3974 = vadd.f32 %v3935, %v3970
        %v3975 = vadd.f32 %v3936, %v3970
        %v3976 = vadd.f32 %v3937, %v3970
        %v3977 = vadd.f32 %v3938, %v3970
        %v3978 = vadd.f32 %v3939, %v3970
        %v3979 = vadd.f32 %v3940, %v3970
        %v3980 = vadd.f32 %v3941, %v3970
        %v3981 = vadd.f32 %v3942, %v3970
        %v3982 = vadd.f32 %v3943, %v3970
        %v3983 = vadd.f32 %v3944, %v3970
        %v3984 = vadd.f32 %v3945, %v3970
        %v3985 = vadd.f32 %v3946, %v3970
        %v3986 = vadd.f32 %v3947, %v3970
        %v3987 = vadd.f32 %v3948, %v3970
        %v3988 = vadd.f32 %v3949, %v3970
        %v3989 = vadd.f32 %v3950, %v3970
        %v3990 = vadd.f32 %v3951, %v3970
        %v3991 = vadd.f32 %v3952, %v3970
        %v3992 = vadd.f32 %v3953, %v3970
        %v3993 = vadd.f32 %v3954, %v3970
        %v3994 = vadd.f32 %v3955, %v3970
        %v3995 = vadd.f32 %v3956, %v3970
        %v3996 = vadd.f32 %v3957, %v3970
        %v3997 = vadd.f32 %v3958, %v3970
        %v3998 = vadd.f32 %v3959, %v3970
        %v3999 = vadd.f32 %v3960, %v3970
        %v4000 = vadd.f32 %v3961, %v3970
        %v4001 = vadd.f32 %v3962, %v3970
        %v4002 = vadd.f32 %v3963, %v3970
        %v4003 = vadd.f32 %v3964, %v3970
        %v4004 = vsub.f32 0.0, %v3972
        %v4005 = vsub.f32 0.0, %v3973
        %v4006 = vsub.f32 0.0, %v3974
        %v4007 = vsub.f32 0.0, %v3975
        %v4008 = vsub.f32 0.0, %v3976
        %v4009 = vsub.f32 0.0, %v3977
        %v4010 = vsub.f32 0.0, %v3978
        %v4011 = vsub.f32 0.0, %v3979
        %v4012 = vsub.f32 0.0, %v3980
        %v4013 = vsub.f32 0.0, %v3981
        %v4014 = vsub.f32 0.0, %v3982
        %v4015 = vsub.f32 0.0, %v3983
        %v4016 = vsub.f32 0.0, %v3984
        %v4017 = vsub.f32 0.0, %v3985
        %v4018 = vsub.f32 0.0, %v3986
        %v4019 = vsub.f32 0.0, %v3987
        %v4020 = vsub.f32 0.0, %v3988
        %v4021 = vsub.f32 0.0, %v3989
        %v4022 = vsub.f32 0.0, %v3990
        %v4023 = vsub.f32 0.0, %v3991
        %v4024 = vsub.f32 0.0, %v3992
        %v4025 = vsub.f32 0.0, %v3993
        %v4026 = vsub.f32 0.0, %v3994
        %v4027 = vsub.f32 0.0, %v3995
        %v4028 = vsub.f32 0.0, %v3996
        %v4029 = vsub.f32 0.0, %v3997
        %v4030 = vsub.f32 0.0, %v3998
        %v4031 = vsub.f32 0.0, %v3999
        %v4032 = vsub.f32 0.0, %v4000
        %v4033 = vsub.f32 0.0, %v4001
        %v4034 = vsub.f32 0.0, %v4002
        %v4035 = vsub.f32 0.0, %v4003
        %v4036 = vmul.f32 %v4004, 1.442695
        %v4037 = vpow.pop %v4036
        %v4038 = vmul.f32 %v4005, 1.442695
        %v4039 = vpow.pop %v4038
        %v4040 = vmul.f32 %v4006, 1.442695
        %v4041 = vpow.pop %v4040
        %v4042 = vmul.f32 %v4007, 1.442695
        %v4043 = vpow.pop %v4042
        %v4044 = vmul.f32 %v4008, 1.442695
        %v4045 = vpow.pop %v4044
        %v4046 = vmul.f32 %v4009, 1.442695
        %v4047 = vpow.pop %v4046
        %v4048 = vmul.f32 %v4010, 1.442695
        %v4049 = vpow.pop %v4048
        %v4050 = vmul.f32 %v4011, 1.442695
        %v4051 = vpow.pop %v4050
        %v4052 = vmul.f32 %v4012, 1.442695
        %v4053 = vpow.pop %v4052
        %v4054 = vmul.f32 %v4013, 1.442695
        %v4055 = vpow.pop %v4054
        %v4056 = vmul.f32 %v4014, 1.442695
        %v4057 = vpow.pop %v4056
        %v4058 = vmul.f32 %v4015, 1.442695
        %v4059 = vpow.pop %v4058
        %v4060 = vmul.f32 %v4016, 1.442695
        %v4061 = vpow.pop %v4060
        %v4062 = vmul.f32 %v4017, 1.442695
        %v4063 = vpow.pop %v4062
        %v4064 = vmul.f32 %v4018, 1.442695
        %v4065 = vpow.pop %v4064
        %v4066 = vmul.f32 %v4019, 1.442695
        %v4067 = vpow.pop %v4066
        %v4068 = vmul.f32 %v4020, 1.442695
        %v4069 = vpow.pop %v4068
        %v4070 = vmul.f32 %v4021, 1.442695
        %v4071 = vpow.pop %v4070
        %v4072 = vmul.f32 %v4022, 1.442695
        %v4073 = vpow.pop %v4072
        %v4074 = vmul.f32 %v4023, 1.442695
        %v4075 = vpow.pop %v4074
        %v4076 = vmul.f32 %v4024, 1.442695
        %v4077 = vpow.pop %v4076
        %v4078 = vmul.f32 %v4025, 1.442695
        %v4079 = vpow.pop %v4078
        %v4080 = vmul.f32 %v4026, 1.442695
        %v4081 = vpow.pop %v4080
        %v4082 = vmul.f32 %v4027, 1.442695
        %v4083 = vpow.pop %v4082
        %v4084 = vmul.f32 %v4028, 1.442695
        %v4085 = vpow.pop %v4084
        %v4086 = vmul.f32 %v4029, 1.442695
        %v4087 = vpow.pop %v4086
        %v4088 = vmul.f32 %v4030, 1.442695
        %v4089 = vpow.pop %v4088
        %v4090 = vmul.f32 %v4031, 1.442695
        %v4091 = vpow.pop %v4090
        %v4092 = vmul.f32 %v4032, 1.442695
        %v4093 = vpow.pop %v4092
        %v4094 = vmul.f32 %v4033, 1.442695
        %v4095 = vpow.pop %v4094
        %v4096 = vmul.f32 %v4034, 1.442695
        %v4097 = vpow.pop %v4096
        %v4098 = vmul.f32 %v4035, 1.442695
        %v4099 = vpow.pop %v4098
        %v4100 = vadd.f32 %v4037, 1.0
        %v4101 = vadd.f32 %v4039, 1.0
        %v4102 = vadd.f32 %v4041, 1.0
        %v4103 = vadd.f32 %v4043, 1.0
        %v4104 = vadd.f32 %v4045, 1.0
        %v4105 = vadd.f32 %v4047, 1.0
        %v4106 = vadd.f32 %v4049, 1.0
        %v4107 = vadd.f32 %v4051, 1.0
        %v4108 = vadd.f32 %v4053, 1.0
        %v4109 = vadd.f32 %v4055, 1.0
        %v4110 = vadd.f32 %v4057, 1.0
        %v4111 = vadd.f32 %v4059, 1.0
        %v4112 = vadd.f32 %v4061, 1.0
        %v4113 = vadd.f32 %v4063, 1.0
        %v4114 = vadd.f32 %v4065, 1.0
        %v4115 = vadd.f32 %v4067, 1.0
        %v4116 = vadd.f32 %v4069, 1.0
        %v4117 = vadd.f32 %v4071, 1.0
        %v4118 = vadd.f32 %v4073, 1.0
        %v4119 = vadd.f32 %v4075, 1.0
        %v4120 = vadd.f32 %v4077, 1.0
        %v4121 = vadd.f32 %v4079, 1.0
        %v4122 = vadd.f32 %v4081, 1.0
        %v4123 = vadd.f32 %v4083, 1.0
        %v4124 = vadd.f32 %v4085, 1.0
        %v4125 = vadd.f32 %v4087, 1.0
        %v4126 = vadd.f32 %v4089, 1.0
        %v4127 = vadd.f32 %v4091, 1.0
        %v4128 = vadd.f32 %v4093, 1.0
        %v4129 = vadd.f32 %v4095, 1.0
        %v4130 = vadd.f32 %v4097, 1.0
        %v4131 = vadd.f32 %v4099, 1.0
        %v4132 = vrcp.pop %v4100
        %v4133 = vrcp.pop %v4101
        %v4134 = vrcp.pop %v4102
        %v4135 = vrcp.pop %v4103
        %v4136 = vrcp.pop %v4104
        %v4137 = vrcp.pop %v4105
        %v4138 = vrcp.pop %v4106
        %v4139 = vrcp.pop %v4107
        %v4140 = vrcp.pop %v4108
        %v4141 = vrcp.pop %v4109
        %v4142 = vrcp.pop %v4110
        %v4143 = vrcp.pop %v4111
        %v4144 = vrcp.pop %v4112
        %v4145 = vrcp.pop %v4113
        %v4146 = vrcp.pop %v4114
        %v4147 = vrcp.pop %v4115
        %v4148 = vrcp.pop %v4116
        %v4149 = vrcp.pop %v4117
        %v4150 = vrcp.pop %v4118
        %v4151 = vrcp.pop %v4119
        %v4152 = vrcp.pop %v4120
        %v4153 = vrcp.pop %v4121
        %v4154 = vrcp.pop %v4122
        %v4155 = vrcp.pop %v4123
        %v4156 = vrcp.pop %v4124
        %v4157 = vrcp.pop %v4125
        %v4158 = vrcp.pop %v4126
        %v4159 = vrcp.pop %v4127
        %v4160 = vrcp.pop %v4128
        %v4161 = vrcp.pop %v4129
        %v4162 = vrcp.pop %v4130
        %v4163 = vrcp.pop %v4131
        %v4164 = vmul.f32 %v3972, %v4132
        %v4165 = vmul.f32 %v3973, %v4133
        %v4166 = vmul.f32 %v3974, %v4134
        %v4167 = vmul.f32 %v3975, %v4135
        %v4168 = vmul.f32 %v3976, %v4136
        %v4169 = vmul.f32 %v3977, %v4137
        %v4170 = vmul.f32 %v3978, %v4138
        %v4171 = vmul.f32 %v3979, %v4139
        %v4172 = vmul.f32 %v3980, %v4140
        %v4173 = vmul.f32 %v3981, %v4141
        %v4174 = vmul.f32 %v3982, %v4142
        %v4175 = vmul.f32 %v3983, %v4143
        %v4176 = vmul.f32 %v3984, %v4144
        %v4177 = vmul.f32 %v3985, %v4145
        %v4178 = vmul.f32 %v3986, %v4146
        %v4179 = vmul.f32 %v3987, %v4147
        %v4180 = vmul.f32 %v3988, %v4148
        %v4181 = vmul.f32 %v3989, %v4149
        %v4182 = vmul.f32 %v3990, %v4150
        %v4183 = vmul.f32 %v3991, %v4151
        %v4184 = vmul.f32 %v3992, %v4152
        %v4185 = vmul.f32 %v3993, %v4153
        %v4186 = vmul.f32 %v3994, %v4154
        %v4187 = vmul.f32 %v3995, %v4155
        %v4188 = vmul.f32 %v3996, %v4156
        %v4189 = vmul.f32 %v3997, %v4157
        %v4190 = vmul.f32 %v3998, %v4158
        %v4191 = vmul.f32 %v3999, %v4159
        %v4192 = vmul.f32 %v4000, %v4160
        %v4193 = vmul.f32 %v4001, %v4161
        %v4194 = vmul.f32 %v4002, %v4162
        %v4195 = vmul.f32 %v4003, %v4163
        %v4196 = vadd.f32 %v891, %v4164
        %v4197 = vadd.f32 %v892, %v4165
        %v4198 = vadd.f32 %v893, %v4166
        %v4199 = vadd.f32 %v894, %v4167
        %v4200 = vadd.f32 %v895, %v4168
        %v4201 = vadd.f32 %v896, %v4169
        %v4202 = vadd.f32 %v897, %v4170
        %v4203 = vadd.f32 %v898, %v4171
        %v4204 = vadd.f32 %v899, %v4172
        %v4205 = vadd.f32 %v900, %v4173
        %v4206 = vadd.f32 %v901, %v4174
        %v4207 = vadd.f32 %v902, %v4175
        %v4208 = vadd.f32 %v903, %v4176
        %v4209 = vadd.f32 %v904, %v4177
        %v4210 = vadd.f32 %v905, %v4178
        %v4211 = vadd.f32 %v906, %v4179
        %v4212 = vadd.f32 %v907, %v4180
        %v4213 = vadd.f32 %v908, %v4181
        %v4214 = vadd.f32 %v909, %v4182
        %v4215 = vadd.f32 %v910, %v4183
        %v4216 = vadd.f32 %v911, %v4184
        %v4217 = vadd.f32 %v912, %v4185
        %v4218 = vadd.f32 %v913, %v4186
        %v4219 = vadd.f32 %v914, %v4187
        %v4220 = vadd.f32 %v915, %v4188
        %v4221 = vadd.f32 %v916, %v4189
        %v4222 = vadd.f32 %v917, %v4190
        %v4223 = vadd.f32 %v918, %v4191
        %v4224 = vadd.f32 %v919, %v4192
        %v4225 = vadd.f32 %v920, %v4193
        %v4226 = vadd.f32 %v921, %v4194
        %v4227 = vadd.f32 %v922, %v4195
        %v4228 = vld [vmem:[#allocation4] sm:$0xf]
        %v4229 = vld [vmem:[#allocation4 + $0x4] sm:$0xf]
        %v4230 = vld [vmem:[#allocation4 + $0x8] sm:$0xf]
        %v4231 = vld [vmem:[#allocation4 + $0xc] sm:$0xf]
        %v4232 = vld [vmem:[#allocation4 + $0x10] sm:$0xf]
        %v4233 = vld [vmem:[#allocation4 + $0x14] sm:$0xf]
        %v4234 = vld [vmem:[#allocation4 + $0x18] sm:$0xf]
        %v4235 = vld [vmem:[#allocation4 + $0x1c] sm:$0xf]
        %v4236 = vld [vmem:[#allocation4 + $0x20] sm:$0xf]
        %v4237 = vld [vmem:[#allocation4 + $0x24] sm:$0xf]
        %v4238 = vld [vmem:[#allocation4 + $0x28] sm:$0xf]
        %v4239 = vld [vmem:[#allocation4 + $0x2c] sm:$0xf]
        %v4240 = vld [vmem:[#allocation4 + $0x30] sm:$0xf]
        %v4241 = vld [vmem:[#allocation4 + $0x34] sm:$0xf]
        %v4242 = vld [vmem:[#allocation4 + $0x38] sm:$0xf]
        %v4243 = vld [vmem:[#allocation4 + $0x3c] sm:$0xf]
        %v4244 = vld [vmem:[%s8] sm:$0x1]
        %v4246 = vlaneseq
        %v4247 = vshrl.u32 %v4246, 7
        %v4248 = vsub.s32 0, %v4247
        %v4249 = vrot.slane %v4244, %v4248
        %v4267 = vunpack.c.l.b16 %v4228
        %v4268 = vunpack.c.l.b16 %v4229
        %v4269 = vunpack.c.l.b16 %v4230
        %v4270 = vunpack.c.l.b16 %v4231
        %v4271 = vunpack.c.l.b16 %v4232
        %v4272 = vunpack.c.l.b16 %v4233
        %v4273 = vunpack.c.l.b16 %v4234
        %v4274 = vunpack.c.l.b16 %v4235
        %v4275 = vunpack.c.l.b16 %v4236
        %v4276 = vunpack.c.l.b16 %v4237
        %v4277 = vunpack.c.l.b16 %v4238
        %v4278 = vunpack.c.l.b16 %v4239
        %v4279 = vunpack.c.l.b16 %v4240
        %v4280 = vunpack.c.l.b16 %v4241
        %v4281 = vunpack.c.l.b16 %v4242
        %v4282 = vunpack.c.l.b16 %v4243
        %v4283 = vpack.c.b16 %v4268, %v4267
        %v4284 = vpack.c.b16 %v4270, %v4269
        %v4285 = vpack.c.b16 %v4272, %v4271
        %v4286 = vpack.c.b16 %v4274, %v4273
        %v4287 = vpack.c.b16 %v4276, %v4275
        %v4288 = vpack.c.b16 %v4278, %v4277
        %v4289 = vpack.c.b16 %v4280, %v4279
        %v4290 = vpack.c.b16 %v4282, %v4281
        %4299 = vmatprep.subr.bf16.mxu0 0
        %4300 = vmatpush1.bf16.msra.mxu0 %v4290
        %4301 = vmatprep.subr.bf16.mxu0 0
        %4302 = vmatpush1.bf16.msra.mxu0 %v4289
        %4303 = vmatprep.subr.bf16.mxu0 0
        %4304 = vmatpush1.bf16.msra.mxu0 %v4288
        %4305 = vmatprep.subr.bf16.mxu0 0
        %4306 = vmatpush1.bf16.msra.mxu0 %v4287
        %4307 = vmatprep.subr.bf16.mxu0 0
        %4308 = vmatpush1.bf16.msra.mxu0 %v4286
        %4309 = vmatprep.subr.bf16.mxu0 0
        %4310 = vmatpush1.bf16.msra.mxu0 %v4285
        %4311 = vmatprep.subr.bf16.mxu0 0
        %4312 = vmatpush1.bf16.msra.mxu0 %v4284
        %4313 = vmatprep.subr.bf16.mxu0 0
        %4314 = vmatpush1.bf16.msra.mxu0 %v4283
        %4315 = vmatprep.subr.bf16.mxu0 0
        %4316 = vmatpush2.bf16.msra.mxu0 0
        %4317 = vmatprep.subr.bf16.mxu0 0
        %4318 = vmatpush2.bf16.msra.mxu0 0
        %4319 = vmatprep.subr.bf16.mxu0 0
        %4320 = vmatpush2.bf16.msra.mxu0 0
        %4321 = vmatprep.subr.bf16.mxu0 0
        %4322 = vmatpush2.bf16.msra.mxu0 0
        %4323 = vmatprep.subr.bf16.mxu0 0
        %4324 = vmatpush2.bf16.msra.mxu0 0
        %4325 = vmatprep.subr.bf16.mxu0 0
        %4326 = vmatpush2.bf16.msra.mxu0 0
        %4327 = vmatprep.subr.bf16.mxu0 0
        %4328 = vmatpush2.bf16.msra.mxu0 0
        %4329 = vmatprep.subr.bf16.mxu0 0
        %4330 = vmatpush2.bf16.msra.mxu0 0
        %4331 = vmatprep.mubr.bf16.mxu0 0
        %4332 = vmatmul.mubr.bf16.gmra.mxu0 %v483
        %v4333 = vpop.f32.mrf.mxu0
        %v4334 = vadd.f32 %v4249, %v4333
        %v4335 = vpop.f32.mrf.mxu0
        %v4336 = vpop.f32.mrf.mxu0
        %v4337 = vadd.f32 %v4249, %v4336
        %v4338 = vpop.f32.mrf.mxu0
        %4339 = vmatprep.mubr.bf16.mxu0 0
        %4340 = vmatmul.mubr.bf16.gmra.mxu0 %v484
        %v4341 = vpop.f32.mrf.mxu0
        %v4342 = vadd.f32 %v4249, %v4341
        %v4343 = vpop.f32.mrf.mxu0
        %v4344 = vpop.f32.mrf.mxu0
        %v4345 = vadd.f32 %v4249, %v4344
        %v4346 = vpop.f32.mrf.mxu0
        %4347 = vmatprep.mubr.bf16.mxu0 0
        %4348 = vmatmul.mubr.bf16.gmra.mxu0 %v485
        %v4349 = vpop.f32.mrf.mxu0
        %v4350 = vadd.f32 %v4249, %v4349
        %v4351 = vpop.f32.mrf.mxu0
        %v4352 = vpop.f32.mrf.mxu0
        %v4353 = vadd.f32 %v4249, %v4352
        %v4354 = vpop.f32.mrf.mxu0
        %4355 = vmatprep.mubr.bf16.mxu0 0
        %4356 = vmatmul.mubr.bf16.gmra.mxu0 %v486
        %v4357 = vpop.f32.mrf.mxu0
        %v4358 = vadd.f32 %v4249, %v4357
        %v4359 = vpop.f32.mrf.mxu0
        %v4360 = vpop.f32.mrf.mxu0
        %v4361 = vadd.f32 %v4249, %v4360
        %v4362 = vpop.f32.mrf.mxu0
        %4363 = vmatprep.mubr.bf16.mxu0 0
        %4364 = vmatmul.mubr.bf16.gmra.mxu0 %v487
        %v4365 = vpop.f32.mrf.mxu0
        %v4366 = vadd.f32 %v4249, %v4365
        %v4367 = vpop.f32.mrf.mxu0
        %v4368 = vpop.f32.mrf.mxu0
        %v4369 = vadd.f32 %v4249, %v4368
        %v4370 = vpop.f32.mrf.mxu0
        %4371 = vmatprep.mubr.bf16.mxu0 0
        %4372 = vmatmul.mubr.bf16.gmra.mxu0 %v488
        %v4373 = vpop.f32.mrf.mxu0
        %v4374 = vadd.f32 %v4249, %v4373
        %v4375 = vpop.f32.mrf.mxu0
        %v4376 = vpop.f32.mrf.mxu0
        %v4377 = vadd.f32 %v4249, %v4376
        %v4378 = vpop.f32.mrf.mxu0
        %4379 = vmatprep.mubr.bf16.mxu0 0
        %4380 = vmatmul.mubr.bf16.gmra.mxu0 %v489
        %v4381 = vpop.f32.mrf.mxu0
        %v4382 = vadd.f32 %v4249, %v4381
        %v4383 = vpop.f32.mrf.mxu0
        %v4384 = vpop.f32.mrf.mxu0
        %v4385 = vadd.f32 %v4249, %v4384
        %v4386 = vpop.f32.mrf.mxu0
        %4387 = vmatprep.mubr.bf16.mxu0 0
        %4388 = vmatmul.mubr.bf16.gmra.mxu0 %v490
        %v4389 = vpop.f32.mrf.mxu0
        %v4390 = vadd.f32 %v4249, %v4389
        %v4391 = vpop.f32.mrf.mxu0
        %v4392 = vpop.f32.mrf.mxu0
        %v4393 = vadd.f32 %v4249, %v4392
        %v4394 = vpop.f32.mrf.mxu0
        %4395 = vmatprep.mubr.bf16.mxu0 0
        %4396 = vmatmul.mubr.bf16.gmra.mxu0 %v491
        %v4397 = vpop.f32.mrf.mxu0
        %v4398 = vadd.f32 %v4249, %v4397
        %v4399 = vpop.f32.mrf.mxu0
        %v4400 = vpop.f32.mrf.mxu0
        %v4401 = vadd.f32 %v4249, %v4400
        %v4402 = vpop.f32.mrf.mxu0
        %4403 = vmatprep.mubr.bf16.mxu0 0
        %4404 = vmatmul.mubr.bf16.gmra.mxu0 %v492
        %v4405 = vpop.f32.mrf.mxu0
        %v4406 = vadd.f32 %v4249, %v4405
        %v4407 = vpop.f32.mrf.mxu0
        %v4408 = vpop.f32.mrf.mxu0
        %v4409 = vadd.f32 %v4249, %v4408
        %v4410 = vpop.f32.mrf.mxu0
        %4411 = vmatprep.mubr.bf16.mxu0 0
        %4412 = vmatmul.mubr.bf16.gmra.mxu0 %v493
        %v4413 = vpop.f32.mrf.mxu0
        %v4414 = vadd.f32 %v4249, %v4413
        %v4415 = vpop.f32.mrf.mxu0
        %v4416 = vpop.f32.mrf.mxu0
        %v4417 = vadd.f32 %v4249, %v4416
        %v4418 = vpop.f32.mrf.mxu0
        %4419 = vmatprep.mubr.bf16.mxu0 0
        %4420 = vmatmul.mubr.bf16.gmra.mxu0 %v494
        %v4421 = vpop.f32.mrf.mxu0
        %v4422 = vadd.f32 %v4249, %v4421
        %v4423 = vpop.f32.mrf.mxu0
        %v4424 = vpop.f32.mrf.mxu0
        %v4425 = vadd.f32 %v4249, %v4424
        %v4426 = vpop.f32.mrf.mxu0
        %4427 = vmatprep.mubr.bf16.mxu0 0
        %4428 = vmatmul.mubr.bf16.gmra.mxu0 %v495
        %v4429 = vpop.f32.mrf.mxu0
        %v4430 = vadd.f32 %v4249, %v4429
        %v4431 = vpop.f32.mrf.mxu0
        %v4432 = vpop.f32.mrf.mxu0
        %v4433 = vadd.f32 %v4249, %v4432
        %v4434 = vpop.f32.mrf.mxu0
        %4435 = vmatprep.mubr.bf16.mxu0 0
        %4436 = vmatmul.mubr.bf16.gmra.mxu0 %v496
        %v4437 = vpop.f32.mrf.mxu0
        %v4438 = vadd.f32 %v4249, %v4437
        %v4439 = vpop.f32.mrf.mxu0
        %v4440 = vpop.f32.mrf.mxu0
        %v4441 = vadd.f32 %v4249, %v4440
        %v4442 = vpop.f32.mrf.mxu0
        %4443 = vmatprep.mubr.bf16.mxu0 0
        %4444 = vmatmul.mubr.bf16.gmra.mxu0 %v497
        %v4445 = vpop.f32.mrf.mxu0
        %v4446 = vadd.f32 %v4249, %v4445
        %v4447 = vpop.f32.mrf.mxu0
        %v4448 = vpop.f32.mrf.mxu0
        %v4449 = vadd.f32 %v4249, %v4448
        %v4450 = vpop.f32.mrf.mxu0
        %4451 = vmatprep.mubr.bf16.mxu0 0
        %4452 = vmatmul.mubr.bf16.gmra.mxu0 %v498
        %v4453 = vpop.f32.mrf.mxu0
        %v4454 = vadd.f32 %v4249, %v4453
        %v4455 = vpop.f32.mrf.mxu0
        %v4456 = vpop.f32.mrf.mxu0
        %v4457 = vadd.f32 %v4249, %v4456
        %v4458 = vpop.f32.mrf.mxu0
        %4459 = vdwg.mxu0
        %v4460 = vsub.f32 0.0, %v4334
        %v4461 = vsub.f32 0.0, %v4337
        %v4462 = vsub.f32 0.0, %v4342
        %v4463 = vsub.f32 0.0, %v4345
        %v4464 = vsub.f32 0.0, %v4350
        %v4465 = vsub.f32 0.0, %v4353
        %v4466 = vsub.f32 0.0, %v4358
        %v4467 = vsub.f32 0.0, %v4361
        %v4468 = vsub.f32 0.0, %v4366
        %v4469 = vsub.f32 0.0, %v4369
        %v4470 = vsub.f32 0.0, %v4374
        %v4471 = vsub.f32 0.0, %v4377
        %v4472 = vsub.f32 0.0, %v4382
        %v4473 = vsub.f32 0.0, %v4385
        %v4474 = vsub.f32 0.0, %v4390
        %v4475 = vsub.f32 0.0, %v4393
        %v4476 = vsub.f32 0.0, %v4398
        %v4477 = vsub.f32 0.0, %v4401
        %v4478 = vsub.f32 0.0, %v4406
        %v4479 = vsub.f32 0.0, %v4409
        %v4480 = vsub.f32 0.0, %v4414
        %v4481 = vsub.f32 0.0, %v4417
        %v4482 = vsub.f32 0.0, %v4422
        %v4483 = vsub.f32 0.0, %v4425
        %v4484 = vsub.f32 0.0, %v4430
        %v4485 = vsub.f32 0.0, %v4433
        %v4486 = vsub.f32 0.0, %v4438
        %v4487 = vsub.f32 0.0, %v4441
        %v4488 = vsub.f32 0.0, %v4446
        %v4489 = vsub.f32 0.0, %v4449
        %v4490 = vsub.f32 0.0, %v4454
        %v4491 = vsub.f32 0.0, %v4457
        %v4492 = vmul.f32 %v4460, 1.442695
        %v4493 = vpow.pop %v4492
        %v4494 = vmul.f32 %v4461, 1.442695
        %v4495 = vpow.pop %v4494
        %v4496 = vmul.f32 %v4462, 1.442695
        %v4497 = vpow.pop %v4496
        %v4498 = vmul.f32 %v4463, 1.442695
        %v4499 = vpow.pop %v4498
        %v4500 = vmul.f32 %v4464, 1.442695
        %v4501 = vpow.pop %v4500
        %v4502 = vmul.f32 %v4465, 1.442695
        %v4503 = vpow.pop %v4502
        %v4504 = vmul.f32 %v4466, 1.442695
        %v4505 = vpow.pop %v4504
        %v4506 = vmul.f32 %v4467, 1.442695
        %v4507 = vpow.pop %v4506
        %v4508 = vmul.f32 %v4468, 1.442695
        %v4509 = vpow.pop %v4508
        %v4510 = vmul.f32 %v4469, 1.442695
        %v4511 = vpow.pop %v4510
        %v4512 = vmul.f32 %v4470, 1.442695
        %v4513 = vpow.pop %v4512
        %v4514 = vmul.f32 %v4471, 1.442695
        %v4515 = vpow.pop %v4514
        %v4516 = vmul.f32 %v4472, 1.442695
        %v4517 = vpow.pop %v4516
        %v4518 = vmul.f32 %v4473, 1.442695
        %v4519 = vpow.pop %v4518
        %v4520 = vmul.f32 %v4474, 1.442695
        %v4521 = vpow.pop %v4520
        %v4522 = vmul.f32 %v4475, 1.442695
        %v4523 = vpow.pop %v4522
        %v4524 = vmul.f32 %v4476, 1.442695
        %v4525 = vpow.pop %v4524
        %v4526 = vmul.f32 %v4477, 1.442695
        %v4527 = vpow.pop %v4526
        %v4528 = vmul.f32 %v4478, 1.442695
        %v4529 = vpow.pop %v4528
        %v4530 = vmul.f32 %v4479, 1.442695
        %v4531 = vpow.pop %v4530
        %v4532 = vmul.f32 %v4480, 1.442695
        %v4533 = vpow.pop %v4532
        %v4534 = vmul.f32 %v4481, 1.442695
        %v4535 = vpow.pop %v4534
        %v4536 = vmul.f32 %v4482, 1.442695
        %v4537 = vpow.pop %v4536
        %v4538 = vmul.f32 %v4483, 1.442695
        %v4539 = vpow.pop %v4538
        %v4540 = vmul.f32 %v4484, 1.442695
        %v4541 = vpow.pop %v4540
        %v4542 = vmul.f32 %v4485, 1.442695
        %v4543 = vpow.pop %v4542
        %v4544 = vmul.f32 %v4486, 1.442695
        %v4545 = vpow.pop %v4544
        %v4546 = vmul.f32 %v4487, 1.442695
        %v4547 = vpow.pop %v4546
        %v4548 = vmul.f32 %v4488, 1.442695
        %v4549 = vpow.pop %v4548
        %v4550 = vmul.f32 %v4489, 1.442695
        %v4551 = vpow.pop %v4550
        %v4552 = vmul.f32 %v4490, 1.442695
        %v4553 = vpow.pop %v4552
        %v4554 = vmul.f32 %v4491, 1.442695
        %v4555 = vpow.pop %v4554
        %v4556 = vadd.f32 %v4493, 1.0
        %v4557 = vadd.f32 %v4495, 1.0
        %v4558 = vadd.f32 %v4497, 1.0
        %v4559 = vadd.f32 %v4499, 1.0
        %v4560 = vadd.f32 %v4501, 1.0
        %v4561 = vadd.f32 %v4503, 1.0
        %v4562 = vadd.f32 %v4505, 1.0
        %v4563 = vadd.f32 %v4507, 1.0
        %v4564 = vadd.f32 %v4509, 1.0
        %v4565 = vadd.f32 %v4511, 1.0
        %v4566 = vadd.f32 %v4513, 1.0
        %v4567 = vadd.f32 %v4515, 1.0
        %v4568 = vadd.f32 %v4517, 1.0
        %v4569 = vadd.f32 %v4519, 1.0
        %v4570 = vadd.f32 %v4521, 1.0
        %v4571 = vadd.f32 %v4523, 1.0
        %v4572 = vadd.f32 %v4525, 1.0
        %v4573 = vadd.f32 %v4527, 1.0
        %v4574 = vadd.f32 %v4529, 1.0
        %v4575 = vadd.f32 %v4531, 1.0
        %v4576 = vadd.f32 %v4533, 1.0
        %v4577 = vadd.f32 %v4535, 1.0
        %v4578 = vadd.f32 %v4537, 1.0
        %v4579 = vadd.f32 %v4539, 1.0
        %v4580 = vadd.f32 %v4541, 1.0
        %v4581 = vadd.f32 %v4543, 1.0
        %v4582 = vadd.f32 %v4545, 1.0
        %v4583 = vadd.f32 %v4547, 1.0
        %v4584 = vadd.f32 %v4549, 1.0
        %v4585 = vadd.f32 %v4551, 1.0
        %v4586 = vadd.f32 %v4553, 1.0
        %v4587 = vadd.f32 %v4555, 1.0
        %v4588 = vrcp.pop %v4556
        %v4589 = vrcp.pop %v4557
        %v4590 = vrcp.pop %v4558
        %v4591 = vrcp.pop %v4559
        %v4592 = vrcp.pop %v4560
        %v4593 = vrcp.pop %v4561
        %v4594 = vrcp.pop %v4562
        %v4595 = vrcp.pop %v4563
        %v4596 = vrcp.pop %v4564
        %v4597 = vrcp.pop %v4565
        %v4598 = vrcp.pop %v4566
        %v4599 = vrcp.pop %v4567
        %v4600 = vrcp.pop %v4568
        %v4601 = vrcp.pop %v4569
        %v4602 = vrcp.pop %v4570
        %v4603 = vrcp.pop %v4571
        %v4604 = vrcp.pop %v4572
        %v4605 = vrcp.pop %v4573
        %v4606 = vrcp.pop %v4574
        %v4607 = vrcp.pop %v4575
        %v4608 = vrcp.pop %v4576
        %v4609 = vrcp.pop %v4577
        %v4610 = vrcp.pop %v4578
        %v4611 = vrcp.pop %v4579
        %v4612 = vrcp.pop %v4580
        %v4613 = vrcp.pop %v4581
        %v4614 = vrcp.pop %v4582
        %v4615 = vrcp.pop %v4583
        %v4616 = vrcp.pop %v4584
        %v4617 = vrcp.pop %v4585
        %v4618 = vrcp.pop %v4586
        %v4619 = vrcp.pop %v4587
        %v4620 = vmul.f32 %v4334, %v4588
        %v4621 = vmul.f32 %v4337, %v4589
        %v4622 = vmul.f32 %v4342, %v4590
        %v4623 = vmul.f32 %v4345, %v4591
        %v4624 = vmul.f32 %v4350, %v4592
        %v4625 = vmul.f32 %v4353, %v4593
        %v4626 = vmul.f32 %v4358, %v4594
        %v4627 = vmul.f32 %v4361, %v4595
        %v4628 = vmul.f32 %v4366, %v4596
        %v4629 = vmul.f32 %v4369, %v4597
        %v4630 = vmul.f32 %v4374, %v4598
        %v4631 = vmul.f32 %v4377, %v4599
        %v4632 = vmul.f32 %v4382, %v4600
        %v4633 = vmul.f32 %v4385, %v4601
        %v4634 = vmul.f32 %v4390, %v4602
        %v4635 = vmul.f32 %v4393, %v4603
        %v4636 = vmul.f32 %v4398, %v4604
        %v4637 = vmul.f32 %v4401, %v4605
        %v4638 = vmul.f32 %v4406, %v4606
        %v4639 = vmul.f32 %v4409, %v4607
        %v4640 = vmul.f32 %v4414, %v4608
        %v4641 = vmul.f32 %v4417, %v4609
        %v4642 = vmul.f32 %v4422, %v4610
        %v4643 = vmul.f32 %v4425, %v4611
        %v4644 = vmul.f32 %v4430, %v4612
        %v4645 = vmul.f32 %v4433, %v4613
        %v4646 = vmul.f32 %v4438, %v4614
        %v4647 = vmul.f32 %v4441, %v4615
        %v4648 = vmul.f32 %v4446, %v4616
        %v4649 = vmul.f32 %v4449, %v4617
        %v4650 = vmul.f32 %v4454, %v4618
        %v4651 = vmul.f32 %v4457, %v4619
        %v4652 = vpack.c.bf16 %v4197, %v4196
        %v4653 = vpack.c.bf16 %v4199, %v4198
        %v4654 = vpack.c.bf16 %v4201, %v4200
        %v4655 = vpack.c.bf16 %v4203, %v4202
        %v4656 = vpack.c.bf16 %v4205, %v4204
        %v4657 = vpack.c.bf16 %v4207, %v4206
        %v4658 = vpack.c.bf16 %v4209, %v4208
        %v4659 = vpack.c.bf16 %v4211, %v4210
        %v4660 = vpack.c.bf16 %v4213, %v4212
        %v4661 = vpack.c.bf16 %v4215, %v4214
        %v4662 = vpack.c.bf16 %v4217, %v4216
        %v4663 = vpack.c.bf16 %v4219, %v4218
        %v4664 = vpack.c.bf16 %v4221, %v4220
        %v4665 = vpack.c.bf16 %v4223, %v4222
        %v4666 = vpack.c.bf16 %v4225, %v4224
        %v4667 = vpack.c.bf16 %v4227, %v4226
        %v4668 = vpack.c.bf16 %v4621, %v4620
        %v4669 = vpack.c.bf16 %v4623, %v4622
        %v4670 = vpack.c.bf16 %v4625, %v4624
        %v4671 = vpack.c.bf16 %v4627, %v4626
        %v4672 = vpack.c.bf16 %v4629, %v4628
        %v4673 = vpack.c.bf16 %v4631, %v4630
        %v4674 = vpack.c.bf16 %v4633, %v4632
        %v4675 = vpack.c.bf16 %v4635, %v4634
        %v4676 = vpack.c.bf16 %v4637, %v4636
        %v4677 = vpack.c.bf16 %v4639, %v4638
        %v4678 = vpack.c.bf16 %v4641, %v4640
        %v4679 = vpack.c.bf16 %v4643, %v4642
        %v4680 = vpack.c.bf16 %v4645, %v4644
        %v4681 = vpack.c.bf16 %v4647, %v4646
        %v4682 = vpack.c.bf16 %v4649, %v4648
        %v4683 = vpack.c.bf16 %v4651, %v4650
        %v4684 = vld [vmem:[%s9] sm:$0xf]
        %v4685 = vld [vmem:[%s9 + $0x4] sm:$0xf]
        %v4686 = vld [vmem:[%s9 + $0x8] sm:$0xf]
        %v4687 = vld [vmem:[%s9 + $0xc] sm:$0xf]
        %v4688 = vld [vmem:[%s9 + $0x10] sm:$0xf]
        %v4689 = vld [vmem:[%s9 + $0x14] sm:$0xf]
        %v4690 = vld [vmem:[%s9 + $0x18] sm:$0xf]
        %v4691 = vld [vmem:[%s9 + $0x1c] sm:$0xf]
        %v4692 = vld [vmem:[%s9 + $0x20] sm:$0xf]
        %v4693 = vld [vmem:[%s9 + $0x24] sm:$0xf]
        %v4694 = vld [vmem:[%s9 + $0x28] sm:$0xf]
        %v4695 = vld [vmem:[%s9 + $0x2c] sm:$0xf]
        %v4696 = vld [vmem:[%s9 + $0x30] sm:$0xf]
        %v4697 = vld [vmem:[%s9 + $0x34] sm:$0xf]
        %v4698 = vld [vmem:[%s9 + $0x38] sm:$0xf]
        %v4699 = vld [vmem:[%s9 + $0x3c] sm:$0xf]
        %v4700 = vld [vmem:[%s9 + $0x40] sm:$0xf]
        %v4701 = vld [vmem:[%s9 + $0x44] sm:$0xf]
        %v4702 = vld [vmem:[%s9 + $0x48] sm:$0xf]
        %v4703 = vld [vmem:[%s9 + $0x4c] sm:$0xf]
        %v4704 = vld [vmem:[%s9 + $0x50] sm:$0xf]
        %v4705 = vld [vmem:[%s9 + $0x54] sm:$0xf]
        %v4706 = vld [vmem:[%s9 + $0x58] sm:$0xf]
        %v4707 = vld [vmem:[%s9 + $0x5c] sm:$0xf]
        %v4708 = vld [vmem:[%s9 + $0x60] sm:$0xf]
        %v4709 = vld [vmem:[%s9 + $0x64] sm:$0xf]
        %v4710 = vld [vmem:[%s9 + $0x68] sm:$0xf]
        %v4711 = vld [vmem:[%s9 + $0x6c] sm:$0xf]
        %v4712 = vld [vmem:[%s9 + $0x70] sm:$0xf]
        %v4713 = vld [vmem:[%s9 + $0x74] sm:$0xf]
        %v4714 = vld [vmem:[%s9 + $0x78] sm:$0xf]
        %v4715 = vld [vmem:[%s9 + $0x7c] sm:$0xf]
        %v4716 = vld [vmem:[%s10] sm:$0x1]
        %v4718 = vlaneseq
        %v4719 = vshrl.u32 %v4718, 7
        %v4720 = vsub.s32 0, %v4719
        %v4721 = vrot.slane %v4716, %v4720
        %v4755 = vunpack.c.l.b16 %v4684
        %v4756 = vunpack.c.l.b16 %v4685
        %v4757 = vunpack.c.l.b16 %v4686
        %v4758 = vunpack.c.l.b16 %v4687
        %v4759 = vunpack.c.l.b16 %v4688
        %v4760 = vunpack.c.l.b16 %v4689
        %v4761 = vunpack.c.l.b16 %v4690
        %v4762 = vunpack.c.l.b16 %v4691
        %v4763 = vunpack.c.l.b16 %v4692
        %v4764 = vunpack.c.l.b16 %v4693
        %v4765 = vunpack.c.l.b16 %v4694
        %v4766 = vunpack.c.l.b16 %v4695
        %v4767 = vunpack.c.l.b16 %v4696
        %v4768 = vunpack.c.l.b16 %v4697
        %v4769 = vunpack.c.l.b16 %v4698
        %v4770 = vunpack.c.l.b16 %v4699
        %v4771 = vunpack.c.l.b16 %v4700
        %v4772 = vunpack.c.l.b16 %v4701
        %v4773 = vunpack.c.l.b16 %v4702
        %v4774 = vunpack.c.l.b16 %v4703
        %v4775 = vunpack.c.l.b16 %v4704
        %v4776 = vunpack.c.l.b16 %v4705
        %v4777 = vunpack.c.l.b16 %v4706
        %v4778 = vunpack.c.l.b16 %v4707
        %v4779 = vunpack.c.l.b16 %v4708
        %v4780 = vunpack.c.l.b16 %v4709
        %v4781 = vunpack.c.l.b16 %v4710
        %v4782 = vunpack.c.l.b16 %v4711
        %v4783 = vunpack.c.l.b16 %v4712
        %v4784 = vunpack.c.l.b16 %v4713
        %v4785 = vunpack.c.l.b16 %v4714
        %v4786 = vunpack.c.l.b16 %v4715
        %v4787 = vpack.c.b16 %v4756, %v4755
        %v4788 = vpack.c.b16 %v4758, %v4757
        %v4789 = vpack.c.b16 %v4760, %v4759
        %v4790 = vpack.c.b16 %v4762, %v4761
        %v4791 = vpack.c.b16 %v4764, %v4763
        %v4792 = vpack.c.b16 %v4766, %v4765
        %v4793 = vpack.c.b16 %v4768, %v4767
        %v4794 = vpack.c.b16 %v4770, %v4769
        %v4795 = vpack.c.b16 %v4772, %v4771
        %v4796 = vpack.c.b16 %v4774, %v4773
        %v4797 = vpack.c.b16 %v4776, %v4775
        %v4798 = vpack.c.b16 %v4778, %v4777
        %v4799 = vpack.c.b16 %v4780, %v4779
        %v4800 = vpack.c.b16 %v4782, %v4781
        %v4801 = vpack.c.b16 %v4784, %v4783
        %v4802 = vpack.c.b16 %v4786, %v4785
        %4819 = vmatprep.subr.bf16.mxu0 0
        %4820 = vmatpush1.bf16.msra.mxu0 %v4794
        %4821 = vmatprep.subr.bf16.mxu0 0
        %4822 = vmatpush1.bf16.msra.mxu0 %v4793
        %4823 = vmatprep.subr.bf16.mxu0 0
        %4824 = vmatpush1.bf16.msra.mxu0 %v4792
        %4825 = vmatprep.subr.bf16.mxu0 0
        %4826 = vmatpush1.bf16.msra.mxu0 %v4791
        %4827 = vmatprep.subr.bf16.mxu0 0
        %4828 = vmatpush1.bf16.msra.mxu0 %v4790
        %4829 = vmatprep.subr.bf16.mxu0 0
        %4830 = vmatpush1.bf16.msra.mxu0 %v4789
        %4831 = vmatprep.subr.bf16.mxu0 0
        %4832 = vmatpush1.bf16.msra.mxu0 %v4788
        %4833 = vmatprep.subr.bf16.mxu0 0
        %4834 = vmatpush1.bf16.msra.mxu0 %v4787
        %4835 = vmatprep.subr.bf16.mxu0 0
        %4836 = vmatpush2.bf16.msra.mxu0 %v4802
        %4837 = vmatprep.subr.bf16.mxu0 0
        %4838 = vmatpush2.bf16.msra.mxu0 %v4801
        %4839 = vmatprep.subr.bf16.mxu0 0
        %4840 = vmatpush2.bf16.msra.mxu0 %v4800
        %4841 = vmatprep.subr.bf16.mxu0 0
        %4842 = vmatpush2.bf16.msra.mxu0 %v4799
        %4843 = vmatprep.subr.bf16.mxu0 0
        %4844 = vmatpush2.bf16.msra.mxu0 %v4798
        %4845 = vmatprep.subr.bf16.mxu0 0
        %4846 = vmatpush2.bf16.msra.mxu0 %v4797
        %4847 = vmatprep.subr.bf16.mxu0 0
        %4848 = vmatpush2.bf16.msra.mxu0 %v4796
        %4849 = vmatprep.subr.bf16.mxu0 0
        %4850 = vmatpush2.bf16.msra.mxu0 %v4795
        %4851 = vmatprep.mubr.bf16.mxu0 %v4668
        %4852 = vmatmul.mubr.bf16.gmra.mxu0 %v4652
        %v4853 = vpop.f32.mrf.mxu0
        %v4854 = vadd.f32 %v4721, %v4853
        %v4855 = vpop.f32.mrf.mxu0
        %v4856 = vpop.f32.mrf.mxu0
        %v4857 = vadd.f32 %v4721, %v4856
        %v4858 = vpop.f32.mrf.mxu0
        %4859 = vmatprep.mubr.bf16.mxu0 %v4669
        %4860 = vmatmul.mubr.bf16.gmra.mxu0 %v4653
        %v4861 = vpop.f32.mrf.mxu0
        %v4862 = vadd.f32 %v4721, %v4861
        %v4863 = vpop.f32.mrf.mxu0
        %v4864 = vpop.f32.mrf.mxu0
        %v4865 = vadd.f32 %v4721, %v4864
        %v4866 = vpop.f32.mrf.mxu0
        %4867 = vmatprep.mubr.bf16.mxu0 %v4670
        %4868 = vmatmul.mubr.bf16.gmra.mxu0 %v4654
        %v4869 = vpop.f32.mrf.mxu0
        %v4870 = vadd.f32 %v4721, %v4869
        %v4871 = vpop.f32.mrf.mxu0
        %v4872 = vpop.f32.mrf.mxu0
        %v4873 = vadd.f32 %v4721, %v4872
        %v4874 = vpop.f32.mrf.mxu0
        %4875 = vmatprep.mubr.bf16.mxu0 %v4671
        %4876 = vmatmul.mubr.bf16.gmra.mxu0 %v4655
        %v4877 = vpop.f32.mrf.mxu0
        %v4878 = vadd.f32 %v4721, %v4877
        %v4879 = vpop.f32.mrf.mxu0
        %v4880 = vpop.f32.mrf.mxu0
        %v4881 = vadd.f32 %v4721, %v4880
        %v4882 = vpop.f32.mrf.mxu0
        %4883 = vmatprep.mubr.bf16.mxu0 %v4672
        %4884 = vmatmul.mubr.bf16.gmra.mxu0 %v4656
        %v4885 = vpop.f32.mrf.mxu0
        %v4886 = vadd.f32 %v4721, %v4885
        %v4887 = vpop.f32.mrf.mxu0
        %v4888 = vpop.f32.mrf.mxu0
        %v4889 = vadd.f32 %v4721, %v4888
        %v4890 = vpop.f32.mrf.mxu0
        %4891 = vmatprep.mubr.bf16.mxu0 %v4673
        %4892 = vmatmul.mubr.bf16.gmra.mxu0 %v4657
        %v4893 = vpop.f32.mrf.mxu0
        %v4894 = vadd.f32 %v4721, %v4893
        %v4895 = vpop.f32.mrf.mxu0
        %v4896 = vpop.f32.mrf.mxu0
        %v4897 = vadd.f32 %v4721, %v4896
        %v4898 = vpop.f32.mrf.mxu0
        %4899 = vmatprep.mubr.bf16.mxu0 %v4674
        %4900 = vmatmul.mubr.bf16.gmra.mxu0 %v4658
        %v4901 = vpop.f32.mrf.mxu0
        %v4902 = vadd.f32 %v4721, %v4901
        %v4903 = vpop.f32.mrf.mxu0
        %v4904 = vpop.f32.mrf.mxu0
        %v4905 = vadd.f32 %v4721, %v4904
        %v4906 = vpop.f32.mrf.mxu0
        %4907 = vmatprep.mubr.bf16.mxu0 %v4675
        %4908 = vmatmul.mubr.bf16.gmra.mxu0 %v4659
        %v4909 = vpop.f32.mrf.mxu0
        %v4910 = vadd.f32 %v4721, %v4909
        %v4911 = vpop.f32.mrf.mxu0
        %v4912 = vpop.f32.mrf.mxu0
        %v4913 = vadd.f32 %v4721, %v4912
        %v4914 = vpop.f32.mrf.mxu0
        %4915 = vmatprep.mubr.bf16.mxu0 %v4676
        %4916 = vmatmul.mubr.bf16.gmra.mxu0 %v4660
        %v4917 = vpop.f32.mrf.mxu0
        %v4918 = vadd.f32 %v4721, %v4917
        %v4919 = vpop.f32.mrf.mxu0
        %v4920 = vpop.f32.mrf.mxu0
        %v4921 = vadd.f32 %v4721, %v4920
        %v4922 = vpop.f32.mrf.mxu0
        %4923 = vmatprep.mubr.bf16.mxu0 %v4677
        %4924 = vmatmul.mubr.bf16.gmra.mxu0 %v4661
        %v4925 = vpop.f32.mrf.mxu0
        %v4926 = vadd.f32 %v4721, %v4925
        %v4927 = vpop.f32.mrf.mxu0
        %v4928 = vpop.f32.mrf.mxu0
        %v4929 = vadd.f32 %v4721, %v4928
        %v4930 = vpop.f32.mrf.mxu0
        %4931 = vmatprep.mubr.bf16.mxu0 %v4678
        %4932 = vmatmul.mubr.bf16.gmra.mxu0 %v4662
        %v4933 = vpop.f32.mrf.mxu0
        %v4934 = vadd.f32 %v4721, %v4933
        %v4935 = vpop.f32.mrf.mxu0
        %v4936 = vpop.f32.mrf.mxu0
        %v4937 = vadd.f32 %v4721, %v4936
        %v4938 = vpop.f32.mrf.mxu0
        %4939 = vmatprep.mubr.bf16.mxu0 %v4679
        %4940 = vmatmul.mubr.bf16.gmra.mxu0 %v4663
        %v4941 = vpop.f32.mrf.mxu0
        %v4942 = vadd.f32 %v4721, %v4941
        %v4943 = vpop.f32.mrf.mxu0
        %v4944 = vpop.f32.mrf.mxu0
        %v4945 = vadd.f32 %v4721, %v4944
        %v4946 = vpop.f32.mrf.mxu0
        %4947 = vmatprep.mubr.bf16.mxu0 %v4680
        %4948 = vmatmul.mubr.bf16.gmra.mxu0 %v4664
        %v4949 = vpop.f32.mrf.mxu0
        %v4950 = vadd.f32 %v4721, %v4949
        %v4951 = vpop.f32.mrf.mxu0
        %v4952 = vpop.f32.mrf.mxu0
        %v4953 = vadd.f32 %v4721, %v4952
        %v4954 = vpop.f32.mrf.mxu0
        %4955 = vmatprep.mubr.bf16.mxu0 %v4681
        %4956 = vmatmul.mubr.bf16.gmra.mxu0 %v4665
        %v4957 = vpop.f32.mrf.mxu0
        %v4958 = vadd.f32 %v4721, %v4957
        %v4959 = vpop.f32.mrf.mxu0
        %v4960 = vpop.f32.mrf.mxu0
        %v4961 = vadd.f32 %v4721, %v4960
        %v4962 = vpop.f32.mrf.mxu0
        %4963 = vmatprep.mubr.bf16.mxu0 %v4682
        %4964 = vmatmul.mubr.bf16.gmra.mxu0 %v4666
        %v4965 = vpop.f32.mrf.mxu0
        %v4966 = vadd.f32 %v4721, %v4965
        %v4967 = vpop.f32.mrf.mxu0
        %v4968 = vpop.f32.mrf.mxu0
        %v4969 = vadd.f32 %v4721, %v4968
        %v4970 = vpop.f32.mrf.mxu0
        %4971 = vmatprep.mubr.bf16.mxu0 %v4683
        %4972 = vmatmul.mubr.bf16.gmra.mxu0 %v4667
        %v4973 = vpop.f32.mrf.mxu0
        %v4974 = vadd.f32 %v4721, %v4973
        %v4975 = vpop.f32.mrf.mxu0
        %v4976 = vpop.f32.mrf.mxu0
        %v4977 = vadd.f32 %v4721, %v4976
        %v4978 = vpop.f32.mrf.mxu0
        %4979 = vdwg.mxu0
        %v4980 = vsub.f32 0.0, %v4854
        %v4981 = vsub.f32 0.0, %v4857
        %v4982 = vsub.f32 0.0, %v4862
        %v4983 = vsub.f32 0.0, %v4865
        %v4984 = vsub.f32 0.0, %v4870
        %v4985 = vsub.f32 0.0, %v4873
        %v4986 = vsub.f32 0.0, %v4878
        %v4987 = vsub.f32 0.0, %v4881
        %v4988 = vsub.f32 0.0, %v4886
        %v4989 = vsub.f32 0.0, %v4889
        %v4990 = vsub.f32 0.0, %v4894
        %v4991 = vsub.f32 0.0, %v4897
        %v4992 = vsub.f32 0.0, %v4902
        %v4993 = vsub.f32 0.0, %v4905
        %v4994 = vsub.f32 0.0, %v4910
        %v4995 = vsub.f32 0.0, %v4913
        %v4996 = vsub.f32 0.0, %v4918
        %v4997 = vsub.f32 0.0, %v4921
        %v4998 = vsub.f32 0.0, %v4926
        %v4999 = vsub.f32 0.0, %v4929
        %v5000 = vsub.f32 0.0, %v4934
        %v5001 = vsub.f32 0.0, %v4937
        %v5002 = vsub.f32 0.0, %v4942
        %v5003 = vsub.f32 0.0, %v4945
        %v5004 = vsub.f32 0.0, %v4950
        %v5005 = vsub.f32 0.0, %v4953
        %v5006 = vsub.f32 0.0, %v4958
        %v5007 = vsub.f32 0.0, %v4961
        %v5008 = vsub.f32 0.0, %v4966
        %v5009 = vsub.f32 0.0, %v4969
        %v5010 = vsub.f32 0.0, %v4974
        %v5011 = vsub.f32 0.0, %v4977
        %v5012 = vmul.f32 %v4980, 1.442695
        %v5013 = vpow.pop %v5012
        %v5014 = vmul.f32 %v4981, 1.442695
        %v5015 = vpow.pop %v5014
        %v5016 = vmul.f32 %v4982, 1.442695
        %v5017 = vpow.pop %v5016
        %v5018 = vmul.f32 %v4983, 1.442695
        %v5019 = vpow.pop %v5018
        %v5020 = vmul.f32 %v4984, 1.442695
        %v5021 = vpow.pop %v5020
        %v5022 = vmul.f32 %v4985, 1.442695
        %v5023 = vpow.pop %v5022
        %v5024 = vmul.f32 %v4986, 1.442695
        %v5025 = vpow.pop %v5024
        %v5026 = vmul.f32 %v4987, 1.442695
        %v5027 = vpow.pop %v5026
        %v5028 = vmul.f32 %v4988, 1.442695
        %v5029 = vpow.pop %v5028
        %v5030 = vmul.f32 %v4989, 1.442695
        %v5031 = vpow.pop %v5030
        %v5032 = vmul.f32 %v4990, 1.442695
        %v5033 = vpow.pop %v5032
        %v5034 = vmul.f32 %v4991, 1.442695
        %v5035 = vpow.pop %v5034
        %v5036 = vmul.f32 %v4992, 1.442695
        %v5037 = vpow.pop %v5036
        %v5038 = vmul.f32 %v4993, 1.442695
        %v5039 = vpow.pop %v5038
        %v5040 = vmul.f32 %v4994, 1.442695
        %v5041 = vpow.pop %v5040
        %v5042 = vmul.f32 %v4995, 1.442695
        %v5043 = vpow.pop %v5042
        %v5044 = vmul.f32 %v4996, 1.442695
        %v5045 = vpow.pop %v5044
        %v5046 = vmul.f32 %v4997, 1.442695
        %v5047 = vpow.pop %v5046
        %v5048 = vmul.f32 %v4998, 1.442695
        %v5049 = vpow.pop %v5048
        %v5050 = vmul.f32 %v4999, 1.442695
        %v5051 = vpow.pop %v5050
        %v5052 = vmul.f32 %v5000, 1.442695
        %v5053 = vpow.pop %v5052
        %v5054 = vmul.f32 %v5001, 1.442695
        %v5055 = vpow.pop %v5054
        %v5056 = vmul.f32 %v5002, 1.442695
        %v5057 = vpow.pop %v5056
        %v5058 = vmul.f32 %v5003, 1.442695
        %v5059 = vpow.pop %v5058
        %v5060 = vmul.f32 %v5004, 1.442695
        %v5061 = vpow.pop %v5060
        %v5062 = vmul.f32 %v5005, 1.442695
        %v5063 = vpow.pop %v5062
        %v5064 = vmul.f32 %v5006, 1.442695
        %v5065 = vpow.pop %v5064
        %v5066 = vmul.f32 %v5007, 1.442695
        %v5067 = vpow.pop %v5066
        %v5068 = vmul.f32 %v5008, 1.442695
        %v5069 = vpow.pop %v5068
        %v5070 = vmul.f32 %v5009, 1.442695
        %v5071 = vpow.pop %v5070
        %v5072 = vmul.f32 %v5010, 1.442695
        %v5073 = vpow.pop %v5072
        %v5074 = vmul.f32 %v5011, 1.442695
        %v5075 = vpow.pop %v5074
        %v5076 = vadd.f32 %v5013, 1.0
        %v5077 = vadd.f32 %v5015, 1.0
        %v5078 = vadd.f32 %v5017, 1.0
        %v5079 = vadd.f32 %v5019, 1.0
        %v5080 = vadd.f32 %v5021, 1.0
        %v5081 = vadd.f32 %v5023, 1.0
        %v5082 = vadd.f32 %v5025, 1.0
        %v5083 = vadd.f32 %v5027, 1.0
        %v5084 = vadd.f32 %v5029, 1.0
        %v5085 = vadd.f32 %v5031, 1.0
        %v5086 = vadd.f32 %v5033, 1.0
        %v5087 = vadd.f32 %v5035, 1.0
        %v5088 = vadd.f32 %v5037, 1.0
        %v5089 = vadd.f32 %v5039, 1.0
        %v5090 = vadd.f32 %v5041, 1.0
        %v5091 = vadd.f32 %v5043, 1.0
        %v5092 = vadd.f32 %v5045, 1.0
        %v5093 = vadd.f32 %v5047, 1.0
        %v5094 = vadd.f32 %v5049, 1.0
        %v5095 = vadd.f32 %v5051, 1.0
        %v5096 = vadd.f32 %v5053, 1.0
        %v5097 = vadd.f32 %v5055, 1.0
        %v5098 = vadd.f32 %v5057, 1.0
        %v5099 = vadd.f32 %v5059, 1.0
        %v5100 = vadd.f32 %v5061, 1.0
        %v5101 = vadd.f32 %v5063, 1.0
        %v5102 = vadd.f32 %v5065, 1.0
        %v5103 = vadd.f32 %v5067, 1.0
        %v5104 = vadd.f32 %v5069, 1.0
        %v5105 = vadd.f32 %v5071, 1.0
        %v5106 = vadd.f32 %v5073, 1.0
        %v5107 = vadd.f32 %v5075, 1.0
        %v5108 = vrcp.pop %v5076
        %v5109 = vrcp.pop %v5077
        %v5110 = vrcp.pop %v5078
        %v5111 = vrcp.pop %v5079
        %v5112 = vrcp.pop %v5080
        %v5113 = vrcp.pop %v5081
        %v5114 = vrcp.pop %v5082
        %v5115 = vrcp.pop %v5083
        %v5116 = vrcp.pop %v5084
        %v5117 = vrcp.pop %v5085
        %v5118 = vrcp.pop %v5086
        %v5119 = vrcp.pop %v5087
        %v5120 = vrcp.pop %v5088
        %v5121 = vrcp.pop %v5089
        %v5122 = vrcp.pop %v5090
        %v5123 = vrcp.pop %v5091
        %v5124 = vrcp.pop %v5092
        %v5125 = vrcp.pop %v5093
        %v5126 = vrcp.pop %v5094
        %v5127 = vrcp.pop %v5095
        %v5128 = vrcp.pop %v5096
        %v5129 = vrcp.pop %v5097
        %v5130 = vrcp.pop %v5098
        %v5131 = vrcp.pop %v5099
        %v5132 = vrcp.pop %v5100
        %v5133 = vrcp.pop %v5101
        %v5134 = vrcp.pop %v5102
        %v5135 = vrcp.pop %v5103
        %v5136 = vrcp.pop %v5104
        %v5137 = vrcp.pop %v5105
        %v5138 = vrcp.pop %v5106
        %v5139 = vrcp.pop %v5107
        %v5140 = vmul.f32 %v4854, %v5108
        %v5141 = vmul.f32 %v4857, %v5109
        %v5142 = vmul.f32 %v4862, %v5110
        %v5143 = vmul.f32 %v4865, %v5111
        %v5144 = vmul.f32 %v4870, %v5112
        %v5145 = vmul.f32 %v4873, %v5113
        %v5146 = vmul.f32 %v4878, %v5114
        %v5147 = vmul.f32 %v4881, %v5115
        %v5148 = vmul.f32 %v4886, %v5116
        %v5149 = vmul.f32 %v4889, %v5117
        %v5150 = vmul.f32 %v4894, %v5118
        %v5151 = vmul.f32 %v4897, %v5119
        %v5152 = vmul.f32 %v4902, %v5120
        %v5153 = vmul.f32 %v4905, %v5121
        %v5154 = vmul.f32 %v4910, %v5122
        %v5155 = vmul.f32 %v4913, %v5123
        %v5156 = vmul.f32 %v4918, %v5124
        %v5157 = vmul.f32 %v4921, %v5125
        %v5158 = vmul.f32 %v4926, %v5126
        %v5159 = vmul.f32 %v4929, %v5127
        %v5160 = vmul.f32 %v4934, %v5128
        %v5161 = vmul.f32 %v4937, %v5129
        %v5162 = vmul.f32 %v4942, %v5130
        %v5163 = vmul.f32 %v4945, %v5131
        %v5164 = vmul.f32 %v4950, %v5132
        %v5165 = vmul.f32 %v4953, %v5133
        %v5166 = vmul.f32 %v4958, %v5134
        %v5167 = vmul.f32 %v4961, %v5135
        %v5168 = vmul.f32 %v4966, %v5136
        %v5169 = vmul.f32 %v4969, %v5137
        %v5170 = vmul.f32 %v4974, %v5138
        %v5171 = vmul.f32 %v4977, %v5139
        %5172 = vst.msk [vmem:[%s416] sm:$0xff] %vm450, %v5140
        %5173 = vst.msk [vmem:[%s416 + $0x8] sm:$0xff] %vm450, %v5141
        %5174 = vst.msk [vmem:[%s416 + $0x10] sm:$0xff] %vm450, %v5142
        %5175 = vst.msk [vmem:[%s416 + $0x18] sm:$0xff] %vm450, %v5143
        %5176 = vst.msk [vmem:[%s416 + $0x20] sm:$0xff] %vm450, %v5144
        %5177 = vst.msk [vmem:[%s416 + $0x28] sm:$0xff] %vm450, %v5145
        %5178 = vst.msk [vmem:[%s416 + $0x30] sm:$0xff] %vm450, %v5146
        %5179 = vst.msk [vmem:[%s416 + $0x38] sm:$0xff] %vm450, %v5147
        %5180 = vst.msk [vmem:[%s416 + $0x40] sm:$0xff] %vm450, %v5148
        %5181 = vst.msk [vmem:[%s416 + $0x48] sm:$0xff] %vm450, %v5149
        %5182 = vst.msk [vmem:[%s416 + $0x50] sm:$0xff] %vm450, %v5150
        %5183 = vst.msk [vmem:[%s416 + $0x58] sm:$0xff] %vm450, %v5151
        %5184 = vst.msk [vmem:[%s416 + $0x60] sm:$0xff] %vm450, %v5152
        %5185 = vst.msk [vmem:[%s416 + $0x68] sm:$0xff] %vm450, %v5153
        %5186 = vst.msk [vmem:[%s416 + $0x70] sm:$0xff] %vm450, %v5154
        %5187 = vst.msk [vmem:[%s416 + $0x78] sm:$0xff] %vm450, %v5155
        %5188 = vst.msk [vmem:[%s416 + $0x80] sm:$0xff] %vm450, %v5156
        %5189 = vst.msk [vmem:[%s416 + $0x88] sm:$0xff] %vm450, %v5157
        %5190 = vst.msk [vmem:[%s416 + $0x90] sm:$0xff] %vm450, %v5158
        %5191 = vst.msk [vmem:[%s416 + $0x98] sm:$0xff] %vm450, %v5159
        %5192 = vst.msk [vmem:[%s416 + $0xa0] sm:$0xff] %vm450, %v5160
        %5193 = vst.msk [vmem:[%s416 + $0xa8] sm:$0xff] %vm450, %v5161
        %5194 = vst.msk [vmem:[%s416 + $0xb0] sm:$0xff] %vm450, %v5162
        %5195 = vst.msk [vmem:[%s416 + $0xb8] sm:$0xff] %vm450, %v5163
        %5196 = vst.msk [vmem:[%s416 + $0xc0] sm:$0xff] %vm450, %v5164
        %5197 = vst.msk [vmem:[%s416 + $0xc8] sm:$0xff] %vm450, %v5165
        %5198 = vst.msk [vmem:[%s416 + $0xd0] sm:$0xff] %vm450, %v5166
        %5199 = vst.msk [vmem:[%s416 + $0xd8] sm:$0xff] %vm450, %v5167
        %5200 = vst.msk [vmem:[%s416 + $0xe0] sm:$0xff] %vm450, %v5168
        %5201 = vst.msk [vmem:[%s416 + $0xe8] sm:$0xff] %vm450, %v5169
        %5202 = vst.msk [vmem:[%s416 + $0xf0] sm:$0xff] %vm450, %v5170
        %5203 = vst.msk [vmem:[%s416 + $0xf8] sm:$0xff] %vm450, %v5171
        %p5204 = scmp.lt.s32.totalorder %s24, 1
        %s5205 = scalar_select %p5204, %s24, 1
        %s5206 = smul.addr %s5205, 32
        %s5207 = smul.addr %s5206, 8
        %s5208 = scalar_lea.vmem %s11, %s5207
        // Predicated region
        $region73: #{c3block_forward.1} parent=63 // pred_check
          %p5209 = pneg %p278
        $region74: #{c3block_forward.1} parent=63 // pred_check_branch
          %5211 = sbr.rel (%p5209) target = $region76
        $region75: #{c3block_forward.1} parent=63 // pred_region
          _
        $region76: #{c3block_forward.1} parent=63 // pred_fallthru
          _
      $region64: #{c3block_forward.1} parent=5 // pred_fallthru
        _
      %p5212 = scmp.le.s32.totalorder 2, %s19
      // Predicated region
      $region77: #{c3block_forward.1} parent=5 // pred_check
        %p5213 = pneg %p5212
      $region78: #{c3block_forward.1} parent=5 // pred_check_branch
        %5215 = sbr.rel (%p5213) target = $region80
      $region79: #{c3block_forward.1} parent=5 // pred_region
        %s5216 = ssub.s32 %s19, 2
        // Predicated region
        $region81: #{c3block_forward.1} parent=79 // pred_check
          %p5217 = pneg %p284
        $region82: #{c3block_forward.1} parent=79 // pred_check_branch
          %5219 = sbr.rel (%p5217) target = $region84
        $region83: #{c3block_forward.1} parent=79 // pred_region
          %p5220 = scmp.lt.s32.totalorder %s25, 1
          %s5221 = scalar_select %p5220, %s25, 1
          %s5222 = smul.addr %s5221, 32
          %s5223 = smul.addr %s5222, 8
          %s5224 = scalar_lea.vmem %s11, %s5223
        $region84: #{c3block_forward.1} parent=79 // pred_fallthru
          _
      $region80: #{c3block_forward.1} parent=5 // pred_fallthru
        _
    $region6: #{c3block_forward.1} parent=1 // loop_footer
      %s23 = sadd.s32 1, %s19
    $region7: #{c3block_forward.1} parent=1 // loop_footer_branch
      %18 = sbr.rel target = $region3
    $region8: #{c3block_forward.1} parent=1 // loop_exit
      _
    %5225 = vsyncpa [#allocation3], 1
    %s5226 = scalar_lea.sflag [#allocation3], 1
    %5227 = vsyncpa %s5226, 1
    %5228 = vsyncpa [#allocation5], 1

</llo_original>
